<compile_context>
chip_gen: v6e
topology: v6e:2x2x1
jax: 0.10.0
libtpu: 0.0.40
codegen_flags: <defaults>
</compile_context>

<pallas_src>
import functools

import jax
import jax.numpy as jnp
import numpy as np
from jax.experimental import pallas as pl
from jax.experimental.pallas import tpu as pltpu


def _transpose_last2(a):
  """(bb, X, Y) -> (bb, Y, X) via per-slice 2-D transposes (well-supported lowering)."""
  if a.shape[0] == 1:
    return a[0].T[None]
  return jnp.stack([a[i].T for i in range(a.shape[0])], axis=0)


def _fused_attention_block_kernel(
    x_ref, cond_ref, gproj_ref, wqkv_ref, wo_ref, wf1_ref, wf2_ref,
    o_ref,
    *, num_heads, head_dim, eps, ff_bf16,
):
  f32 = jnp.float32
  bf16 = jnp.bfloat16

  # x arrives channel-major (NCHW flattened): (BB, C, HW).  Transpose to
  # channels-last in-kernel (XLU) -- removes the wrapper-side HBM transposes.
  x = _transpose_last2(x_ref[...])                      # (BB, HW, C) f32
  bb, hw, c = x.shape
  m = bb * hw

  cond = cond_ref[...]                                  # (BB, 4, C): [s1, b1, s2, b2]
  scale1, shift1 = cond[:, 0:1, :], cond[:, 1:2, :]
  scale2, shift2 = cond[:, 2:3, :], cond[:, 3:4, :]

  gproj = gproj_ref[...]                                # (C, C) = same_group / (HW*gsize)

  def cond_group_norm(y, scale, shift):
    # Centered two-pass GroupNorm over (HW, channels-in-group); per-group
    # mean/var broadcast back to channels via one (C, C) projection matmul.
    s = jnp.sum(y, axis=1)                                               # (BB, C)
    mean_c = jnp.dot(s, gproj, preferred_element_type=f32)               # (BB, C)
    d = y - mean_c[:, None, :]
    var_c = jnp.dot(jnp.sum(d * d, axis=1), gproj, preferred_element_type=f32)
    yn = d * jax.lax.rsqrt(var_c + eps)[:, None, :]
    return yn * (scale + 1.0) + shift

  # ---- in_norm (conditional group norm) ----
  h1 = cond_group_norm(x, scale1, shift1)               # (BB, HW, C) f32

  # ---- fused QKV projection: bf16 operands on the MXU, f32 accumulation.
  #      sm_scale is pre-folded into the q columns of wqkv (wrapper side). ----
  qkv = jnp.dot(h1.reshape(m, c).astype(bf16), wqkv_ref[...],
                preferred_element_type=f32)             # (M, 3C) f32
  q = qkv[:, 0 * c:1 * c]
  k = qkv[:, 1 * c:2 * c]
  v = qkv[:, 2 * c:3 * c]

  # ---- multi-head self-attention: heads folded into the einsum batch dim ----
  # TODO(synk): at production HW / head counts, heads -> grid axis + flash-style
  # key-block online softmax (the (NH*BB, HW, HW) scores are materialized here).
  def to_heads(t):  # (M, C) -> (NH*BB, HW, hd), head-major along the batch axis
    return jnp.concatenate(
        [t[:, h * head_dim:(h + 1) * head_dim].reshape(bb, hw, head_dim)
         for h in range(num_heads)], axis=0).astype(bf16)

  qh, kh, vh = to_heads(q), to_heads(k), to_heads(v)
  s = jnp.einsum('bqd,bkd->bqk', qh, kh, preferred_element_type=f32)     # (NH*BB, HW, HW)
  s = s - jnp.max(s, axis=-1, keepdims=True)
  p = jnp.exp(s)
  p = p * pl.reciprocal(jnp.sum(p, axis=-1, keepdims=True), approx=True)
  oh = jnp.einsum('bqk,bkd->bqd', p.astype(bf16), vh,
                  preferred_element_type=f32)                            # (NH*BB, HW, hd)

  # Merge heads to a contiguous (M, C) slab and do ONE K=C out-projection
  # (instead of num_heads K=head_dim matmuls).
  oh_mc = jnp.concatenate(
      [oh[h * bb:(h + 1) * bb].reshape(m, head_dim) for h in range(num_heads)],
      axis=-1)                                                           # (M, C) f32
  attn = jnp.dot(oh_mc.astype(bf16), wo_ref[...], preferred_element_type=f32)

  x1 = x.reshape(m, c) + attn                                            # residual 1 (f32)

  # ---- out_norm + feed forward (1x1 convs == per-pixel linears) ----
  h2 = cond_group_norm(x1.reshape(bb, hw, c), scale2, shift2)
  f = jnp.dot(h2.reshape(m, c).astype(bf16), wf1_ref[...],
              preferred_element_type=f32)                                # (M, 4C) f32
  if ff_bf16:
    # v6e/v7x: bf16 VPU/EUP -> halve vreg pressure on the largest intermediate.
    fb = f.astype(bf16)
    act = fb * jax.nn.sigmoid(fb)
  else:
    # v5e: no bf16 VALU/EUP, keep SiLU in f32.
    act = (f * jax.nn.sigmoid(f)).astype(bf16)
  ff = jnp.dot(act, wf2_ref[...], preferred_element_type=f32)            # (M, C) f32

  out = (x1 + ff).reshape(bb, hw, c)                                     # residual 2
  o_ref[...] = _transpose_last2(out)                                     # back to (BB, C, HW)


def attention_block_forward(x_nchw, time_embed, params, *, norm_groups, head_dim):
  B, C, H, W = x_nchw.shape
  HW = H * W
  G = norm_groups
  num_heads = C // head_dim
  hidden = params["wf1"].shape[1]

  # --- glue: conditional scale/shift from the time embedding (tiny MLPs) ---
  def time_mlp(w, b):
    t = jax.nn.silu(time_embed) @ w + b                                  # (B, 2C)
    return t[:, :C], t[:, C:]

  s1, b1 = time_mlp(params["t1_w"], params["t1_b"])
  s2, b2 = time_mlp(params["t2_w"], params["t2_b"])
  cond = jnp.stack([s1, b1, s2, b2], axis=1).astype(jnp.float32)         # (B, 4, C)

  # group-projection matrix: 1/(HW*group_size) where channels share a group
  group_size = C // G
  same_group = (jnp.arange(C)[:, None] // group_size) == (jnp.arange(C)[None, :] // group_size)
  gproj = same_group.astype(jnp.float32) / float(HW * group_size)        # (C, C)

  # bf16 weights (half the weight DMA); softmax scale folded into the q columns.
  sm_scale = 1.0 / (head_dim ** 0.5)
  wqkv = jnp.concatenate([params["wq"] * sm_scale, params["wk"], params["wv"]],
                         axis=1).astype(jnp.bfloat16)                    # (C, 3C)
  wo = params["wo"].astype(jnp.bfloat16)
  wf1 = params["wf1"].astype(jnp.bfloat16)
  wf2 = params["wf2"].astype(jnp.bfloat16)

  # Keep x channel-major: (B, C, H, W) -> (B, C, HW) is a free reshape.
  # (No wrapper-side HBM transpose; the kernel transposes tiles on the XLU.)
  x_flat = x_nchw.reshape(B, C, HW).astype(jnp.float32)

  # Chip-dependent static choices.
  kind = ""
  try:
    kind = jax.devices()[0].device_kind.lower()
  except Exception:
    pass
  megacore = ("v7" in kind) or ("7x" in kind)          # v7x: 2 TensorCores/chip
  ff_bf16 = ("v6" in kind) or megacore                 # bf16 VPU/EUP available

  # Batch-block selection: fill the matmul M-dim towards 128 rows, but on
  # megacore parts keep the grid >= 2 steps so both TensorCores get work and
  # step-(i+1) x-DMA overlaps step-i compute.
  bb = 1
  for cand in range(1, B + 1):
    if B % cand:
      continue
    if cand * HW > 128:
      continue
    if megacore and B >= 2 and B // cand < 2:
      continue
    bb = cand

  kernel = functools.partial(
      _fused_attention_block_kernel,
      num_heads=num_heads, head_dim=head_dim, eps=1e-5, ff_bf16=ff_bf16)

  def const_spec(shape):
    return pl.BlockSpec(shape, lambda b: (0, 0))

  out = pl.pallas_call(
      kernel,
      out_shape=jax.ShapeDtypeStruct((B, C, HW), jnp.float32),
      grid_spec=pltpu.PrefetchScalarGridSpec(
          num_scalar_prefetch=0,
          grid=(B // bb,),
          in_specs=[
              pl.BlockSpec((bb, C, HW), lambda b: (b, 0, 0)),   # x (channel-major)
              pl.BlockSpec((bb, 4, C), lambda b: (b, 0, 0)),    # packed scale/shift
              const_spec((C, C)),                               # group projection (f32)
              const_spec((C, 3 * C)),                           # wqkv (bf16, q pre-scaled)
              const_spec((C, C)),                               # wo   (bf16)
              const_spec((C, hidden)),                          # wf1  (bf16)
              const_spec((hidden, C)),                          # wf2  (bf16)
          ],
          out_specs=pl.BlockSpec((bb, C, HW), lambda b: (b, 0, 0)),
      ),
      compiler_params=pltpu.CompilerParams(
          dimension_semantics=("parallel",),            # megacore sharding on v7x
          vmem_limit_bytes=32 * 1024 * 1024),           # explicit (v5e default is 16 MiB)
  )(x_flat, cond, gproj, wqkv, wo, wf1, wf2)

  return out.reshape(B, C, H, W)


# ----------------------- pure-JAX reference (for checking) -----------------------
def reference_forward(x, time_embed, params, *, norm_groups, head_dim):
  B, C, H, W = x.shape
  G = norm_groups
  num_heads = C // head_dim

  def cond_gn(y, w, b):
    t = jax.nn.silu(time_embed) @ w + b
    scale, shift = t[:, :C], t[:, C:]
    yr = y.reshape(B, G, C // G, H, W)
    mean = yr.mean(axis=(2, 3, 4), keepdims=True)
    var = yr.var(axis=(2, 3, 4), keepdims=True)
    yn = ((yr - mean) / jnp.sqrt(var + 1e-5)).reshape(B, C, H, W)
    return yn * (scale[:, :, None, None] + 1.0) + shift[:, :, None, None]

  with jax.default_matmul_precision("highest"):
    out = cond_gn(x, params["t1_w"], params["t1_b"])
    out = out.reshape(B, C, H * W).transpose(0, 2, 1)                    # (B, HW, C)
    q = out @ params["wq"]
    k = out @ params["wk"]
    v = out @ params["wv"]

    def split_heads(t):
      return t.reshape(B, H * W, num_heads, head_dim).transpose(0, 2, 1, 3)

    qh, kh, vh = split_heads(q), split_heads(k), split_heads(v)
    attn = jnp.einsum("bhid,bhjd->bhij", qh, kh) * (head_dim ** -0.5)
    attn = jax.nn.softmax(attn, axis=-1)
    o = jnp.einsum("bhij,bhjd->bhid", attn, vh)
    o = o.transpose(0, 2, 1, 3).reshape(B, H * W, C) @ params["wo"]
    o = o.transpose(0, 2, 1).reshape(B, C, H, W)
    x = x + o

    out = cond_gn(x, params["t2_w"], params["t2_b"])
    hmid = jnp.einsum("bchw,cd->bdhw", out, params["wf1"])
    hmid = jax.nn.silu(hmid)
    ff = jnp.einsum("bdhw,dc->bchw", hmid, params["wf2"])
    return x + ff


if __name__ == "__main__":
  B, C, H, W = 2, 128, 8, 8
  time_embed_dim = 64
  norm_groups = 32
  head_dim = 64
  expansion_ratio = 4
  hidden = expansion_ratio * C

  key = jax.random.PRNGKey(0)
  ks = jax.random.split(key, 12)
  w_scale = 0.05
  params = {
      # ConditionalGroupNorm time MLPs: Linear(time_embed_dim -> 2C) after SiLU,
      # stored as (in, out) so y = x @ W + b.  (Original zero-inits these.)
      "t1_w": jax.random.normal(ks[0], (time_embed_dim, 2 * C), jnp.float32) * w_scale,
      "t1_b": jax.random.normal(ks[1], (2 * C,), jnp.float32) * w_scale,
      "t2_w": jax.random.normal(ks[2], (time_embed_dim, 2 * C), jnp.float32) * w_scale,
      "t2_b": jax.random.normal(ks[3], (2 * C,), jnp.float32) * w_scale,
      # Attention projections (no bias), stored as (in, out).
      "wq": jax.random.normal(ks[4], (C, C), jnp.float32) * w_scale,
      "wk": jax.random.normal(ks[5], (C, C), jnp.float32) * w_scale,
      "wv": jax.random.normal(ks[6], (C, C), jnp.float32) * w_scale,
      "wo": jax.random.normal(ks[7], (C, C), jnp.float32) * w_scale,
      # Feed forward 1x1 convs (no bias), stored as (in, out).
      "wf1": jax.random.normal(ks[8], (C, hidden), jnp.float32) * w_scale,
      "wf2": jax.random.normal(ks[9], (hidden, C), jnp.float32) * w_scale,
  }

  x = jax.random.normal(ks[10], (B, C, H, W), jnp.float32)
  time_embed = jax.random.normal(ks[11], (B, time_embed_dim), jnp.float32)

  out = attention_block_forward(x, time_embed, params,
                                norm_groups=norm_groups, head_dim=head_dim)
  out = jax.block_until_ready(out)

  ref = reference_forward(x, time_embed, params,
                          norm_groups=norm_groups, head_dim=head_dim)
  ref = jax.block_until_ready(ref)

  # Tolerance accounts for bf16 MXU operands (f32 accum), the approx EUP
  # reciprocal in softmax, and bf16 SiLU on v6e/v7x.
  np.testing.assert_allclose(np.asarray(out), np.asarray(ref), atol=5e-2, rtol=5e-2)
  print("KERNEL_OK")
</pallas_src>

<mosaic_0001>
module attributes {stable_mosaic.version = 11 : i64} {
  func.func @_fused_attention_block_kernel(%arg0: i32, %arg1: memref<2x128x64xf32, #tpu.memory_space<vmem>>, %arg2: memref<2x4x128xf32, #tpu.memory_space<vmem>>, %arg3: memref<128x128xf32, #tpu.memory_space<vmem>>, %arg4: memref<128x384xbf16, #tpu.memory_space<vmem>>, %arg5: memref<128x128xbf16, #tpu.memory_space<vmem>>, %arg6: memref<128x512xbf16, #tpu.memory_space<vmem>>, %arg7: memref<512x128xbf16, #tpu.memory_space<vmem>>, %arg8: memref<2x128x64xf32, #tpu.memory_space<vmem>>) attributes {dimension_semantics = [#tpu.dimension_semantics<parallel>], iteration_bounds = array<i64: 1>, scalar_prefetch = 0 : i64, scratch_operands = 0 : i64, tpu.core_type = #tpu.core_type<tc>, window_params = [{transform_indices = @transform_0, window_bounds = array<i64: 2, 128, 64>}, {transform_indices = @transform_1, window_bounds = array<i64: 2, 4, 128>}, {pipeline_mode = #tpu.pipeline_mode<synchronous>, transform_indices = @transform_2, window_bounds = array<i64: 128, 128>}, {pipeline_mode = #tpu.pipeline_mode<synchronous>, transform_indices = @transform_3, window_bounds = array<i64: 128, 384>}, {pipeline_mode = #tpu.pipeline_mode<synchronous>, transform_indices = @transform_4, window_bounds = array<i64: 128, 128>}, {pipeline_mode = #tpu.pipeline_mode<synchronous>, transform_indices = @transform_5, window_bounds = array<i64: 128, 512>}, {pipeline_mode = #tpu.pipeline_mode<synchronous>, transform_indices = @transform_6, window_bounds = array<i64: 512, 128>}, {transform_indices = @transform_7, window_bounds = array<i64: 2, 128, 64>}]} {
    %c0 = arith.constant 0 : index
    %c0_0 = arith.constant 0 : index
    %c0_1 = arith.constant 0 : index
    %0 = vector.load %arg1[%c0, %c0_0, %c0_1] : memref<2x128x64xf32, #tpu.memory_space<vmem>>, vector<2x128x64xf32>
    %1 = vector.extract_strided_slice %0 {offsets = [0, 0, 0], sizes = [1, 128, 64], strides = [1, 1, 1]} : vector<2x128x64xf32> to vector<1x128x64xf32>
    %2 = vector.shape_cast %1 : vector<1x128x64xf32> to vector<128x64xf32>
    %3 = tpu.transpose %2, [1, 0] : vector<128x64xf32> -> vector<64x128xf32>
    %4 = vector.extract_strided_slice %0 {offsets = [1, 0, 0], sizes = [1, 128, 64], strides = [1, 1, 1]} : vector<2x128x64xf32> to vector<1x128x64xf32>
    %5 = vector.shape_cast %4 : vector<1x128x64xf32> to vector<128x64xf32>
    %6 = tpu.transpose %5, [1, 0] : vector<128x64xf32> -> vector<64x128xf32>
    %7 = vector.shape_cast %3 : vector<64x128xf32> to vector<1x64x128xf32>
    %8 = vector.shape_cast %6 : vector<64x128xf32> to vector<1x64x128xf32>
    %9 = tpu.concatenate %7, %8 in 0 : vector<1x64x128xf32>, vector<1x64x128xf32> -> vector<2x64x128xf32>
    %c0_2 = arith.constant 0 : index
    %c0_3 = arith.constant 0 : index
    %c0_4 = arith.constant 0 : index
    %10 = vector.load %arg2[%c0_2, %c0_3, %c0_4] : memref<2x4x128xf32, #tpu.memory_space<vmem>>, vector<2x4x128xf32>
    %11 = vector.extract_strided_slice %10 {offsets = [0, 0, 0], sizes = [2, 1, 128], strides = [1, 1, 1]} : vector<2x4x128xf32> to vector<2x1x128xf32>
    %12 = vector.extract_strided_slice %10 {offsets = [0, 1, 0], sizes = [2, 1, 128], strides = [1, 1, 1]} : vector<2x4x128xf32> to vector<2x1x128xf32>
    %13 = vector.extract_strided_slice %10 {offsets = [0, 2, 0], sizes = [2, 1, 128], strides = [1, 1, 1]} : vector<2x4x128xf32> to vector<2x1x128xf32>
    %14 = vector.extract_strided_slice %10 {offsets = [0, 3, 0], sizes = [2, 1, 128], strides = [1, 1, 1]} : vector<2x4x128xf32> to vector<2x1x128xf32>
    %c0_5 = arith.constant 0 : index
    %c0_6 = arith.constant 0 : index
    %15 = vector.load %arg3[%c0_5, %c0_6] : memref<128x128xf32, #tpu.memory_space<vmem>>, vector<128x128xf32>
    %cst = arith.constant dense<0.000000e+00> : vector<2x128xf32>
    %16 = vector.multi_reduction <add>, %9, %cst [1] : vector<2x64x128xf32> to vector<2x128xf32>
    %cst_7 = arith.constant dense<0.000000e+00> : vector<2x128xf32>
    %17 = tpu.matmul %16, %15, %cst_7 {dimension_numbers = #tpu.dot_dimension_numbers<[1], [0], [0], [1], [0, 0, 1, 1], [], []>} : vector<2x128xf32>, vector<128x128xf32>, vector<2x128xf32> -> vector<2x128xf32>
    %18 = vector.shape_cast %17 : vector<2x128xf32> to vector<2x1x128xf32>
    %19 = vector.broadcast %18 : vector<2x1x128xf32> to vector<2x64x128xf32>
    %20 = arith.subf %9, %19 : vector<2x64x128xf32>
    %21 = arith.mulf %20, %20 : vector<2x64x128xf32>
    %cst_8 = arith.constant dense<0.000000e+00> : vector<2x128xf32>
    %22 = vector.multi_reduction <add>, %21, %cst_8 [1] : vector<2x64x128xf32> to vector<2x128xf32>
    %cst_9 = arith.constant dense<0.000000e+00> : vector<2x128xf32>
    %23 = tpu.matmul %22, %15, %cst_9 {dimension_numbers = #tpu.dot_dimension_numbers<[1], [0], [0], [1], [0, 0, 1, 1], [], []>} : vector<2x128xf32>, vector<128x128xf32>, vector<2x128xf32> -> vector<2x128xf32>
    %cst_10 = arith.constant 9.99999974E-6 : f32
    %24 = vector.broadcast %cst_10 : f32 to vector<2x128xf32>
    %25 = arith.addf %23, %24 : vector<2x128xf32>
    %26 = math.rsqrt %25 : vector<2x128xf32>
    %27 = vector.shape_cast %26 : vector<2x128xf32> to vector<2x1x128xf32>
    %28 = vector.broadcast %27 : vector<2x1x128xf32> to vector<2x64x128xf32>
    %29 = arith.mulf %20, %28 : vector<2x64x128xf32>
    %cst_11 = arith.constant 1.000000e+00 : f32
    %30 = vector.broadcast %cst_11 : f32 to vector<2x1x128xf32>
    %31 = arith.addf %11, %30 : vector<2x1x128xf32>
    %32 = vector.broadcast %31 : vector<2x1x128xf32> to vector<2x64x128xf32>
    %33 = arith.mulf %29, %32 : vector<2x64x128xf32>
    %34 = vector.broadcast %12 : vector<2x1x128xf32> to vector<2x64x128xf32>
    %35 = arith.addf %33, %34 : vector<2x64x128xf32>
    %36 = vector.shape_cast %35 : vector<2x64x128xf32> to vector<128x128xf32>
    %37 = arith.truncf %36 : vector<128x128xf32> to vector<128x128xbf16>
    %c0_12 = arith.constant 0 : index
    %c0_13 = arith.constant 0 : index
    %38 = vector.load %arg4[%c0_12, %c0_13] : memref<128x384xbf16, #tpu.memory_space<vmem>>, vector<128x384xbf16>
    %cst_14 = arith.constant dense<0.000000e+00> : vector<128x384xf32>
    %39 = tpu.matmul %37, %38, %cst_14 {dimension_numbers = #tpu.dot_dimension_numbers<[1], [0], [0], [1], [0, 0, 1, 1], [], []>} : vector<128x128xbf16>, vector<128x384xbf16>, vector<128x384xf32> -> vector<128x384xf32>
    %40 = vector.extract_strided_slice %39 {offsets = [0, 0], sizes = [128, 128], strides = [1, 1]} : vector<128x384xf32> to vector<128x128xf32>
    %41 = vector.extract_strided_slice %39 {offsets = [0, 128], sizes = [128, 128], strides = [1, 1]} : vector<128x384xf32> to vector<128x128xf32>
    %42 = vector.extract_strided_slice %39 {offsets = [0, 256], sizes = [128, 128], strides = [1, 1]} : vector<128x384xf32> to vector<128x128xf32>
    %43 = vector.extract_strided_slice %40 {offsets = [0, 0], sizes = [128, 64], strides = [1, 1]} : vector<128x128xf32> to vector<128x64xf32>
    %44 = vector.shape_cast %43 : vector<128x64xf32> to vector<2x64x64xf32>
    %45 = vector.extract_strided_slice %40 {offsets = [0, 64], sizes = [128, 64], strides = [1, 1]} : vector<128x128xf32> to vector<128x64xf32>
    %46 = vector.shape_cast %45 : vector<128x64xf32> to vector<2x64x64xf32>
    %47 = tpu.concatenate %44, %46 in 0 : vector<2x64x64xf32>, vector<2x64x64xf32> -> vector<4x64x64xf32>
    %48 = arith.truncf %47 : vector<4x64x64xf32> to vector<4x64x64xbf16>
    %49 = vector.extract_strided_slice %41 {offsets = [0, 0], sizes = [128, 64], strides = [1, 1]} : vector<128x128xf32> to vector<128x64xf32>
    %50 = vector.shape_cast %49 : vector<128x64xf32> to vector<2x64x64xf32>
    %51 = vector.extract_strided_slice %41 {offsets = [0, 64], sizes = [128, 64], strides = [1, 1]} : vector<128x128xf32> to vector<128x64xf32>
    %52 = vector.shape_cast %51 : vector<128x64xf32> to vector<2x64x64xf32>
    %53 = tpu.concatenate %50, %52 in 0 : vector<2x64x64xf32>, vector<2x64x64xf32> -> vector<4x64x64xf32>
    %54 = arith.truncf %53 : vector<4x64x64xf32> to vector<4x64x64xbf16>
    %55 = vector.extract_strided_slice %42 {offsets = [0, 0], sizes = [128, 64], strides = [1, 1]} : vector<128x128xf32> to vector<128x64xf32>
    %56 = vector.shape_cast %55 : vector<128x64xf32> to vector<2x64x64xf32>
    %57 = vector.extract_strided_slice %42 {offsets = [0, 64], sizes = [128, 64], strides = [1, 1]} : vector<128x128xf32> to vector<128x64xf32>
    %58 = vector.shape_cast %57 : vector<128x64xf32> to vector<2x64x64xf32>
    %59 = tpu.concatenate %56, %58 in 0 : vector<2x64x64xf32>, vector<2x64x64xf32> -> vector<4x64x64xf32>
    %60 = arith.truncf %59 : vector<4x64x64xf32> to vector<4x64x64xbf16>
    "tpu.trace_start"() <{level = 10 : i32, message = "bqd,bkd->bqk"}> : () -> ()
    %cst_15 = arith.constant dense<0.000000e+00> : vector<4x64x64xf32>
    %61 = tpu.matmul %48, %54, %cst_15 {dimension_numbers = #tpu.dot_dimension_numbers<[2], [2], [1], [1], [0, 0, 0, 1, 1, 1], [0], [0]>} : vector<4x64x64xbf16>, vector<4x64x64xbf16>, vector<4x64x64xf32> -> vector<4x64x64xf32>
    "tpu.trace_stop"() : () -> ()
    %cst_16 = arith.constant dense<0xFF800000> : vector<4x64xf32>
    %62 = vector.multi_reduction <maximumf>, %61, %cst_16 [2] : vector<4x64x64xf32> to vector<4x64xf32>
    %63 = vector.shape_cast %62 : vector<4x64xf32> to vector<4x64x1xf32>
    %64 = vector.broadcast %63 : vector<4x64x1xf32> to vector<4x64x64xf32>
    %65 = arith.subf %61, %64 : vector<4x64x64xf32>
    %66 = math.exp %65 : vector<4x64x64xf32>
    %cst_17 = arith.constant dense<0.000000e+00> : vector<4x64xf32>
    %67 = vector.multi_reduction <add>, %66, %cst_17 [2] : vector<4x64x64xf32> to vector<4x64xf32>
    %68 = vector.shape_cast %67 : vector<4x64xf32> to vector<4x64x1xf32>
    %69 = tpu.reciprocal %68 {approx = true} : vector<4x64x1xf32> -> vector<4x64x1xf32>
    %70 = vector.broadcast %69 : vector<4x64x1xf32> to vector<4x64x64xf32>
    %71 = arith.mulf %66, %70 : vector<4x64x64xf32>
    %72 = arith.truncf %71 : vector<4x64x64xf32> to vector<4x64x64xbf16>
    "tpu.trace_start"() <{level = 10 : i32, message = "bqk,bkd->bqd"}> : () -> ()
    %cst_18 = arith.constant dense<0.000000e+00> : vector<4x64x64xf32>
    %73 = tpu.matmul %72, %60, %cst_18 {dimension_numbers = #tpu.dot_dimension_numbers<[2], [1], [1], [2], [0, 0, 0, 1, 1, 2], [0], [0]>} : vector<4x64x64xbf16>, vector<4x64x64xbf16>, vector<4x64x64xf32> -> vector<4x64x64xf32>
    "tpu.trace_stop"() : () -> ()
    %74 = vector.extract_strided_slice %73 {offsets = [0, 0, 0], sizes = [2, 64, 64], strides = [1, 1, 1]} : vector<4x64x64xf32> to vector<2x64x64xf32>
    %75 = vector.shape_cast %74 : vector<2x64x64xf32> to vector<128x64xf32>
    %76 = vector.extract_strided_slice %73 {offsets = [2, 0, 0], sizes = [2, 64, 64], strides = [1, 1, 1]} : vector<4x64x64xf32> to vector<2x64x64xf32>
    %77 = vector.shape_cast %76 : vector<2x64x64xf32> to vector<128x64xf32>
    %78 = tpu.concatenate %75, %77 in 1 : vector<128x64xf32>, vector<128x64xf32> -> vector<128x128xf32>
    %79 = arith.truncf %78 : vector<128x128xf32> to vector<128x128xbf16>
    %c0_19 = arith.constant 0 : index
    %c0_20 = arith.constant 0 : index
    %80 = vector.load %arg5[%c0_19, %c0_20] : memref<128x128xbf16, #tpu.memory_space<vmem>>, vector<128x128xbf16>
    %cst_21 = arith.constant dense<0.000000e+00> : vector<128x128xf32>
    %81 = tpu.matmul %79, %80, %cst_21 {dimension_numbers = #tpu.dot_dimension_numbers<[1], [0], [0], [1], [0, 0, 1, 1], [], []>} : vector<128x128xbf16>, vector<128x128xbf16>, vector<128x128xf32> -> vector<128x128xf32>
    %82 = vector.shape_cast %9 : vector<2x64x128xf32> to vector<128x128xf32>
    %83 = arith.addf %82, %81 : vector<128x128xf32>
    %84 = vector.shape_cast %83 : vector<128x128xf32> to vector<2x64x128xf32>
    %cst_22 = arith.constant dense<0.000000e+00> : vector<2x128xf32>
    %85 = vector.multi_reduction <add>, %84, %cst_22 [1] : vector<2x64x128xf32> to vector<2x128xf32>
    %cst_23 = arith.constant dense<0.000000e+00> : vector<2x128xf32>
    %86 = tpu.matmul %85, %15, %cst_23 {dimension_numbers = #tpu.dot_dimension_numbers<[1], [0], [0], [1], [0, 0, 1, 1], [], []>} : vector<2x128xf32>, vector<128x128xf32>, vector<2x128xf32> -> vector<2x128xf32>
    %87 = vector.shape_cast %86 : vector<2x128xf32> to vector<2x1x128xf32>
    %88 = vector.broadcast %87 : vector<2x1x128xf32> to vector<2x64x128xf32>
    %89 = arith.subf %84, %88 : vector<2x64x128xf32>
    %90 = arith.mulf %89, %89 : vector<2x64x128xf32>
    %cst_24 = arith.constant dense<0.000000e+00> : vector<2x128xf32>
    %91 = vector.multi_reduction <add>, %90, %cst_24 [1] : vector<2x64x128xf32> to vector<2x128xf32>
    %cst_25 = arith.constant dense<0.000000e+00> : vector<2x128xf32>
    %92 = tpu.matmul %91, %15, %cst_25 {dimension_numbers = #tpu.dot_dimension_numbers<[1], [0], [0], [1], [0, 0, 1, 1], [], []>} : vector<2x128xf32>, vector<128x128xf32>, vector<2x128xf32> -> vector<2x128xf32>
    %cst_26 = arith.constant 9.99999974E-6 : f32
    %93 = vector.broadcast %cst_26 : f32 to vector<2x128xf32>
    %94 = arith.addf %92, %93 : vector<2x128xf32>
    %95 = math.rsqrt %94 : vector<2x128xf32>
    %96 = vector.shape_cast %95 : vector<2x128xf32> to vector<2x1x128xf32>
    %97 = vector.broadcast %96 : vector<2x1x128xf32> to vector<2x64x128xf32>
    %98 = arith.mulf %89, %97 : vector<2x64x128xf32>
    %cst_27 = arith.constant 1.000000e+00 : f32
    %99 = vector.broadcast %cst_27 : f32 to vector<2x1x128xf32>
    %100 = arith.addf %13, %99 : vector<2x1x128xf32>
    %101 = vector.broadcast %100 : vector<2x1x128xf32> to vector<2x64x128xf32>
    %102 = arith.mulf %98, %101 : vector<2x64x128xf32>
    %103 = vector.broadcast %14 : vector<2x1x128xf32> to vector<2x64x128xf32>
    %104 = arith.addf %102, %103 : vector<2x64x128xf32>
    %105 = vector.shape_cast %104 : vector<2x64x128xf32> to vector<128x128xf32>
    %106 = arith.truncf %105 : vector<128x128xf32> to vector<128x128xbf16>
    %c0_28 = arith.constant 0 : index
    %c0_29 = arith.constant 0 : index
    %107 = vector.load %arg6[%c0_28, %c0_29] : memref<128x512xbf16, #tpu.memory_space<vmem>>, vector<128x512xbf16>
    %cst_30 = arith.constant dense<0.000000e+00> : vector<128x512xf32>
    %108 = tpu.matmul %106, %107, %cst_30 {dimension_numbers = #tpu.dot_dimension_numbers<[1], [0], [0], [1], [0, 0, 1, 1], [], []>} : vector<128x128xbf16>, vector<128x512xbf16>, vector<128x512xf32> -> vector<128x512xf32>
    %109 = arith.negf %108 : vector<128x512xf32>
    %110 = math.exp %109 : vector<128x512xf32>
    %cst_31 = arith.constant 1.000000e+00 : f32
    %111 = vector.broadcast %cst_31 : f32 to vector<128x512xf32>
    %112 = arith.addf %111, %110 : vector<128x512xf32>
    %113 = arith.divf %111, %112 : vector<128x512xf32>
    %114 = arith.mulf %108, %113 : vector<128x512xf32>
    %115 = arith.truncf %114 : vector<128x512xf32> to vector<128x512xbf16>
    %c0_32 = arith.constant 0 : index
    %c0_33 = arith.constant 0 : index
    %116 = vector.load %arg7[%c0_32, %c0_33] : memref<512x128xbf16, #tpu.memory_space<vmem>>, vector<512x128xbf16>
    %cst_34 = arith.constant dense<0.000000e+00> : vector<128x128xf32>
    %117 = tpu.matmul %115, %116, %cst_34 {dimension_numbers = #tpu.dot_dimension_numbers<[1], [0], [0], [1], [0, 0, 1, 1], [], []>} : vector<128x512xbf16>, vector<512x128xbf16>, vector<128x128xf32> -> vector<128x128xf32>
    %118 = arith.addf %83, %117 : vector<128x128xf32>
    %119 = vector.shape_cast %118 : vector<128x128xf32> to vector<2x64x128xf32>
    %120 = vector.extract_strided_slice %119 {offsets = [0, 0, 0], sizes = [1, 64, 128], strides = [1, 1, 1]} : vector<2x64x128xf32> to vector<1x64x128xf32>
    %121 = vector.shape_cast %120 : vector<1x64x128xf32> to vector<64x128xf32>
    %122 = tpu.transpose %121, [1, 0] : vector<64x128xf32> -> vector<128x64xf32>
    %123 = vector.extract_strided_slice %119 {offsets = [1, 0, 0], sizes = [1, 64, 128], strides = [1, 1, 1]} : vector<2x64x128xf32> to vector<1x64x128xf32>
    %124 = vector.shape_cast %123 : vector<1x64x128xf32> to vector<64x128xf32>
    %125 = tpu.transpose %124, [1, 0] : vector<64x128xf32> -> vector<128x64xf32>
    %126 = vector.shape_cast %122 : vector<128x64xf32> to vector<1x128x64xf32>
    %127 = vector.shape_cast %125 : vector<128x64xf32> to vector<1x128x64xf32>
    %128 = tpu.concatenate %126, %127 in 0 : vector<1x128x64xf32>, vector<1x128x64xf32> -> vector<2x128x64xf32>
    %c0_35 = arith.constant 0 : index
    %c0_36 = arith.constant 0 : index
    %c0_37 = arith.constant 0 : index
    %129 = vector.load %arg8[%c0_35, %c0_36, %c0_37] : memref<2x128x64xf32, #tpu.memory_space<vmem>>, vector<2x128x64xf32>
    tpu.vector_store %arg8[%c0_35, %c0_36, %c0_37], %128 {strides = array<i32>} : memref<2x128x64xf32, #tpu.memory_space<vmem>>, vector<2x128x64xf32>,
    return
  }
  func.func @transform_0(%arg0: i32) -> (i32, i32, i32) {
    %c0_i32 = arith.constant 0 : i32
    %c0_i32_0 = arith.constant 0 : i32
    %c0_i32_1 = arith.constant 0 : i32
    return %arg0, %c0_i32, %c0_i32_0 : i32, i32, i32
  }
  func.func @transform_1(%arg0: i32) -> (i32, i32, i32) {
    %c0_i32 = arith.constant 0 : i32
    %c0_i32_0 = arith.constant 0 : i32
    %c0_i32_1 = arith.constant 0 : i32
    return %arg0, %c0_i32, %c0_i32_0 : i32, i32, i32
  }
  func.func @transform_2(%arg0: i32) -> (i32, i32) {
    %c0_i32 = arith.constant 0 : i32
    %c0_i32_0 = arith.constant 0 : i32
    %c0_i32_1 = arith.constant 0 : i32
    return %c0_i32, %c0_i32_0 : i32, i32
  }
  func.func @transform_3(%arg0: i32) -> (i32, i32) {
    %c0_i32 = arith.constant 0 : i32
    %c0_i32_0 = arith.constant 0 : i32
    %c0_i32_1 = arith.constant 0 : i32
    return %c0_i32, %c0_i32_0 : i32, i32
  }
  func.func @transform_4(%arg0: i32) -> (i32, i32) {
    %c0_i32 = arith.constant 0 : i32
    %c0_i32_0 = arith.constant 0 : i32
    %c0_i32_1 = arith.constant 0 : i32
    return %c0_i32, %c0_i32_0 : i32, i32
  }
  func.func @transform_5(%arg0: i32) -> (i32, i32) {
    %c0_i32 = arith.constant 0 : i32
    %c0_i32_0 = arith.constant 0 : i32
    %c0_i32_1 = arith.constant 0 : i32
    return %c0_i32, %c0_i32_0 : i32, i32
  }
  func.func @transform_6(%arg0: i32) -> (i32, i32) {
    %c0_i32 = arith.constant 0 : i32
    %c0_i32_0 = arith.constant 0 : i32
    %c0_i32_1 = arith.constant 0 : i32
    return %c0_i32, %c0_i32_0 : i32, i32
  }
  func.func @transform_7(%arg0: i32) -> (i32, i32, i32) {
    %c0_i32 = arith.constant 0 : i32
    %c0_i32_0 = arith.constant 0 : i32
    %c0_i32_1 = arith.constant 0 : i32
    return %arg0, %c0_i32, %c0_i32_0 : i32, i32, i32
  }
}

</mosaic_0001>

<llo_original>
// kernel: tpu_custom_call.1
$region0: #{tpu_custom_call.1}
  #allocation0 [shape = 'u32[]', space=smem, size = 0x4, offset = 0x4, fixed_abs, tag = 'smem constant byte address 0x4 - core index']
  #allocation1 [shape = 'u32[144,128]{1,0:T(1,128)}', space=vmem, size = 0x12000, scoped, tag = 'internal scratch']
  %s0 = inlined_call_operand.vmem [shape: f32[2,128,64], index: 0, kind: input, shape index: {}]
  %s1 = inlined_call_operand.vmem [shape: f32[2,4,128], index: 1, kind: input, shape index: {}]
  %s2 = inlined_call_operand.vmem [shape: f32[128,128], index: 2, kind: input, shape index: {}]
  %s3 = inlined_call_operand.hbm [shape: bf16[128,384], index: 3, kind: input, shape index: {}]
  %s4 = inlined_call_operand.hbm [shape: bf16[128,128], index: 4, kind: input, shape index: {}]
  %s5 = inlined_call_operand.vmem [shape: bf16[128,512], index: 5, kind: input, shape index: {}]
  %s6 = inlined_call_operand.hbm [shape: bf16[512,128], index: 6, kind: input, shape index: {}]
  %s7 = inlined_call_operand.vmem [shape: f32[2,128,64], index: 7, kind: output, shape index: {}]
  %s8 = sld [smem:[#allocation0]]
  $region50: #{tpu_custom_call.1} parent=0
    _
  %s10 = ssub.s32 1, %s8
  %s11 = scalar_select 0, %s10, %s8
  $region1: #{tpu_custom_call.1} parent=0
    #allocation2 [shape = 'u8[98304]{0}', space=vmem, size = 0x18000, scoped, tag = 'input window, operand 3, single buffered']
    #allocation3 [shape = 's32[1]{0}', space=sflag, size = 0x4, scoped, tag = 'scoped memory for tpu_custom_call.1']
    #allocation4 [shape = 'u8[32768]{0}', space=vmem, size = 0x8000, scoped, tag = 'input window, operand 4, single buffered']
    #allocation5 [shape = 's32[1]{0}', space=sflag, size = 0x4, scoped, tag = 'scoped memory for tpu_custom_call.1']
    #allocation6 [shape = 'u8[131072]{0}', space=vmem, size = 0x20000, scoped, tag = 'input window, operand 6, single buffered']
    %12 = vsyncpa [#allocation3], 0
    %13 = vsyncpa [#allocation5], 0
    // Predicated region
    $region2: #{tpu_custom_call.1} parent=1 // pred_check
      _
    $region3: #{tpu_custom_call.1} parent=1 // pred_check_branch
      %15 = sbr.rel (0) target = $region5
    $region4: #{tpu_custom_call.1} parent=1 // pred_region
      _
    $region5: #{tpu_custom_call.1} parent=1 // pred_fallthru
      _
    // Predicated region
    $region6: #{tpu_custom_call.1} parent=1 // pred_check
      _
    $region7: #{tpu_custom_call.1} parent=1 // pred_check_branch
      %17 = sbr.rel (0) target = $region9
    $region8: #{tpu_custom_call.1} parent=1 // pred_region
      _
    $region9: #{tpu_custom_call.1} parent=1 // pred_fallthru
      _
    // Predicated region
    $region10: #{tpu_custom_call.1} parent=1 // pred_check
      _
    $region11: #{tpu_custom_call.1} parent=1 // pred_check_branch
      %19 = sbr.rel (0) target = $region13
    $region12: #{tpu_custom_call.1} parent=1 // pred_region
      _
    $region13: #{tpu_custom_call.1} parent=1 // pred_fallthru
      _
    // Predicated region
    $region14: #{tpu_custom_call.1} parent=1 // pred_check
      _
    $region15: #{tpu_custom_call.1} parent=1 // pred_check_branch
      %21 = sbr.rel (0) target = $region17
    $region16: #{tpu_custom_call.1} parent=1 // pred_region
      %s23 = ssub.s32 3072, 3072
      %24 = vsyncadd [#allocation3], %s23
      %s25 = sshll.u32 [#allocation2], 4
      %s26 = int_to_ptr.vmem [resolvable:$true] %s25
      %31 = dma.hbm_to_vmem [thread:$0]  %s3, 3072, %s26, [#allocation3], 192, 192, 12
    $region17: #{tpu_custom_call.1} parent=1 // pred_fallthru
      _
    // Predicated region
    $region18: #{tpu_custom_call.1} parent=1 // pred_check
      _
    $region19: #{tpu_custom_call.1} parent=1 // pred_check_branch
      %33 = sbr.rel (0) target = $region21
    $region20: #{tpu_custom_call.1} parent=1 // pred_region
      %s35 = ssub.s32 1024, 1024
      %36 = vsyncadd [#allocation5], %s35
      %s37 = sshll.u32 [#allocation4], 4
      %s38 = int_to_ptr.vmem [resolvable:$true] %s37
      %43 = dma.hbm_to_vmem [thread:$0]  %s4, 1024, %s38, [#allocation5], 64, 64, 4
    $region21: #{tpu_custom_call.1} parent=1 // pred_fallthru
      _
    // Predicated region
    $region22: #{tpu_custom_call.1} parent=1 // pred_check
      _
    $region23: #{tpu_custom_call.1} parent=1 // pred_check_branch
      %45 = sbr.rel (0) target = $region25
    $region24: #{tpu_custom_call.1} parent=1 // pred_region
      _
    $region25: #{tpu_custom_call.1} parent=1 // pred_fallthru
      _
    // Predicated region
    $region26: #{tpu_custom_call.1} parent=1 // pred_check
      _
    $region27: #{tpu_custom_call.1} parent=1 // pred_check_branch
      %47 = sbr.rel (0) target = $region29
    $region28: #{tpu_custom_call.1} parent=1 // pred_region
      %s49 = ssub.s32 4096, 4096
      %50 = vsyncadd [#allocation5], %s49
      %s51 = sshll.u32 [#allocation6], 4
      %s52 = int_to_ptr.vmem [resolvable:$true] %s51
      %57 = dma.hbm_to_vmem [thread:$0]  %s6, 4096, %s52, [#allocation5], 64, 64, 4
    $region29: #{tpu_custom_call.1} parent=1 // pred_fallthru
      _
    // Predicated region
    $region30: #{tpu_custom_call.1} parent=1 // pred_check
      _
    $region31: #{tpu_custom_call.1} parent=1 // pred_check_branch
      %59 = sbr.rel (0) target = $region33
    $region32: #{tpu_custom_call.1} parent=1 // pred_region
      %60 = dma.done [#allocation3], 3072
    $region33: #{tpu_custom_call.1} parent=1 // pred_fallthru
      _
    // Predicated region
    $region34: #{tpu_custom_call.1} parent=1 // pred_check
      _
    $region35: #{tpu_custom_call.1} parent=1 // pred_check_branch
      %62 = sbr.rel (0) target = $region37
    $region36: #{tpu_custom_call.1} parent=1 // pred_region
      %63 = dma.done [#allocation5], 1024
    $region37: #{tpu_custom_call.1} parent=1 // pred_fallthru
      _
    // Predicated region
    $region38: #{tpu_custom_call.1} parent=1 // pred_check
      _
    $region39: #{tpu_custom_call.1} parent=1 // pred_check_branch
      %65 = sbr.rel (0) target = $region41
    $region40: #{tpu_custom_call.1} parent=1 // pred_region
      %66 = dma.done [#allocation5], 4096
    $region41: #{tpu_custom_call.1} parent=1 // pred_fallthru
      _
    %v68 = vld [vmem:[%s0] sm:$0xff]
    %v69 = vld [vmem:[%s0 + $0x8] sm:$0xff]
    %v70 = vld [vmem:[%s0 + $0x10] sm:$0xff]
    %v71 = vld [vmem:[%s0 + $0x18] sm:$0xff]
    %v72 = vld [vmem:[%s0 + $0x20] sm:$0xff]
    %v73 = vld [vmem:[%s0 + $0x28] sm:$0xff]
    %v74 = vld [vmem:[%s0 + $0x30] sm:$0xff]
    %v75 = vld [vmem:[%s0 + $0x38] sm:$0xff]
    %v76 = vld [vmem:[%s0 + $0x40] sm:$0xff]
    %v77 = vld [vmem:[%s0 + $0x48] sm:$0xff]
    %v78 = vld [vmem:[%s0 + $0x50] sm:$0xff]
    %v79 = vld [vmem:[%s0 + $0x58] sm:$0xff]
    %v80 = vld [vmem:[%s0 + $0x60] sm:$0xff]
    %v81 = vld [vmem:[%s0 + $0x68] sm:$0xff]
    %v82 = vld [vmem:[%s0 + $0x70] sm:$0xff]
    %v83 = vld [vmem:[%s0 + $0x78] sm:$0xff]
    %v84 = vld [vmem:[%s0 + $0x80] sm:$0xff]
    %v85 = vld [vmem:[%s0 + $0x88] sm:$0xff]
    %v86 = vld [vmem:[%s0 + $0x90] sm:$0xff]
    %v87 = vld [vmem:[%s0 + $0x98] sm:$0xff]
    %v88 = vld [vmem:[%s0 + $0xa0] sm:$0xff]
    %v89 = vld [vmem:[%s0 + $0xa8] sm:$0xff]
    %v90 = vld [vmem:[%s0 + $0xb0] sm:$0xff]
    %v91 = vld [vmem:[%s0 + $0xb8] sm:$0xff]
    %v92 = vld [vmem:[%s0 + $0xc0] sm:$0xff]
    %v93 = vld [vmem:[%s0 + $0xc8] sm:$0xff]
    %v94 = vld [vmem:[%s0 + $0xd0] sm:$0xff]
    %v95 = vld [vmem:[%s0 + $0xd8] sm:$0xff]
    %v96 = vld [vmem:[%s0 + $0xe0] sm:$0xff]
    %v97 = vld [vmem:[%s0 + $0xe8] sm:$0xff]
    %v98 = vld [vmem:[%s0 + $0xf0] sm:$0xff]
    %v99 = vld [vmem:[%s0 + $0xf8] sm:$0xff]
    %100 = vxpose.xlu0.b32.start [1/16] %v68, 128
    %101 = vxpose.xlu0.b32.cont [2/16] %v69, 128
    %102 = vxpose.xlu0.b32.cont [3/16] %v70, 128
    %103 = vxpose.xlu0.b32.cont [4/16] %v71, 128
    %104 = vxpose.xlu0.b32.cont [5/16] %v72, 128
    %105 = vxpose.xlu0.b32.cont [6/16] %v73, 128
    %106 = vxpose.xlu0.b32.cont [7/16] %v74, 128
    %107 = vxpose.xlu0.b32.cont [8/16] %v75, 128
    %108 = vxpose.xlu0.b32.cont [9/16] %v76, 128
    %109 = vxpose.xlu0.b32.cont [10/16] %v77, 128
    %110 = vxpose.xlu0.b32.cont [11/16] %v78, 128
    %111 = vxpose.xlu0.b32.cont [12/16] %v79, 128
    %112 = vxpose.xlu0.b32.cont [13/16] %v80, 128
    %113 = vxpose.xlu0.b32.cont [14/16] %v81, 128
    %114 = vxpose.xlu0.b32.cont [15/16] %v82, 128
    %115 = vxpose.xlu0.b32.end [16/16] %v83, 128
    %v116 = vpop.trf.xlu0
    %v117 = vpop.trf.xlu0
    %v118 = vpop.trf.xlu0
    %v119 = vpop.trf.xlu0
    %v120 = vpop.trf.xlu0
    %v121 = vpop.trf.xlu0
    %v122 = vpop.trf.xlu0
    %v123 = vpop.trf.xlu0
    %v124 = vpop.trf.xlu0
    %v125 = vpop.trf.xlu0
    %v126 = vpop.trf.xlu0
    %v127 = vpop.trf.xlu0
    %v128 = vpop.trf.xlu0
    %v129 = vpop.trf.xlu0
    %v130 = vpop.trf.xlu0
    %v131 = vpop.trf.xlu0
    %132 = vxpose.xlu0.b32.start [1/16] %v84, 128
    %133 = vxpose.xlu0.b32.cont [2/16] %v85, 128
    %134 = vxpose.xlu0.b32.cont [3/16] %v86, 128
    %135 = vxpose.xlu0.b32.cont [4/16] %v87, 128
    %136 = vxpose.xlu0.b32.cont [5/16] %v88, 128
    %137 = vxpose.xlu0.b32.cont [6/16] %v89, 128
    %138 = vxpose.xlu0.b32.cont [7/16] %v90, 128
    %139 = vxpose.xlu0.b32.cont [8/16] %v91, 128
    %140 = vxpose.xlu0.b32.cont [9/16] %v92, 128
    %141 = vxpose.xlu0.b32.cont [10/16] %v93, 128
    %142 = vxpose.xlu0.b32.cont [11/16] %v94, 128
    %143 = vxpose.xlu0.b32.cont [12/16] %v95, 128
    %144 = vxpose.xlu0.b32.cont [13/16] %v96, 128
    %145 = vxpose.xlu0.b32.cont [14/16] %v97, 128
    %146 = vxpose.xlu0.b32.cont [15/16] %v98, 128
    %147 = vxpose.xlu0.b32.end [16/16] %v99, 128
    %v148 = vpop.trf.xlu0
    %v149 = vpop.trf.xlu0
    %v150 = vpop.trf.xlu0
    %v151 = vpop.trf.xlu0
    %v152 = vpop.trf.xlu0
    %v153 = vpop.trf.xlu0
    %v154 = vpop.trf.xlu0
    %v155 = vpop.trf.xlu0
    %v156 = vpop.trf.xlu0
    %v157 = vpop.trf.xlu0
    %v158 = vpop.trf.xlu0
    %v159 = vpop.trf.xlu0
    %v160 = vpop.trf.xlu0
    %v161 = vpop.trf.xlu0
    %v162 = vpop.trf.xlu0
    %v163 = vpop.trf.xlu0
    %v164 = vld [vmem:[%s1] sm:$0xf]
    %v165 = vld [vmem:[%s1 + $0x4] sm:$0xf]
    %v166 = vld [vmem:[%s2] sm:$0xff]
    %v167 = vld [vmem:[%s2 + $0x8] sm:$0xff]
    %v168 = vld [vmem:[%s2 + $0x10] sm:$0xff]
    %v169 = vld [vmem:[%s2 + $0x18] sm:$0xff]
    %v170 = vld [vmem:[%s2 + $0x20] sm:$0xff]
    %v171 = vld [vmem:[%s2 + $0x28] sm:$0xff]
    %v172 = vld [vmem:[%s2 + $0x30] sm:$0xff]
    %v173 = vld [vmem:[%s2 + $0x38] sm:$0xff]
    %v174 = vld [vmem:[%s2 + $0x40] sm:$0xff]
    %v175 = vld [vmem:[%s2 + $0x48] sm:$0xff]
    %v176 = vld [vmem:[%s2 + $0x50] sm:$0xff]
    %v177 = vld [vmem:[%s2 + $0x58] sm:$0xff]
    %v178 = vld [vmem:[%s2 + $0x60] sm:$0xff]
    %v179 = vld [vmem:[%s2 + $0x68] sm:$0xff]
    %v180 = vld [vmem:[%s2 + $0x70] sm:$0xff]
    %v181 = vld [vmem:[%s2 + $0x78] sm:$0xff]
    %v182 = vadd.f32 %v116, %v117
    %v183 = vadd.f32 %v182, %v118
    %v184 = vadd.f32 %v183, %v119
    %v185 = vadd.f32 %v184, %v120
    %v186 = vadd.f32 %v185, %v121
    %v187 = vadd.f32 %v186, %v122
    %v188 = vadd.f32 %v187, %v123
    %v189 = vrot.slane %v188, 4
    %v190 = vadd.f32 %v188, %v189
    %v191 = vrot.slane %v190, 2
    %v192 = vadd.f32 %v190, %v191
    %v193 = vrot.slane %v192, 1
    %v194 = vadd.f32 %v192, %v193
    %v195 = vadd.f32 %v148, %v149
    %v196 = vadd.f32 %v195, %v150
    %v197 = vadd.f32 %v196, %v151
    %v198 = vadd.f32 %v197, %v152
    %v199 = vadd.f32 %v198, %v153
    %v200 = vadd.f32 %v199, %v154
    %v201 = vadd.f32 %v200, %v155
    %v202 = vrot.slane %v201, 4
    %v203 = vadd.f32 %v201, %v202
    %v204 = vrot.slane %v203, 2
    %v205 = vadd.f32 %v203, %v204
    %v206 = vrot.slane %v205, 1
    %v207 = vadd.f32 %v205, %v206
    %vm210 = vcmask 1041409
    %v211 = vsel %vm210, %v207, %v194
    %213 = vmatprep.subr.mxu0 0.0
    %214 = vmatpush1.msra.mxu0 %v181
    %215 = vmatprep.subr.mxu0 0.0
    %216 = vmatpush1.msra.mxu0 %v180
    %217 = vmatprep.subr.mxu0 0.0
    %218 = vmatpush1.msra.mxu0 %v179
    %219 = vmatprep.subr.mxu0 0.0
    %220 = vmatpush1.msra.mxu0 %v178
    %221 = vmatprep.subr.mxu0 0.0
    %222 = vmatpush1.msra.mxu0 %v177
    %223 = vmatprep.subr.mxu0 0.0
    %224 = vmatpush1.msra.mxu0 %v176
    %225 = vmatprep.subr.mxu0 0.0
    %226 = vmatpush1.msra.mxu0 %v175
    %227 = vmatprep.subr.mxu0 0.0
    %228 = vmatpush1.msra.mxu0 %v174
    %229 = vmatprep.subr.mxu0 0.0
    %230 = vmatpush1.msra.mxu0 %v173
    %231 = vmatprep.subr.mxu0 0.0
    %232 = vmatpush1.msra.mxu0 %v172
    %233 = vmatprep.subr.mxu0 0.0
    %234 = vmatpush1.msra.mxu0 %v171
    %235 = vmatprep.subr.mxu0 0.0
    %236 = vmatpush1.msra.mxu0 %v170
    %237 = vmatprep.subr.mxu0 0.0
    %238 = vmatpush1.msra.mxu0 %v169
    %239 = vmatprep.subr.mxu0 0.0
    %240 = vmatpush1.msra.mxu0 %v168
    %241 = vmatprep.subr.mxu0 0.0
    %242 = vmatpush1.msra.mxu0 %v167
    %243 = vmatprep.subr.mxu0 0.0
    %244 = vmatpush1.msra.mxu0 %v166
    %245 = vmatprep.subr.mxu0 0.0
    %246 = vmatpush2.msra.mxu0 0.0
    %247 = vmatprep.subr.mxu0 0.0
    %248 = vmatpush2.msra.mxu0 0.0
    %249 = vmatprep.subr.mxu0 0.0
    %250 = vmatpush2.msra.mxu0 0.0
    %251 = vmatprep.subr.mxu0 0.0
    %252 = vmatpush2.msra.mxu0 0.0
    %253 = vmatprep.subr.mxu0 0.0
    %254 = vmatpush2.msra.mxu0 0.0
    %255 = vmatprep.subr.mxu0 0.0
    %256 = vmatpush2.msra.mxu0 0.0
    %257 = vmatprep.subr.mxu0 0.0
    %258 = vmatpush2.msra.mxu0 0.0
    %259 = vmatprep.subr.mxu0 0.0
    %260 = vmatpush2.msra.mxu0 0.0
    %261 = vmatprep.subr.mxu0 0.0
    %262 = vmatpush2.msra.mxu0 0.0
    %263 = vmatprep.subr.mxu0 0.0
    %264 = vmatpush2.msra.mxu0 0.0
    %265 = vmatprep.subr.mxu0 0.0
    %266 = vmatpush2.msra.mxu0 0.0
    %267 = vmatprep.subr.mxu0 0.0
    %268 = vmatpush2.msra.mxu0 0.0
    %269 = vmatprep.subr.mxu0 0.0
    %270 = vmatpush2.msra.mxu0 0.0
    %271 = vmatprep.subr.mxu0 0.0
    %272 = vmatpush2.msra.mxu0 0.0
    %273 = vmatprep.subr.mxu0 0.0
    %274 = vmatpush2.msra.mxu0 0.0
    %275 = vmatprep.subr.mxu0 0.0
    %276 = vmatpush2.msra.mxu0 0.0
    %277 = vmatprep.mubr.f32.mxu0 0.0
    %278 = vmatmul.mubr.f32.gmra.mxu0 %v211
    %v279 = vpop.f32.mrf.mxu0
    %v280 = vadd.f32 0.0, %v279
    %v281 = vpop.f32.mrf.mxu0
    %282 = vdwg.mxu0
    %v285 = vunpack.c.l.s4 1966171168
    %v286 = vunpack.c.0.s8 %v285
    %v287 = vlaneseq
    %v288 = vshrl.u32 %v287, 7
    %v289 = vsub.s32 %v286, %v288
    %v290 = vrot.slane %v280, %v289
    %v291 = vcombine.high %v290, %v290
    %v293 = vunpack.c.l.s4 1966171168
    %v294 = vunpack.c.0.s8 %v293
    %v295 = vlaneseq
    %v296 = vshrl.u32 %v295, 7
    %v297 = vsub.s32 %v294, %v296
    %v298 = vrot.slane %v290, %v297
    %v300 = vunpack.c.l.s4 1966171168
    %v301 = vunpack.c.0.s8 %v300
    %v302 = vlaneseq
    %v303 = vshrl.u32 %v302, 7
    %v304 = vsub.s32 %v301, %v303
    %v305 = vrot.slane %v291, %v304
    %v306 = vlaneseq
    %v307 = vshrl.u32 %v306, 7
    %v308 = vsub.s32 0, %v307
    %v309 = vrot.slane %v298, %v308
    %v310 = vlaneseq
    %v311 = vshrl.u32 %v310, 7
    %v312 = vsub.s32 0, %v311
    %v313 = vrot.slane %v305, %v312
    %v316 = vsub.f32 %v116, %v309
    %v317 = vsub.f32 %v117, %v309
    %v318 = vsub.f32 %v118, %v309
    %v319 = vsub.f32 %v119, %v309
    %v320 = vsub.f32 %v120, %v309
    %v321 = vsub.f32 %v121, %v309
    %v322 = vsub.f32 %v122, %v309
    %v323 = vsub.f32 %v123, %v309
    %v324 = vsub.f32 %v148, %v313
    %v325 = vsub.f32 %v149, %v313
    %v326 = vsub.f32 %v150, %v313
    %v327 = vsub.f32 %v151, %v313
    %v328 = vsub.f32 %v152, %v313
    %v329 = vsub.f32 %v153, %v313
    %v330 = vsub.f32 %v154, %v313
    %v331 = vsub.f32 %v155, %v313
    %v332 = vmul.f32 %v316, %v316
    %v333 = vmul.f32 %v317, %v317
    %v334 = vmul.f32 %v318, %v318
    %v335 = vmul.f32 %v319, %v319
    %v336 = vmul.f32 %v320, %v320
    %v337 = vmul.f32 %v321, %v321
    %v338 = vmul.f32 %v322, %v322
    %v339 = vmul.f32 %v323, %v323
    %v340 = vmul.f32 %v324, %v324
    %v341 = vmul.f32 %v325, %v325
    %v342 = vmul.f32 %v326, %v326
    %v343 = vmul.f32 %v327, %v327
    %v344 = vmul.f32 %v328, %v328
    %v345 = vmul.f32 %v329, %v329
    %v346 = vmul.f32 %v330, %v330
    %v347 = vmul.f32 %v331, %v331
    %v348 = vadd.f32 %v332, %v333
    %v349 = vadd.f32 %v348, %v334
    %v350 = vadd.f32 %v349, %v335
    %v351 = vadd.f32 %v350, %v336
    %v352 = vadd.f32 %v351, %v337
    %v353 = vadd.f32 %v352, %v338
    %v354 = vadd.f32 %v353, %v339
    %v355 = vrot.slane %v354, 4
    %v356 = vadd.f32 %v354, %v355
    %v357 = vrot.slane %v356, 2
    %v358 = vadd.f32 %v356, %v357
    %v359 = vrot.slane %v358, 1
    %v360 = vadd.f32 %v358, %v359
    %v361 = vadd.f32 %v340, %v341
    %v362 = vadd.f32 %v361, %v342
    %v363 = vadd.f32 %v362, %v343
    %v364 = vadd.f32 %v363, %v344
    %v365 = vadd.f32 %v364, %v345
    %v366 = vadd.f32 %v365, %v346
    %v367 = vadd.f32 %v366, %v347
    %v368 = vrot.slane %v367, 4
    %v369 = vadd.f32 %v367, %v368
    %v370 = vrot.slane %v369, 2
    %v371 = vadd.f32 %v369, %v370
    %v372 = vrot.slane %v371, 1
    %v373 = vadd.f32 %v371, %v372
    %v376 = vsel %vm210, %v373, %v360
    %378 = vmatprep.subr.mxu0 0.0
    %379 = vmatpush1.msra.mxu0 %v181
    %380 = vmatprep.subr.mxu0 0.0
    %381 = vmatpush1.msra.mxu0 %v180
    %382 = vmatprep.subr.mxu0 0.0
    %383 = vmatpush1.msra.mxu0 %v179
    %384 = vmatprep.subr.mxu0 0.0
    %385 = vmatpush1.msra.mxu0 %v178
    %386 = vmatprep.subr.mxu0 0.0
    %387 = vmatpush1.msra.mxu0 %v177
    %388 = vmatprep.subr.mxu0 0.0
    %389 = vmatpush1.msra.mxu0 %v176
    %390 = vmatprep.subr.mxu0 0.0
    %391 = vmatpush1.msra.mxu0 %v175
    %392 = vmatprep.subr.mxu0 0.0
    %393 = vmatpush1.msra.mxu0 %v174
    %394 = vmatprep.subr.mxu0 0.0
    %395 = vmatpush1.msra.mxu0 %v173
    %396 = vmatprep.subr.mxu0 0.0
    %397 = vmatpush1.msra.mxu0 %v172
    %398 = vmatprep.subr.mxu0 0.0
    %399 = vmatpush1.msra.mxu0 %v171
    %400 = vmatprep.subr.mxu0 0.0
    %401 = vmatpush1.msra.mxu0 %v170
    %402 = vmatprep.subr.mxu0 0.0
    %403 = vmatpush1.msra.mxu0 %v169
    %404 = vmatprep.subr.mxu0 0.0
    %405 = vmatpush1.msra.mxu0 %v168
    %406 = vmatprep.subr.mxu0 0.0
    %407 = vmatpush1.msra.mxu0 %v167
    %408 = vmatprep.subr.mxu0 0.0
    %409 = vmatpush1.msra.mxu0 %v166
    %410 = vmatprep.subr.mxu0 0.0
    %411 = vmatpush2.msra.mxu0 0.0
    %412 = vmatprep.subr.mxu0 0.0
    %413 = vmatpush2.msra.mxu0 0.0
    %414 = vmatprep.subr.mxu0 0.0
    %415 = vmatpush2.msra.mxu0 0.0
    %416 = vmatprep.subr.mxu0 0.0
    %417 = vmatpush2.msra.mxu0 0.0
    %418 = vmatprep.subr.mxu0 0.0
    %419 = vmatpush2.msra.mxu0 0.0
    %420 = vmatprep.subr.mxu0 0.0
    %421 = vmatpush2.msra.mxu0 0.0
    %422 = vmatprep.subr.mxu0 0.0
    %423 = vmatpush2.msra.mxu0 0.0
    %424 = vmatprep.subr.mxu0 0.0
    %425 = vmatpush2.msra.mxu0 0.0
    %426 = vmatprep.subr.mxu0 0.0
    %427 = vmatpush2.msra.mxu0 0.0
    %428 = vmatprep.subr.mxu0 0.0
    %429 = vmatpush2.msra.mxu0 0.0
    %430 = vmatprep.subr.mxu0 0.0
    %431 = vmatpush2.msra.mxu0 0.0
    %432 = vmatprep.subr.mxu0 0.0
    %433 = vmatpush2.msra.mxu0 0.0
    %434 = vmatprep.subr.mxu0 0.0
    %435 = vmatpush2.msra.mxu0 0.0
    %436 = vmatprep.subr.mxu0 0.0
    %437 = vmatpush2.msra.mxu0 0.0
    %438 = vmatprep.subr.mxu0 0.0
    %439 = vmatpush2.msra.mxu0 0.0
    %440 = vmatprep.subr.mxu0 0.0
    %441 = vmatpush2.msra.mxu0 0.0
    %442 = vmatprep.mubr.f32.mxu0 0.0
    %443 = vmatmul.mubr.f32.gmra.mxu0 %v376
    %v444 = vpop.f32.mrf.mxu0
    %v445 = vadd.f32 1e-05, %v444
    %v446 = vpop.f32.mrf.mxu0
    %447 = vdwg.mxu0
    %v448 = vrsqrt.pop %v445
    %v451 = vunpack.c.l.s4 1966171168
    %v452 = vunpack.c.0.s8 %v451
    %v453 = vlaneseq
    %v454 = vshrl.u32 %v453, 7
    %v455 = vsub.s32 %v452, %v454
    %v456 = vrot.slane %v448, %v455
    %v457 = vcombine.high %v456, %v456
    %v459 = vunpack.c.l.s4 1966171168
    %v460 = vunpack.c.0.s8 %v459
    %v461 = vlaneseq
    %v462 = vshrl.u32 %v461, 7
    %v463 = vsub.s32 %v460, %v462
    %v464 = vrot.slane %v456, %v463
    %v466 = vunpack.c.l.s4 1966171168
    %v467 = vunpack.c.0.s8 %v466
    %v468 = vlaneseq
    %v469 = vshrl.u32 %v468, 7
    %v470 = vsub.s32 %v467, %v469
    %v471 = vrot.slane %v457, %v470
    %v472 = vlaneseq
    %v473 = vshrl.u32 %v472, 7
    %v474 = vsub.s32 0, %v473
    %v475 = vrot.slane %v464, %v474
    %v476 = vlaneseq
    %v477 = vshrl.u32 %v476, 7
    %v478 = vsub.s32 0, %v477
    %v479 = vrot.slane %v471, %v478
    %v482 = vmul.f32 %v316, %v475
    %v483 = vmul.f32 %v317, %v475
    %v484 = vmul.f32 %v318, %v475
    %v485 = vmul.f32 %v319, %v475
    %v486 = vmul.f32 %v320, %v475
    %v487 = vmul.f32 %v321, %v475
    %v488 = vmul.f32 %v322, %v475
    %v489 = vmul.f32 %v323, %v475
    %v490 = vmul.f32 %v324, %v479
    %v491 = vmul.f32 %v325, %v479
    %v492 = vmul.f32 %v326, %v479
    %v493 = vmul.f32 %v327, %v479
    %v494 = vmul.f32 %v328, %v479
    %v495 = vmul.f32 %v329, %v479
    %v496 = vmul.f32 %v330, %v479
    %v497 = vmul.f32 %v331, %v479
    %v498 = vadd.f32 %v164, 1.0
    %v499 = vadd.f32 %v165, 1.0
    %v500 = vlaneseq
    %v501 = vshrl.u32 %v500, 7
    %v502 = vsub.s32 0, %v501
    %v503 = vrot.slane %v498, %v502
    %v504 = vlaneseq
    %v505 = vshrl.u32 %v504, 7
    %v506 = vsub.s32 0, %v505
    %v507 = vrot.slane %v499, %v506
    %v508 = vmul.f32 %v482, %v503
    %v509 = vmul.f32 %v483, %v503
    %v510 = vmul.f32 %v484, %v503
    %v511 = vmul.f32 %v485, %v503
    %v512 = vmul.f32 %v486, %v503
    %v513 = vmul.f32 %v487, %v503
    %v514 = vmul.f32 %v488, %v503
    %v515 = vmul.f32 %v489, %v503
    %v516 = vmul.f32 %v490, %v507
    %v517 = vmul.f32 %v491, %v507
    %v518 = vmul.f32 %v492, %v507
    %v519 = vmul.f32 %v493, %v507
    %v520 = vmul.f32 %v494, %v507
    %v521 = vmul.f32 %v495, %v507
    %v522 = vmul.f32 %v496, %v507
    %v523 = vmul.f32 %v497, %v507
    %v524 = vlaneseq
    %v525 = vshrl.u32 %v524, 7
    %v526 = vsub.s32 1, %v525
    %v527 = vrot.slane %v164, %v526
    %v528 = vlaneseq
    %v529 = vshrl.u32 %v528, 7
    %v530 = vsub.s32 1, %v529
    %v531 = vrot.slane %v165, %v530
    %v532 = vadd.f32 %v508, %v527
    %v533 = vadd.f32 %v509, %v527
    %v534 = vadd.f32 %v510, %v527
    %v535 = vadd.f32 %v511, %v527
    %v536 = vadd.f32 %v512, %v527
    %v537 = vadd.f32 %v513, %v527
    %v538 = vadd.f32 %v514, %v527
    %v539 = vadd.f32 %v515, %v527
    %v540 = vadd.f32 %v516, %v531
    %v541 = vadd.f32 %v517, %v531
    %v542 = vadd.f32 %v518, %v531
    %v543 = vadd.f32 %v519, %v531
    %v544 = vadd.f32 %v520, %v531
    %v545 = vadd.f32 %v521, %v531
    %v546 = vadd.f32 %v522, %v531
    %v547 = vadd.f32 %v523, %v531
    %v548 = vpack.c.bf16 %v533, %v532
    %v549 = vpack.c.bf16 %v535, %v534
    %v550 = vpack.c.bf16 %v537, %v536
    %v551 = vpack.c.bf16 %v539, %v538
    %v552 = vpack.c.bf16 %v541, %v540
    %v553 = vpack.c.bf16 %v543, %v542
    %v554 = vpack.c.bf16 %v545, %v544
    %v555 = vpack.c.bf16 %v547, %v546
    %v556 = vld [vmem:[#allocation2] sm:$0xff]
    %v557 = vld [vmem:[#allocation2 + $0x8] sm:$0xf]
    %v558 = vld [vmem:[#allocation2 + $0xc] sm:$0xff]
    %v559 = vld [vmem:[#allocation2 + $0x14] sm:$0xf]
    %v560 = vld [vmem:[#allocation2 + $0x18] sm:$0xff]
    %v561 = vld [vmem:[#allocation2 + $0x20] sm:$0xf]
    %v562 = vld [vmem:[#allocation2 + $0x24] sm:$0xff]
    %v563 = vld [vmem:[#allocation2 + $0x2c] sm:$0xf]
    %v564 = vld [vmem:[#allocation2 + $0x30] sm:$0xff]
    %v565 = vld [vmem:[#allocation2 + $0x38] sm:$0xf]
    %v566 = vld [vmem:[#allocation2 + $0x3c] sm:$0xff]
    %v567 = vld [vmem:[#allocation2 + $0x44] sm:$0xf]
    %v568 = vld [vmem:[#allocation2 + $0x48] sm:$0xff]
    %v569 = vld [vmem:[#allocation2 + $0x50] sm:$0xf]
    %v570 = vld [vmem:[#allocation2 + $0x54] sm:$0xff]
    %v571 = vld [vmem:[#allocation2 + $0x5c] sm:$0xf]
    %v572 = vld [vmem:[#allocation2 + $0x60] sm:$0xff]
    %v573 = vld [vmem:[#allocation2 + $0x68] sm:$0xf]
    %v574 = vld [vmem:[#allocation2 + $0x6c] sm:$0xff]
    %v575 = vld [vmem:[#allocation2 + $0x74] sm:$0xf]
    %v576 = vld [vmem:[#allocation2 + $0x78] sm:$0xff]
    %v577 = vld [vmem:[#allocation2 + $0x80] sm:$0xf]
    %v578 = vld [vmem:[#allocation2 + $0x84] sm:$0xff]
    %v579 = vld [vmem:[#allocation2 + $0x8c] sm:$0xf]
    %v580 = vld [vmem:[#allocation2 + $0x90] sm:$0xff]
    %v581 = vld [vmem:[#allocation2 + $0x98] sm:$0xf]
    %v582 = vld [vmem:[#allocation2 + $0x9c] sm:$0xff]
    %v583 = vld [vmem:[#allocation2 + $0xa4] sm:$0xf]
    %v584 = vld [vmem:[#allocation2 + $0xa8] sm:$0xff]
    %v585 = vld [vmem:[#allocation2 + $0xb0] sm:$0xf]
    %v586 = vld [vmem:[#allocation2 + $0xb4] sm:$0xff]
    %v587 = vld [vmem:[#allocation2 + $0xbc] sm:$0xf]
    %v620 = vunpack.c.l.b16 %v556
    %v621 = vunpack.c.h.b16 %v556
    %v622 = vunpack.c.l.b16 %v557
    %v623 = vunpack.c.l.b16 %v558
    %v624 = vunpack.c.h.b16 %v558
    %v625 = vunpack.c.l.b16 %v559
    %v626 = vunpack.c.l.b16 %v560
    %v627 = vunpack.c.h.b16 %v560
    %v628 = vunpack.c.l.b16 %v561
    %v629 = vunpack.c.l.b16 %v562
    %v630 = vunpack.c.h.b16 %v562
    %v631 = vunpack.c.l.b16 %v563
    %v632 = vunpack.c.l.b16 %v564
    %v633 = vunpack.c.h.b16 %v564
    %v634 = vunpack.c.l.b16 %v565
    %v635 = vunpack.c.l.b16 %v566
    %v636 = vunpack.c.h.b16 %v566
    %v637 = vunpack.c.l.b16 %v567
    %v638 = vunpack.c.l.b16 %v568
    %v639 = vunpack.c.h.b16 %v568
    %v640 = vunpack.c.l.b16 %v569
    %v641 = vunpack.c.l.b16 %v570
    %v642 = vunpack.c.h.b16 %v570
    %v643 = vunpack.c.l.b16 %v571
    %v644 = vunpack.c.l.b16 %v572
    %v645 = vunpack.c.h.b16 %v572
    %v646 = vunpack.c.l.b16 %v573
    %v647 = vunpack.c.l.b16 %v574
    %v648 = vunpack.c.h.b16 %v574
    %v649 = vunpack.c.l.b16 %v575
    %v650 = vunpack.c.l.b16 %v576
    %v651 = vunpack.c.h.b16 %v576
    %v652 = vunpack.c.l.b16 %v577
    %v653 = vunpack.c.l.b16 %v578
    %v654 = vunpack.c.h.b16 %v578
    %v655 = vunpack.c.l.b16 %v579
    %v656 = vunpack.c.l.b16 %v580
    %v657 = vunpack.c.h.b16 %v580
    %v658 = vunpack.c.l.b16 %v581
    %v659 = vunpack.c.l.b16 %v582
    %v660 = vunpack.c.h.b16 %v582
    %v661 = vunpack.c.l.b16 %v583
    %v662 = vunpack.c.l.b16 %v584
    %v663 = vunpack.c.h.b16 %v584
    %v664 = vunpack.c.l.b16 %v585
    %v665 = vunpack.c.l.b16 %v586
    %v666 = vunpack.c.h.b16 %v586
    %v667 = vunpack.c.l.b16 %v587
    %v668 = vpack.c.b16 %v623, %v620
    %v669 = vpack.c.b16 %v624, %v621
    %v670 = vpack.c.b16 %v625, %v622
    %v671 = vpack.c.b16 %v629, %v626
    %v672 = vpack.c.b16 %v630, %v627
    %v673 = vpack.c.b16 %v631, %v628
    %v674 = vpack.c.b16 %v635, %v632
    %v675 = vpack.c.b16 %v636, %v633
    %v676 = vpack.c.b16 %v637, %v634
    %v677 = vpack.c.b16 %v641, %v638
    %v678 = vpack.c.b16 %v642, %v639
    %v679 = vpack.c.b16 %v643, %v640
    %v680 = vpack.c.b16 %v647, %v644
    %v681 = vpack.c.b16 %v648, %v645
    %v682 = vpack.c.b16 %v649, %v646
    %v683 = vpack.c.b16 %v653, %v650
    %v684 = vpack.c.b16 %v654, %v651
    %v685 = vpack.c.b16 %v655, %v652
    %v686 = vpack.c.b16 %v659, %v656
    %v687 = vpack.c.b16 %v660, %v657
    %v688 = vpack.c.b16 %v661, %v658
    %v689 = vpack.c.b16 %v665, %v662
    %v690 = vpack.c.b16 %v666, %v663
    %v691 = vpack.c.b16 %v667, %v664
    %716 = vmatprep.subr.bf16.mxu0 %v690
    %717 = vmatpush1.bf16.msra.mxu0 %v689
    %718 = vmatprep.subr.bf16.mxu0 %v687
    %719 = vmatpush1.bf16.msra.mxu0 %v686
    %720 = vmatprep.subr.bf16.mxu0 %v684
    %721 = vmatpush1.bf16.msra.mxu0 %v683
    %722 = vmatprep.subr.bf16.mxu0 %v681
    %723 = vmatpush1.bf16.msra.mxu0 %v680
    %724 = vmatprep.subr.bf16.mxu0 %v678
    %725 = vmatpush1.bf16.msra.mxu0 %v677
    %726 = vmatprep.subr.bf16.mxu0 %v675
    %727 = vmatpush1.bf16.msra.mxu0 %v674
    %728 = vmatprep.subr.bf16.mxu0 %v672
    %729 = vmatpush1.bf16.msra.mxu0 %v671
    %730 = vmatprep.subr.bf16.mxu0 %v669
    %731 = vmatpush1.bf16.msra.mxu0 %v668
    %732 = vmatprep.subr.bf16.mxu0 0
    %733 = vmatpush2.bf16.msra.mxu0 0
    %734 = vmatprep.subr.bf16.mxu0 0
    %735 = vmatpush2.bf16.msra.mxu0 0
    %736 = vmatprep.subr.bf16.mxu0 0
    %737 = vmatpush2.bf16.msra.mxu0 0
    %738 = vmatprep.subr.bf16.mxu0 0
    %739 = vmatpush2.bf16.msra.mxu0 0
    %740 = vmatprep.subr.bf16.mxu0 0
    %741 = vmatpush2.bf16.msra.mxu0 0
    %742 = vmatprep.subr.bf16.mxu0 0
    %743 = vmatpush2.bf16.msra.mxu0 0
    %744 = vmatprep.subr.bf16.mxu0 0
    %745 = vmatpush2.bf16.msra.mxu0 0
    %746 = vmatprep.subr.bf16.mxu0 0
    %747 = vmatpush2.bf16.msra.mxu0 0
    %748 = vmatprep.mubr.bf16.mxu0 0
    %749 = vmatmul.mubr.bf16.gmra.mxu0 %v548
    %v750 = vpop.f32.mrf.mxu0
    %v751 = vadd.f32 0.0, %v750
    %v752 = vpop.f32.mrf.mxu0
    %v753 = vadd.f32 0.0, %v752
    %v754 = vpop.f32.mrf.mxu0
    %v755 = vadd.f32 0.0, %v754
    %v756 = vpop.f32.mrf.mxu0
    %v757 = vadd.f32 0.0, %v756
    %758 = vmatprep.mubr.bf16.mxu0 0
    %759 = vmatmul.mubr.bf16.gmra.mxu0 %v549
    %v760 = vpop.f32.mrf.mxu0
    %v761 = vadd.f32 0.0, %v760
    %v762 = vpop.f32.mrf.mxu0
    %v763 = vadd.f32 0.0, %v762
    %v764 = vpop.f32.mrf.mxu0
    %v765 = vadd.f32 0.0, %v764
    %v766 = vpop.f32.mrf.mxu0
    %v767 = vadd.f32 0.0, %v766
    %768 = vmatprep.mubr.bf16.mxu0 0
    %769 = vmatmul.mubr.bf16.gmra.mxu0 %v550
    %v770 = vpop.f32.mrf.mxu0
    %v771 = vadd.f32 0.0, %v770
    %v772 = vpop.f32.mrf.mxu0
    %v773 = vadd.f32 0.0, %v772
    %v774 = vpop.f32.mrf.mxu0
    %v775 = vadd.f32 0.0, %v774
    %v776 = vpop.f32.mrf.mxu0
    %v777 = vadd.f32 0.0, %v776
    %778 = vmatprep.mubr.bf16.mxu0 0
    %779 = vmatmul.mubr.bf16.gmra.mxu0 %v551
    %v780 = vpop.f32.mrf.mxu0
    %v781 = vadd.f32 0.0, %v780
    %v782 = vpop.f32.mrf.mxu0
    %v783 = vadd.f32 0.0, %v782
    %v784 = vpop.f32.mrf.mxu0
    %v785 = vadd.f32 0.0, %v784
    %v786 = vpop.f32.mrf.mxu0
    %v787 = vadd.f32 0.0, %v786
    %788 = vmatprep.mubr.bf16.mxu0 0
    %789 = vmatmul.mubr.bf16.gmra.mxu0 %v552
    %v790 = vpop.f32.mrf.mxu0
    %v791 = vadd.f32 0.0, %v790
    %v792 = vpop.f32.mrf.mxu0
    %v793 = vadd.f32 0.0, %v792
    %v794 = vpop.f32.mrf.mxu0
    %v795 = vadd.f32 0.0, %v794
    %v796 = vpop.f32.mrf.mxu0
    %v797 = vadd.f32 0.0, %v796
    %798 = vmatprep.mubr.bf16.mxu0 0
    %799 = vmatmul.mubr.bf16.gmra.mxu0 %v553
    %v800 = vpop.f32.mrf.mxu0
    %v801 = vadd.f32 0.0, %v800
    %v802 = vpop.f32.mrf.mxu0
    %v803 = vadd.f32 0.0, %v802
    %v804 = vpop.f32.mrf.mxu0
    %v805 = vadd.f32 0.0, %v804
    %v806 = vpop.f32.mrf.mxu0
    %v807 = vadd.f32 0.0, %v806
    %808 = vmatprep.mubr.bf16.mxu0 0
    %809 = vmatmul.mubr.bf16.gmra.mxu0 %v554
    %v810 = vpop.f32.mrf.mxu0
    %v811 = vadd.f32 0.0, %v810
    %v812 = vpop.f32.mrf.mxu0
    %v813 = vadd.f32 0.0, %v812
    %v814 = vpop.f32.mrf.mxu0
    %v815 = vadd.f32 0.0, %v814
    %v816 = vpop.f32.mrf.mxu0
    %v817 = vadd.f32 0.0, %v816
    %818 = vmatprep.mubr.bf16.mxu0 0
    %819 = vmatmul.mubr.bf16.gmra.mxu0 %v555
    %v820 = vpop.f32.mrf.mxu0
    %v821 = vadd.f32 0.0, %v820
    %v822 = vpop.f32.mrf.mxu0
    %v823 = vadd.f32 0.0, %v822
    %v824 = vpop.f32.mrf.mxu0
    %v825 = vadd.f32 0.0, %v824
    %v826 = vpop.f32.mrf.mxu0
    %v827 = vadd.f32 0.0, %v826
    %828 = vdwg.mxu0
    %829 = vmatprep.subr.bf16.mxu0 0
    %830 = vmatpush1.bf16.msra.mxu0 %v691
    %831 = vmatprep.subr.bf16.mxu0 0
    %832 = vmatpush1.bf16.msra.mxu0 %v688
    %833 = vmatprep.subr.bf16.mxu0 0
    %834 = vmatpush1.bf16.msra.mxu0 %v685
    %835 = vmatprep.subr.bf16.mxu0 0
    %836 = vmatpush1.bf16.msra.mxu0 %v682
    %837 = vmatprep.subr.bf16.mxu0 0
    %838 = vmatpush1.bf16.msra.mxu0 %v679
    %839 = vmatprep.subr.bf16.mxu0 0
    %840 = vmatpush1.bf16.msra.mxu0 %v676
    %841 = vmatprep.subr.bf16.mxu0 0
    %842 = vmatpush1.bf16.msra.mxu0 %v673
    %843 = vmatprep.subr.bf16.mxu0 0
    %844 = vmatpush1.bf16.msra.mxu0 %v670
    %845 = vmatprep.subr.bf16.mxu0 0
    %846 = vmatpush2.bf16.msra.mxu0 0
    %847 = vmatprep.subr.bf16.mxu0 0
    %848 = vmatpush2.bf16.msra.mxu0 0
    %849 = vmatprep.subr.bf16.mxu0 0
    %850 = vmatpush2.bf16.msra.mxu0 0
    %851 = vmatprep.subr.bf16.mxu0 0
    %852 = vmatpush2.bf16.msra.mxu0 0
    %853 = vmatprep.subr.bf16.mxu0 0
    %854 = vmatpush2.bf16.msra.mxu0 0
    %855 = vmatprep.subr.bf16.mxu0 0
    %856 = vmatpush2.bf16.msra.mxu0 0
    %857 = vmatprep.subr.bf16.mxu0 0
    %858 = vmatpush2.bf16.msra.mxu0 0
    %859 = vmatprep.subr.bf16.mxu0 0
    %860 = vmatpush2.bf16.msra.mxu0 0
    %861 = vmatprep.mubr.bf16.mxu0 0
    %862 = vmatmul.mubr.bf16.gmra.mxu0 %v548
    %v863 = vpop.f32.mrf.mxu0
    %v864 = vadd.f32 0.0, %v863
    %v865 = vpop.f32.mrf.mxu0
    %v866 = vpop.f32.mrf.mxu0
    %v867 = vadd.f32 0.0, %v866
    %v868 = vpop.f32.mrf.mxu0
    %869 = vmatprep.mubr.bf16.mxu0 0
    %870 = vmatmul.mubr.bf16.gmra.mxu0 %v549
    %v871 = vpop.f32.mrf.mxu0
    %v872 = vadd.f32 0.0, %v871
    %v873 = vpop.f32.mrf.mxu0
    %v874 = vpop.f32.mrf.mxu0
    %v875 = vadd.f32 0.0, %v874
    %v876 = vpop.f32.mrf.mxu0
    %877 = vmatprep.mubr.bf16.mxu0 0
    %878 = vmatmul.mubr.bf16.gmra.mxu0 %v550
    %v879 = vpop.f32.mrf.mxu0
    %v880 = vadd.f32 0.0, %v879
    %v881 = vpop.f32.mrf.mxu0
    %v882 = vpop.f32.mrf.mxu0
    %v883 = vadd.f32 0.0, %v882
    %v884 = vpop.f32.mrf.mxu0
    %885 = vmatprep.mubr.bf16.mxu0 0
    %886 = vmatmul.mubr.bf16.gmra.mxu0 %v551
    %v887 = vpop.f32.mrf.mxu0
    %v888 = vadd.f32 0.0, %v887
    %v889 = vpop.f32.mrf.mxu0
    %v890 = vpop.f32.mrf.mxu0
    %v891 = vadd.f32 0.0, %v890
    %v892 = vpop.f32.mrf.mxu0
    %893 = vmatprep.mubr.bf16.mxu0 0
    %894 = vmatmul.mubr.bf16.gmra.mxu0 %v552
    %v895 = vpop.f32.mrf.mxu0
    %v896 = vadd.f32 0.0, %v895
    %v897 = vpop.f32.mrf.mxu0
    %v898 = vpop.f32.mrf.mxu0
    %v899 = vadd.f32 0.0, %v898
    %v900 = vpop.f32.mrf.mxu0
    %901 = vmatprep.mubr.bf16.mxu0 0
    %902 = vmatmul.mubr.bf16.gmra.mxu0 %v553
    %v903 = vpop.f32.mrf.mxu0
    %v904 = vadd.f32 0.0, %v903
    %v905 = vpop.f32.mrf.mxu0
    %v906 = vpop.f32.mrf.mxu0
    %v907 = vadd.f32 0.0, %v906
    %v908 = vpop.f32.mrf.mxu0
    %909 = vmatprep.mubr.bf16.mxu0 0
    %910 = vmatmul.mubr.bf16.gmra.mxu0 %v554
    %v911 = vpop.f32.mrf.mxu0
    %v912 = vadd.f32 0.0, %v911
    %v913 = vpop.f32.mrf.mxu0
    %v914 = vpop.f32.mrf.mxu0
    %v915 = vadd.f32 0.0, %v914
    %v916 = vpop.f32.mrf.mxu0
    %917 = vmatprep.mubr.bf16.mxu0 0
    %918 = vmatmul.mubr.bf16.gmra.mxu0 %v555
    %v919 = vpop.f32.mrf.mxu0
    %v920 = vadd.f32 0.0, %v919
    %v921 = vpop.f32.mrf.mxu0
    %v922 = vpop.f32.mrf.mxu0
    %v923 = vadd.f32 0.0, %v922
    %v924 = vpop.f32.mrf.mxu0
    %925 = vdwg.mxu0
    %942 = vrot.lane.b32.xlu0 %v751, 64
    %v943 = vpop.permute.xlu0 %942
    %944 = vrot.lane.b32.xlu0 %v755, 64
    %v945 = vpop.permute.xlu0 %944
    %946 = vrot.lane.b32.xlu0 %v761, 64
    %v947 = vpop.permute.xlu0 %946
    %948 = vrot.lane.b32.xlu0 %v765, 64
    %v949 = vpop.permute.xlu0 %948
    %950 = vrot.lane.b32.xlu0 %v771, 64
    %v951 = vpop.permute.xlu0 %950
    %952 = vrot.lane.b32.xlu0 %v775, 64
    %v953 = vpop.permute.xlu0 %952
    %954 = vrot.lane.b32.xlu0 %v781, 64
    %v955 = vpop.permute.xlu0 %954
    %956 = vrot.lane.b32.xlu0 %v785, 64
    %v957 = vpop.permute.xlu0 %956
    %958 = vrot.lane.b32.xlu0 %v791, 64
    %v959 = vpop.permute.xlu0 %958
    %960 = vrot.lane.b32.xlu0 %v795, 64
    %v961 = vpop.permute.xlu0 %960
    %962 = vrot.lane.b32.xlu0 %v801, 64
    %v963 = vpop.permute.xlu0 %962
    %964 = vrot.lane.b32.xlu0 %v805, 64
    %v965 = vpop.permute.xlu0 %964
    %966 = vrot.lane.b32.xlu0 %v811, 64
    %v967 = vpop.permute.xlu0 %966
    %968 = vrot.lane.b32.xlu0 %v815, 64
    %v969 = vpop.permute.xlu0 %968
    %970 = vrot.lane.b32.xlu0 %v821, 64
    %v971 = vpop.permute.xlu0 %970
    %972 = vrot.lane.b32.xlu0 %v825, 64
    %v973 = vpop.permute.xlu0 %972
    %v990 = vpack.c.bf16 %v755, %v751
    %v991 = vpack.c.bf16 %v765, %v761
    %v992 = vpack.c.bf16 %v775, %v771
    %v993 = vpack.c.bf16 %v785, %v781
    %v994 = vpack.c.bf16 %v795, %v791
    %v995 = vpack.c.bf16 %v805, %v801
    %v996 = vpack.c.bf16 %v815, %v811
    %v997 = vpack.c.bf16 %v825, %v821
    %v998 = vpack.c.bf16 %v945, %v943
    %v999 = vpack.c.bf16 %v949, %v947
    %v1000 = vpack.c.bf16 %v953, %v951
    %v1001 = vpack.c.bf16 %v957, %v955
    %v1002 = vpack.c.bf16 %v961, %v959
    %v1003 = vpack.c.bf16 %v965, %v963
    %v1004 = vpack.c.bf16 %v969, %v967
    %v1005 = vpack.c.bf16 %v973, %v971
    %1022 = vrot.lane.b32.xlu0 %v753, 64
    %v1023 = vpop.permute.xlu0 %1022
    %1024 = vrot.lane.b32.xlu0 %v757, 64
    %v1025 = vpop.permute.xlu0 %1024
    %1026 = vrot.lane.b32.xlu0 %v763, 64
    %v1027 = vpop.permute.xlu0 %1026
    %1028 = vrot.lane.b32.xlu0 %v767, 64
    %v1029 = vpop.permute.xlu0 %1028
    %1030 = vrot.lane.b32.xlu0 %v773, 64
    %v1031 = vpop.permute.xlu0 %1030
    %1032 = vrot.lane.b32.xlu0 %v777, 64
    %v1033 = vpop.permute.xlu0 %1032
    %1034 = vrot.lane.b32.xlu0 %v783, 64
    %v1035 = vpop.permute.xlu0 %1034
    %1036 = vrot.lane.b32.xlu0 %v787, 64
    %v1037 = vpop.permute.xlu0 %1036
    %1038 = vrot.lane.b32.xlu0 %v793, 64
    %v1039 = vpop.permute.xlu0 %1038
    %1040 = vrot.lane.b32.xlu0 %v797, 64
    %v1041 = vpop.permute.xlu0 %1040
    %1042 = vrot.lane.b32.xlu0 %v803, 64
    %v1043 = vpop.permute.xlu0 %1042
    %1044 = vrot.lane.b32.xlu0 %v807, 64
    %v1045 = vpop.permute.xlu0 %1044
    %1046 = vrot.lane.b32.xlu0 %v813, 64
    %v1047 = vpop.permute.xlu0 %1046
    %1048 = vrot.lane.b32.xlu0 %v817, 64
    %v1049 = vpop.permute.xlu0 %1048
    %1050 = vrot.lane.b32.xlu0 %v823, 64
    %v1051 = vpop.permute.xlu0 %1050
    %1052 = vrot.lane.b32.xlu0 %v827, 64
    %v1053 = vpop.permute.xlu0 %1052
    %v1070 = vpack.c.bf16 %v757, %v753
    %v1071 = vpack.c.bf16 %v767, %v763
    %v1072 = vpack.c.bf16 %v777, %v773
    %v1073 = vpack.c.bf16 %v787, %v783
    %v1074 = vpack.c.bf16 %v797, %v793
    %v1075 = vpack.c.bf16 %v807, %v803
    %v1076 = vpack.c.bf16 %v817, %v813
    %v1077 = vpack.c.bf16 %v827, %v823
    %v1078 = vpack.c.bf16 %v1025, %v1023
    %v1079 = vpack.c.bf16 %v1029, %v1027
    %v1080 = vpack.c.bf16 %v1033, %v1031
    %v1081 = vpack.c.bf16 %v1037, %v1035
    %v1082 = vpack.c.bf16 %v1041, %v1039
    %v1083 = vpack.c.bf16 %v1045, %v1043
    %v1084 = vpack.c.bf16 %v1049, %v1047
    %v1085 = vpack.c.bf16 %v1053, %v1051
    %1102 = vrot.lane.b32.xlu0 %v864, 64
    %v1103 = vpop.permute.xlu0 %1102
    %1104 = vrot.lane.b32.xlu0 %v867, 64
    %v1105 = vpop.permute.xlu0 %1104
    %1106 = vrot.lane.b32.xlu0 %v872, 64
    %v1107 = vpop.permute.xlu0 %1106
    %1108 = vrot.lane.b32.xlu0 %v875, 64
    %v1109 = vpop.permute.xlu0 %1108
    %1110 = vrot.lane.b32.xlu0 %v880, 64
    %v1111 = vpop.permute.xlu0 %1110
    %1112 = vrot.lane.b32.xlu0 %v883, 64
    %v1113 = vpop.permute.xlu0 %1112
    %1114 = vrot.lane.b32.xlu0 %v888, 64
    %v1115 = vpop.permute.xlu0 %1114
    %1116 = vrot.lane.b32.xlu0 %v891, 64
    %v1117 = vpop.permute.xlu0 %1116
    %1118 = vrot.lane.b32.xlu0 %v896, 64
    %v1119 = vpop.permute.xlu0 %1118
    %1120 = vrot.lane.b32.xlu0 %v899, 64
    %v1121 = vpop.permute.xlu0 %1120
    %1122 = vrot.lane.b32.xlu0 %v904, 64
    %v1123 = vpop.permute.xlu0 %1122
    %1124 = vrot.lane.b32.xlu0 %v907, 64
    %v1125 = vpop.permute.xlu0 %1124
    %1126 = vrot.lane.b32.xlu0 %v912, 64
    %v1127 = vpop.permute.xlu0 %1126
    %1128 = vrot.lane.b32.xlu0 %v915, 64
    %v1129 = vpop.permute.xlu0 %1128
    %1130 = vrot.lane.b32.xlu0 %v920, 64
    %v1131 = vpop.permute.xlu0 %1130
    %1132 = vrot.lane.b32.xlu0 %v923, 64
    %v1133 = vpop.permute.xlu0 %1132
    %v1150 = vpack.c.bf16 %v867, %v864
    %v1151 = vpack.c.bf16 %v875, %v872
    %v1152 = vpack.c.bf16 %v883, %v880
    %v1153 = vpack.c.bf16 %v891, %v888
    %v1154 = vpack.c.bf16 %v899, %v896
    %v1155 = vpack.c.bf16 %v907, %v904
    %v1156 = vpack.c.bf16 %v915, %v912
    %v1157 = vpack.c.bf16 %v923, %v920
    %v1158 = vpack.c.bf16 %v1105, %v1103
    %v1159 = vpack.c.bf16 %v1109, %v1107
    %v1160 = vpack.c.bf16 %v1113, %v1111
    %v1161 = vpack.c.bf16 %v1117, %v1115
    %v1162 = vpack.c.bf16 %v1121, %v1119
    %v1163 = vpack.c.bf16 %v1125, %v1123
    %v1164 = vpack.c.bf16 %v1129, %v1127
    %v1165 = vpack.c.bf16 %v1133, %v1131
    %vm1166 = vcmask 523264
    %v1168 = vsel %vm1166, %v990, 0
    %v1171 = vsel %vm1166, %v991, 0
    %v1174 = vsel %vm1166, %v992, 0
    %v1177 = vsel %vm1166, %v993, 0
    %v1180 = vsel %vm1166, %v1070, 0
    %v1183 = vsel %vm1166, %v1071, 0
    %v1186 = vsel %vm1166, %v1072, 0
    %v1189 = vsel %vm1166, %v1073, 0
    %1191 = vmatprep.subr.bf16.mxu0 0
    %1192 = vmatpush1.bf16.xpose.msra.mxu0 0
    %1193 = vmatprep.subr.bf16.mxu0 0
    %1194 = vmatpush1.bf16.xpose.msra.mxu0 0
    %1195 = vmatprep.subr.bf16.mxu0 0
    %1196 = vmatpush1.bf16.xpose.msra.mxu0 0
    %1197 = vmatprep.subr.bf16.mxu0 0
    %1198 = vmatpush1.bf16.xpose.msra.mxu0 0
    %1199 = vmatprep.subr.bf16.mxu0 0
    %1200 = vmatpush1.bf16.xpose.msra.mxu0 %v1189
    %1201 = vmatprep.subr.bf16.mxu0 0
    %1202 = vmatpush1.bf16.xpose.msra.mxu0 %v1186
    %1203 = vmatprep.subr.bf16.mxu0 0
    %1204 = vmatpush1.bf16.xpose.msra.mxu0 %v1183
    %1205 = vmatprep.subr.bf16.mxu0 0
    %1206 = vmatpush1.bf16.xpose.msra.mxu0 %v1180
    %1207 = vmatprep.subr.bf16.mxu0 0
    %1208 = vmatpush2.bf16.xpose.msra.mxu0 0
    %1209 = vmatprep.subr.bf16.mxu0 0
    %1210 = vmatpush2.bf16.xpose.msra.mxu0 0
    %1211 = vmatprep.subr.bf16.mxu0 0
    %1212 = vmatpush2.bf16.xpose.msra.mxu0 0
    %1213 = vmatprep.subr.bf16.mxu0 0
    %1214 = vmatpush2.bf16.xpose.msra.mxu0 0
    %1215 = vmatprep.subr.bf16.mxu0 0
    %1216 = vmatpush2.bf16.xpose.msra.mxu0 0
    %1217 = vmatprep.subr.bf16.mxu0 0
    %1218 = vmatpush2.bf16.xpose.msra.mxu0 0
    %1219 = vmatprep.subr.bf16.mxu0 0
    %1220 = vmatpush2.bf16.xpose.msra.mxu0 0
    %1221 = vmatprep.subr.bf16.mxu0 0
    %1222 = vmatpush2.bf16.xpose.msra.mxu0 0
    %1223 = vmatprep.mubr.bf16.mxu0 0
    %1224 = vmatmul.mubr.bf16.gmra.mxu0 %v1168
    %v1225 = vpop.f32.mrf.mxu0
    %v1226 = vadd.f32 0.0, %v1225
    %v1227 = vpop.f32.mrf.mxu0
    %v1228 = vpop.f32.mrf.mxu0
    %v1229 = vadd.f32 0.0, %v1228
    %v1230 = vpop.f32.mrf.mxu0
    %1231 = vmatprep.mubr.bf16.mxu0 0
    %1232 = vmatmul.mubr.bf16.gmra.mxu0 %v1171
    %v1233 = vpop.f32.mrf.mxu0
    %v1234 = vadd.f32 0.0, %v1233
    %v1235 = vpop.f32.mrf.mxu0
    %v1236 = vpop.f32.mrf.mxu0
    %v1237 = vadd.f32 0.0, %v1236
    %v1238 = vpop.f32.mrf.mxu0
    %1239 = vmatprep.mubr.bf16.mxu0 0
    %1240 = vmatmul.mubr.bf16.gmra.mxu0 %v1174
    %v1241 = vpop.f32.mrf.mxu0
    %v1242 = vadd.f32 0.0, %v1241
    %v1243 = vpop.f32.mrf.mxu0
    %v1244 = vpop.f32.mrf.mxu0
    %v1245 = vadd.f32 0.0, %v1244
    %v1246 = vpop.f32.mrf.mxu0
    %1247 = vmatprep.mubr.bf16.mxu0 0
    %1248 = vmatmul.mubr.bf16.gmra.mxu0 %v1177
    %v1249 = vpop.f32.mrf.mxu0
    %v1250 = vadd.f32 0.0, %v1249
    %v1251 = vpop.f32.mrf.mxu0
    %v1252 = vpop.f32.mrf.mxu0
    %v1253 = vadd.f32 0.0, %v1252
    %v1254 = vpop.f32.mrf.mxu0
    %1255 = vdwg.mxu0
    %v1257 = vsel %vm1166, %v994, 0
    %v1260 = vsel %vm1166, %v995, 0
    %v1263 = vsel %vm1166, %v996, 0
    %v1266 = vsel %vm1166, %v997, 0
    %v1269 = vsel %vm1166, %v1074, 0
    %v1272 = vsel %vm1166, %v1075, 0
    %v1275 = vsel %vm1166, %v1076, 0
    %v1278 = vsel %vm1166, %v1077, 0
    %1280 = vmatprep.subr.bf16.mxu0 0
    %1281 = vmatpush1.bf16.xpose.msra.mxu0 0
    %1282 = vmatprep.subr.bf16.mxu0 0
    %1283 = vmatpush1.bf16.xpose.msra.mxu0 0
    %1284 = vmatprep.subr.bf16.mxu0 0
    %1285 = vmatpush1.bf16.xpose.msra.mxu0 0
    %1286 = vmatprep.subr.bf16.mxu0 0
    %1287 = vmatpush1.bf16.xpose.msra.mxu0 0
    %1288 = vmatprep.subr.bf16.mxu0 0
    %1289 = vmatpush1.bf16.xpose.msra.mxu0 %v1278
    %1290 = vmatprep.subr.bf16.mxu0 0
    %1291 = vmatpush1.bf16.xpose.msra.mxu0 %v1275
    %1292 = vmatprep.subr.bf16.mxu0 0
    %1293 = vmatpush1.bf16.xpose.msra.mxu0 %v1272
    %1294 = vmatprep.subr.bf16.mxu0 0
    %1295 = vmatpush1.bf16.xpose.msra.mxu0 %v1269
    %1296 = vmatprep.subr.bf16.mxu0 0
    %1297 = vmatpush2.bf16.xpose.msra.mxu0 0
    %1298 = vmatprep.subr.bf16.mxu0 0
    %1299 = vmatpush2.bf16.xpose.msra.mxu0 0
    %1300 = vmatprep.subr.bf16.mxu0 0
    %1301 = vmatpush2.bf16.xpose.msra.mxu0 0
    %1302 = vmatprep.subr.bf16.mxu0 0
    %1303 = vmatpush2.bf16.xpose.msra.mxu0 0
    %1304 = vmatprep.subr.bf16.mxu0 0
    %1305 = vmatpush2.bf16.xpose.msra.mxu0 0
    %1306 = vmatprep.subr.bf16.mxu0 0
    %1307 = vmatpush2.bf16.xpose.msra.mxu0 0
    %1308 = vmatprep.subr.bf16.mxu0 0
    %1309 = vmatpush2.bf16.xpose.msra.mxu0 0
    %1310 = vmatprep.subr.bf16.mxu0 0
    %1311 = vmatpush2.bf16.xpose.msra.mxu0 0
    %1312 = vmatprep.mubr.bf16.mxu0 0
    %1313 = vmatmul.mubr.bf16.gmra.mxu0 %v1257
    %v1314 = vpop.f32.mrf.mxu0
    %v1315 = vadd.f32 0.0, %v1314
    %v1316 = vpop.f32.mrf.mxu0
    %v1317 = vpop.f32.mrf.mxu0
    %v1318 = vadd.f32 0.0, %v1317
    %v1319 = vpop.f32.mrf.mxu0
    %1320 = vmatprep.mubr.bf16.mxu0 0
    %1321 = vmatmul.mubr.bf16.gmra.mxu0 %v1260
    %v1322 = vpop.f32.mrf.mxu0
    %v1323 = vadd.f32 0.0, %v1322
    %v1324 = vpop.f32.mrf.mxu0
    %v1325 = vpop.f32.mrf.mxu0
    %v1326 = vadd.f32 0.0, %v1325
    %v1327 = vpop.f32.mrf.mxu0
    %1328 = vmatprep.mubr.bf16.mxu0 0
    %1329 = vmatmul.mubr.bf16.gmra.mxu0 %v1263
    %v1330 = vpop.f32.mrf.mxu0
    %v1331 = vadd.f32 0.0, %v1330
    %v1332 = vpop.f32.mrf.mxu0
    %v1333 = vpop.f32.mrf.mxu0
    %v1334 = vadd.f32 0.0, %v1333
    %v1335 = vpop.f32.mrf.mxu0
    %1336 = vmatprep.mubr.bf16.mxu0 0
    %1337 = vmatmul.mubr.bf16.gmra.mxu0 %v1266
    %v1338 = vpop.f32.mrf.mxu0
    %v1339 = vadd.f32 0.0, %v1338
    %v1340 = vpop.f32.mrf.mxu0
    %v1341 = vpop.f32.mrf.mxu0
    %v1342 = vadd.f32 0.0, %v1341
    %v1343 = vpop.f32.mrf.mxu0
    %1344 = vdwg.mxu0
    %v1346 = vsel %vm1166, %v998, 0
    %v1349 = vsel %vm1166, %v999, 0
    %v1352 = vsel %vm1166, %v1000, 0
    %v1355 = vsel %vm1166, %v1001, 0
    %v1358 = vsel %vm1166, %v1078, 0
    %v1361 = vsel %vm1166, %v1079, 0
    %v1364 = vsel %vm1166, %v1080, 0
    %v1367 = vsel %vm1166, %v1081, 0
    %1369 = vmatprep.subr.bf16.mxu0 0
    %1370 = vmatpush1.bf16.xpose.msra.mxu0 0
    %1371 = vmatprep.subr.bf16.mxu0 0
    %1372 = vmatpush1.bf16.xpose.msra.mxu0 0
    %1373 = vmatprep.subr.bf16.mxu0 0
    %1374 = vmatpush1.bf16.xpose.msra.mxu0 0
    %1375 = vmatprep.subr.bf16.mxu0 0
    %1376 = vmatpush1.bf16.xpose.msra.mxu0 0
    %1377 = vmatprep.subr.bf16.mxu0 0
    %1378 = vmatpush1.bf16.xpose.msra.mxu0 %v1367
    %1379 = vmatprep.subr.bf16.mxu0 0
    %1380 = vmatpush1.bf16.xpose.msra.mxu0 %v1364
    %1381 = vmatprep.subr.bf16.mxu0 0
    %1382 = vmatpush1.bf16.xpose.msra.mxu0 %v1361
    %1383 = vmatprep.subr.bf16.mxu0 0
    %1384 = vmatpush1.bf16.xpose.msra.mxu0 %v1358
    %1385 = vmatprep.subr.bf16.mxu0 0
    %1386 = vmatpush2.bf16.xpose.msra.mxu0 0
    %1387 = vmatprep.subr.bf16.mxu0 0
    %1388 = vmatpush2.bf16.xpose.msra.mxu0 0
    %1389 = vmatprep.subr.bf16.mxu0 0
    %1390 = vmatpush2.bf16.xpose.msra.mxu0 0
    %1391 = vmatprep.subr.bf16.mxu0 0
    %1392 = vmatpush2.bf16.xpose.msra.mxu0 0
    %1393 = vmatprep.subr.bf16.mxu0 0
    %1394 = vmatpush2.bf16.xpose.msra.mxu0 0
    %1395 = vmatprep.subr.bf16.mxu0 0
    %1396 = vmatpush2.bf16.xpose.msra.mxu0 0
    %1397 = vmatprep.subr.bf16.mxu0 0
    %1398 = vmatpush2.bf16.xpose.msra.mxu0 0
    %1399 = vmatprep.subr.bf16.mxu0 0
    %1400 = vmatpush2.bf16.xpose.msra.mxu0 0
    %1401 = vmatprep.mubr.bf16.mxu0 0
    %1402 = vmatmul.mubr.bf16.gmra.mxu0 %v1346
    %v1403 = vpop.f32.mrf.mxu0
    %v1404 = vadd.f32 0.0, %v1403
    %v1405 = vpop.f32.mrf.mxu0
    %v1406 = vpop.f32.mrf.mxu0
    %v1407 = vadd.f32 0.0, %v1406
    %v1408 = vpop.f32.mrf.mxu0
    %1409 = vmatprep.mubr.bf16.mxu0 0
    %1410 = vmatmul.mubr.bf16.gmra.mxu0 %v1349
    %v1411 = vpop.f32.mrf.mxu0
    %v1412 = vadd.f32 0.0, %v1411
    %v1413 = vpop.f32.mrf.mxu0
    %v1414 = vpop.f32.mrf.mxu0
    %v1415 = vadd.f32 0.0, %v1414
    %v1416 = vpop.f32.mrf.mxu0
    %1417 = vmatprep.mubr.bf16.mxu0 0
    %1418 = vmatmul.mubr.bf16.gmra.mxu0 %v1352
    %v1419 = vpop.f32.mrf.mxu0
    %v1420 = vadd.f32 0.0, %v1419
    %v1421 = vpop.f32.mrf.mxu0
    %v1422 = vpop.f32.mrf.mxu0
    %v1423 = vadd.f32 0.0, %v1422
    %v1424 = vpop.f32.mrf.mxu0
    %1425 = vmatprep.mubr.bf16.mxu0 0
    %1426 = vmatmul.mubr.bf16.gmra.mxu0 %v1355
    %v1427 = vpop.f32.mrf.mxu0
    %v1428 = vadd.f32 0.0, %v1427
    %v1429 = vpop.f32.mrf.mxu0
    %v1430 = vpop.f32.mrf.mxu0
    %v1431 = vadd.f32 0.0, %v1430
    %v1432 = vpop.f32.mrf.mxu0
    %1433 = vdwg.mxu0
    %v1435 = vsel %vm1166, %v1002, 0
    %v1438 = vsel %vm1166, %v1003, 0
    %v1441 = vsel %vm1166, %v1004, 0
    %v1444 = vsel %vm1166, %v1005, 0
    %v1447 = vsel %vm1166, %v1082, 0
    %v1450 = vsel %vm1166, %v1083, 0
    %v1453 = vsel %vm1166, %v1084, 0
    %v1456 = vsel %vm1166, %v1085, 0
    %1458 = vmatprep.subr.bf16.mxu0 0
    %1459 = vmatpush1.bf16.xpose.msra.mxu0 0
    %1460 = vmatprep.subr.bf16.mxu0 0
    %1461 = vmatpush1.bf16.xpose.msra.mxu0 0
    %1462 = vmatprep.subr.bf16.mxu0 0
    %1463 = vmatpush1.bf16.xpose.msra.mxu0 0
    %1464 = vmatprep.subr.bf16.mxu0 0
    %1465 = vmatpush1.bf16.xpose.msra.mxu0 0
    %1466 = vmatprep.subr.bf16.mxu0 0
    %1467 = vmatpush1.bf16.xpose.msra.mxu0 %v1456
    %1468 = vmatprep.subr.bf16.mxu0 0
    %1469 = vmatpush1.bf16.xpose.msra.mxu0 %v1453
    %1470 = vmatprep.subr.bf16.mxu0 0
    %1471 = vmatpush1.bf16.xpose.msra.mxu0 %v1450
    %1472 = vmatprep.subr.bf16.mxu0 0
    %1473 = vmatpush1.bf16.xpose.msra.mxu0 %v1447
    %1474 = vmatprep.subr.bf16.mxu0 0
    %1475 = vmatpush2.bf16.xpose.msra.mxu0 0
    %1476 = vmatprep.subr.bf16.mxu0 0
    %1477 = vmatpush2.bf16.xpose.msra.mxu0 0
    %1478 = vmatprep.subr.bf16.mxu0 0
    %1479 = vmatpush2.bf16.xpose.msra.mxu0 0
    %1480 = vmatprep.subr.bf16.mxu0 0
    %1481 = vmatpush2.bf16.xpose.msra.mxu0 0
    %1482 = vmatprep.subr.bf16.mxu0 0
    %1483 = vmatpush2.bf16.xpose.msra.mxu0 0
    %1484 = vmatprep.subr.bf16.mxu0 0
    %1485 = vmatpush2.bf16.xpose.msra.mxu0 0
    %1486 = vmatprep.subr.bf16.mxu0 0
    %1487 = vmatpush2.bf16.xpose.msra.mxu0 0
    %1488 = vmatprep.subr.bf16.mxu0 0
    %1489 = vmatpush2.bf16.xpose.msra.mxu0 0
    %1490 = vmatprep.mubr.bf16.mxu0 0
    %1491 = vmatmul.mubr.bf16.gmra.mxu0 %v1435
    %v1492 = vpop.f32.mrf.mxu0
    %v1493 = vadd.f32 0.0, %v1492
    %v1494 = vpop.f32.mrf.mxu0
    %v1495 = vpop.f32.mrf.mxu0
    %v1496 = vadd.f32 0.0, %v1495
    %v1497 = vpop.f32.mrf.mxu0
    %1498 = vmatprep.mubr.bf16.mxu0 0
    %1499 = vmatmul.mubr.bf16.gmra.mxu0 %v1438
    %v1500 = vpop.f32.mrf.mxu0
    %v1501 = vadd.f32 0.0, %v1500
    %v1502 = vpop.f32.mrf.mxu0
    %v1503 = vpop.f32.mrf.mxu0
    %v1504 = vadd.f32 0.0, %v1503
    %v1505 = vpop.f32.mrf.mxu0
    %1506 = vmatprep.mubr.bf16.mxu0 0
    %1507 = vmatmul.mubr.bf16.gmra.mxu0 %v1441
    %v1508 = vpop.f32.mrf.mxu0
    %v1509 = vadd.f32 0.0, %v1508
    %v1510 = vpop.f32.mrf.mxu0
    %v1511 = vpop.f32.mrf.mxu0
    %v1512 = vadd.f32 0.0, %v1511
    %v1513 = vpop.f32.mrf.mxu0
    %1514 = vmatprep.mubr.bf16.mxu0 0
    %1515 = vmatmul.mubr.bf16.gmra.mxu0 %v1444
    %v1516 = vpop.f32.mrf.mxu0
    %v1517 = vadd.f32 0.0, %v1516
    %v1518 = vpop.f32.mrf.mxu0
    %v1519 = vpop.f32.mrf.mxu0
    %v1520 = vadd.f32 0.0, %v1519
    %v1521 = vpop.f32.mrf.mxu0
    %1522 = vdwg.mxu0
    %v1523 = vsel %vm1166, %v1226, -inf
    %1524 = vmax.xlane.f32.xlu0 %v1523
    %v1525 = vpop.xlane.xlu0 %1524
    %v1526 = vsel %vm1166, %v1229, -inf
    %1527 = vmax.xlane.f32.xlu0 %v1526
    %v1528 = vpop.xlane.xlu0 %1527
    %v1529 = vsel %vm1166, %v1234, -inf
    %1530 = vmax.xlane.f32.xlu0 %v1529
    %v1531 = vpop.xlane.xlu0 %1530
    %v1532 = vsel %vm1166, %v1237, -inf
    %1533 = vmax.xlane.f32.xlu0 %v1532
    %v1534 = vpop.xlane.xlu0 %1533
    %v1535 = vsel %vm1166, %v1242, -inf
    %1536 = vmax.xlane.f32.xlu0 %v1535
    %v1537 = vpop.xlane.xlu0 %1536
    %v1538 = vsel %vm1166, %v1245, -inf
    %1539 = vmax.xlane.f32.xlu0 %v1538
    %v1540 = vpop.xlane.xlu0 %1539
    %v1541 = vsel %vm1166, %v1250, -inf
    %1542 = vmax.xlane.f32.xlu0 %v1541
    %v1543 = vpop.xlane.xlu0 %1542
    %v1544 = vsel %vm1166, %v1253, -inf
    %1545 = vmax.xlane.f32.xlu0 %v1544
    %v1546 = vpop.xlane.xlu0 %1545
    %v1547 = vsel %vm1166, %v1315, -inf
    %1548 = vmax.xlane.f32.xlu0 %v1547
    %v1549 = vpop.xlane.xlu0 %1548
    %v1550 = vsel %vm1166, %v1318, -inf
    %1551 = vmax.xlane.f32.xlu0 %v1550
    %v1552 = vpop.xlane.xlu0 %1551
    %v1553 = vsel %vm1166, %v1323, -inf
    %1554 = vmax.xlane.f32.xlu0 %v1553
    %v1555 = vpop.xlane.xlu0 %1554
    %v1556 = vsel %vm1166, %v1326, -inf
    %1557 = vmax.xlane.f32.xlu0 %v1556
    %v1558 = vpop.xlane.xlu0 %1557
    %v1559 = vsel %vm1166, %v1331, -inf
    %1560 = vmax.xlane.f32.xlu0 %v1559
    %v1561 = vpop.xlane.xlu0 %1560
    %v1562 = vsel %vm1166, %v1334, -inf
    %1563 = vmax.xlane.f32.xlu0 %v1562
    %v1564 = vpop.xlane.xlu0 %1563
    %v1565 = vsel %vm1166, %v1339, -inf
    %1566 = vmax.xlane.f32.xlu0 %v1565
    %v1567 = vpop.xlane.xlu0 %1566
    %v1568 = vsel %vm1166, %v1342, -inf
    %1569 = vmax.xlane.f32.xlu0 %v1568
    %v1570 = vpop.xlane.xlu0 %1569
    %v1571 = vsel %vm1166, %v1404, -inf
    %1572 = vmax.xlane.f32.xlu0 %v1571
    %v1573 = vpop.xlane.xlu0 %1572
    %v1574 = vsel %vm1166, %v1407, -inf
    %1575 = vmax.xlane.f32.xlu0 %v1574
    %v1576 = vpop.xlane.xlu0 %1575
    %v1577 = vsel %vm1166, %v1412, -inf
    %1578 = vmax.xlane.f32.xlu0 %v1577
    %v1579 = vpop.xlane.xlu0 %1578
    %v1580 = vsel %vm1166, %v1415, -inf
    %1581 = vmax.xlane.f32.xlu0 %v1580
    %v1582 = vpop.xlane.xlu0 %1581
    %v1583 = vsel %vm1166, %v1420, -inf
    %1584 = vmax.xlane.f32.xlu0 %v1583
    %v1585 = vpop.xlane.xlu0 %1584
    %v1586 = vsel %vm1166, %v1423, -inf
    %1587 = vmax.xlane.f32.xlu0 %v1586
    %v1588 = vpop.xlane.xlu0 %1587
    %v1589 = vsel %vm1166, %v1428, -inf
    %1590 = vmax.xlane.f32.xlu0 %v1589
    %v1591 = vpop.xlane.xlu0 %1590
    %v1592 = vsel %vm1166, %v1431, -inf
    %1593 = vmax.xlane.f32.xlu0 %v1592
    %v1594 = vpop.xlane.xlu0 %1593
    %v1595 = vsel %vm1166, %v1493, -inf
    %1596 = vmax.xlane.f32.xlu0 %v1595
    %v1597 = vpop.xlane.xlu0 %1596
    %v1598 = vsel %vm1166, %v1496, -inf
    %1599 = vmax.xlane.f32.xlu0 %v1598
    %v1600 = vpop.xlane.xlu0 %1599
    %v1601 = vsel %vm1166, %v1501, -inf
    %1602 = vmax.xlane.f32.xlu0 %v1601
    %v1603 = vpop.xlane.xlu0 %1602
    %v1604 = vsel %vm1166, %v1504, -inf
    %1605 = vmax.xlane.f32.xlu0 %v1604
    %v1606 = vpop.xlane.xlu0 %1605
    %v1607 = vsel %vm1166, %v1509, -inf
    %1608 = vmax.xlane.f32.xlu0 %v1607
    %v1609 = vpop.xlane.xlu0 %1608
    %v1610 = vsel %vm1166, %v1512, -inf
    %1611 = vmax.xlane.f32.xlu0 %v1610
    %v1612 = vpop.xlane.xlu0 %1611
    %v1613 = vsel %vm1166, %v1517, -inf
    %1614 = vmax.xlane.f32.xlu0 %v1613
    %v1615 = vpop.xlane.xlu0 %1614
    %v1616 = vsel %vm1166, %v1520, -inf
    %1617 = vmax.xlane.f32.xlu0 %v1616
    %v1618 = vpop.xlane.xlu0 %1617
    %v1619 = vsub.f32 %v1226, %v1525
    %v1620 = vsub.f32 %v1229, %v1528
    %v1621 = vsub.f32 %v1234, %v1531
    %v1622 = vsub.f32 %v1237, %v1534
    %v1623 = vsub.f32 %v1242, %v1537
    %v1624 = vsub.f32 %v1245, %v1540
    %v1625 = vsub.f32 %v1250, %v1543
    %v1626 = vsub.f32 %v1253, %v1546
    %v1627 = vsub.f32 %v1315, %v1549
    %v1628 = vsub.f32 %v1318, %v1552
    %v1629 = vsub.f32 %v1323, %v1555
    %v1630 = vsub.f32 %v1326, %v1558
    %v1631 = vsub.f32 %v1331, %v1561
    %v1632 = vsub.f32 %v1334, %v1564
    %v1633 = vsub.f32 %v1339, %v1567
    %v1634 = vsub.f32 %v1342, %v1570
    %v1635 = vsub.f32 %v1404, %v1573
    %v1636 = vsub.f32 %v1407, %v1576
    %v1637 = vsub.f32 %v1412, %v1579
    %v1638 = vsub.f32 %v1415, %v1582
    %v1639 = vsub.f32 %v1420, %v1585
    %v1640 = vsub.f32 %v1423, %v1588
    %v1641 = vsub.f32 %v1428, %v1591
    %v1642 = vsub.f32 %v1431, %v1594
    %v1643 = vsub.f32 %v1493, %v1597
    %v1644 = vsub.f32 %v1496, %v1600
    %v1645 = vsub.f32 %v1501, %v1603
    %v1646 = vsub.f32 %v1504, %v1606
    %v1647 = vsub.f32 %v1509, %v1609
    %v1648 = vsub.f32 %v1512, %v1612
    %v1649 = vsub.f32 %v1517, %v1615
    %v1650 = vsub.f32 %v1520, %v1618
    %v1651 = vmul.f32 %v1619, 1.442695
    %v1652 = vpow.pop %v1651
    %v1653 = vmul.f32 %v1620, 1.442695
    %v1654 = vpow.pop %v1653
    %v1655 = vmul.f32 %v1621, 1.442695
    %v1656 = vpow.pop %v1655
    %v1657 = vmul.f32 %v1622, 1.442695
    %v1658 = vpow.pop %v1657
    %v1659 = vmul.f32 %v1623, 1.442695
    %v1660 = vpow.pop %v1659
    %v1661 = vmul.f32 %v1624, 1.442695
    %v1662 = vpow.pop %v1661
    %v1663 = vmul.f32 %v1625, 1.442695
    %v1664 = vpow.pop %v1663
    %v1665 = vmul.f32 %v1626, 1.442695
    %v1666 = vpow.pop %v1665
    %v1667 = vmul.f32 %v1627, 1.442695
    %v1668 = vpow.pop %v1667
    %v1669 = vmul.f32 %v1628, 1.442695
    %v1670 = vpow.pop %v1669
    %v1671 = vmul.f32 %v1629, 1.442695
    %v1672 = vpow.pop %v1671
    %v1673 = vmul.f32 %v1630, 1.442695
    %v1674 = vpow.pop %v1673
    %v1675 = vmul.f32 %v1631, 1.442695
    %v1676 = vpow.pop %v1675
    %v1677 = vmul.f32 %v1632, 1.442695
    %v1678 = vpow.pop %v1677
    %v1679 = vmul.f32 %v1633, 1.442695
    %v1680 = vpow.pop %v1679
    %v1681 = vmul.f32 %v1634, 1.442695
    %v1682 = vpow.pop %v1681
    %v1683 = vmul.f32 %v1635, 1.442695
    %v1684 = vpow.pop %v1683
    %v1685 = vmul.f32 %v1636, 1.442695
    %v1686 = vpow.pop %v1685
    %v1687 = vmul.f32 %v1637, 1.442695
    %v1688 = vpow.pop %v1687
    %v1689 = vmul.f32 %v1638, 1.442695
    %v1690 = vpow.pop %v1689
    %v1691 = vmul.f32 %v1639, 1.442695
    %v1692 = vpow.pop %v1691
    %v1693 = vmul.f32 %v1640, 1.442695
    %v1694 = vpow.pop %v1693
    %v1695 = vmul.f32 %v1641, 1.442695
    %v1696 = vpow.pop %v1695
    %v1697 = vmul.f32 %v1642, 1.442695
    %v1698 = vpow.pop %v1697
    %v1699 = vmul.f32 %v1643, 1.442695
    %v1700 = vpow.pop %v1699
    %v1701 = vmul.f32 %v1644, 1.442695
    %v1702 = vpow.pop %v1701
    %v1703 = vmul.f32 %v1645, 1.442695
    %v1704 = vpow.pop %v1703
    %v1705 = vmul.f32 %v1646, 1.442695
    %v1706 = vpow.pop %v1705
    %v1707 = vmul.f32 %v1647, 1.442695
    %v1708 = vpow.pop %v1707
    %v1709 = vmul.f32 %v1648, 1.442695
    %v1710 = vpow.pop %v1709
    %v1711 = vmul.f32 %v1649, 1.442695
    %v1712 = vpow.pop %v1711
    %v1713 = vmul.f32 %v1650, 1.442695
    %v1714 = vpow.pop %v1713
    %v1715 = vsel %vm1166, %v1652, 0.0
    %1716 = vadd.xlane.f32.xlu0 %v1715
    %v1717 = vpop.xlane.xlu0 %1716
    %v1718 = vsel %vm1166, %v1654, 0.0
    %1719 = vadd.xlane.f32.xlu0 %v1718
    %v1720 = vpop.xlane.xlu0 %1719
    %v1721 = vsel %vm1166, %v1656, 0.0
    %1722 = vadd.xlane.f32.xlu0 %v1721
    %v1723 = vpop.xlane.xlu0 %1722
    %v1724 = vsel %vm1166, %v1658, 0.0
    %1725 = vadd.xlane.f32.xlu0 %v1724
    %v1726 = vpop.xlane.xlu0 %1725
    %v1727 = vsel %vm1166, %v1660, 0.0
    %1728 = vadd.xlane.f32.xlu0 %v1727
    %v1729 = vpop.xlane.xlu0 %1728
    %v1730 = vsel %vm1166, %v1662, 0.0
    %1731 = vadd.xlane.f32.xlu0 %v1730
    %v1732 = vpop.xlane.xlu0 %1731
    %v1733 = vsel %vm1166, %v1664, 0.0
    %1734 = vadd.xlane.f32.xlu0 %v1733
    %v1735 = vpop.xlane.xlu0 %1734
    %v1736 = vsel %vm1166, %v1666, 0.0
    %1737 = vadd.xlane.f32.xlu0 %v1736
    %v1738 = vpop.xlane.xlu0 %1737
    %v1739 = vsel %vm1166, %v1668, 0.0
    %1740 = vadd.xlane.f32.xlu0 %v1739
    %v1741 = vpop.xlane.xlu0 %1740
    %v1742 = vsel %vm1166, %v1670, 0.0
    %1743 = vadd.xlane.f32.xlu0 %v1742
    %v1744 = vpop.xlane.xlu0 %1743
    %v1745 = vsel %vm1166, %v1672, 0.0
    %1746 = vadd.xlane.f32.xlu0 %v1745
    %v1747 = vpop.xlane.xlu0 %1746
    %v1748 = vsel %vm1166, %v1674, 0.0
    %1749 = vadd.xlane.f32.xlu0 %v1748
    %v1750 = vpop.xlane.xlu0 %1749
    %v1751 = vsel %vm1166, %v1676, 0.0
    %1752 = vadd.xlane.f32.xlu0 %v1751
    %v1753 = vpop.xlane.xlu0 %1752
    %v1754 = vsel %vm1166, %v1678, 0.0
    %1755 = vadd.xlane.f32.xlu0 %v1754
    %v1756 = vpop.xlane.xlu0 %1755
    %v1757 = vsel %vm1166, %v1680, 0.0
    %1758 = vadd.xlane.f32.xlu0 %v1757
    %v1759 = vpop.xlane.xlu0 %1758
    %v1760 = vsel %vm1166, %v1682, 0.0
    %1761 = vadd.xlane.f32.xlu0 %v1760
    %v1762 = vpop.xlane.xlu0 %1761
    %v1763 = vsel %vm1166, %v1684, 0.0
    %1764 = vadd.xlane.f32.xlu0 %v1763
    %v1765 = vpop.xlane.xlu0 %1764
    %v1766 = vsel %vm1166, %v1686, 0.0
    %1767 = vadd.xlane.f32.xlu0 %v1766
    %v1768 = vpop.xlane.xlu0 %1767
    %v1769 = vsel %vm1166, %v1688, 0.0
    %1770 = vadd.xlane.f32.xlu0 %v1769
    %v1771 = vpop.xlane.xlu0 %1770
    %v1772 = vsel %vm1166, %v1690, 0.0
    %1773 = vadd.xlane.f32.xlu0 %v1772
    %v1774 = vpop.xlane.xlu0 %1773
    %v1775 = vsel %vm1166, %v1692, 0.0
    %1776 = vadd.xlane.f32.xlu0 %v1775
    %v1777 = vpop.xlane.xlu0 %1776
    %v1778 = vsel %vm1166, %v1694, 0.0
    %1779 = vadd.xlane.f32.xlu0 %v1778
    %v1780 = vpop.xlane.xlu0 %1779
    %v1781 = vsel %vm1166, %v1696, 0.0
    %1782 = vadd.xlane.f32.xlu0 %v1781
    %v1783 = vpop.xlane.xlu0 %1782
    %v1784 = vsel %vm1166, %v1698, 0.0
    %1785 = vadd.xlane.f32.xlu0 %v1784
    %v1786 = vpop.xlane.xlu0 %1785
    %v1787 = vsel %vm1166, %v1700, 0.0
    %1788 = vadd.xlane.f32.xlu0 %v1787
    %v1789 = vpop.xlane.xlu0 %1788
    %v1790 = vsel %vm1166, %v1702, 0.0
    %1791 = vadd.xlane.f32.xlu0 %v1790
    %v1792 = vpop.xlane.xlu0 %1791
    %v1793 = vsel %vm1166, %v1704, 0.0
    %1794 = vadd.xlane.f32.xlu0 %v1793
    %v1795 = vpop.xlane.xlu0 %1794
    %v1796 = vsel %vm1166, %v1706, 0.0
    %1797 = vadd.xlane.f32.xlu0 %v1796
    %v1798 = vpop.xlane.xlu0 %1797
    %v1799 = vsel %vm1166, %v1708, 0.0
    %1800 = vadd.xlane.f32.xlu0 %v1799
    %v1801 = vpop.xlane.xlu0 %1800
    %v1802 = vsel %vm1166, %v1710, 0.0
    %1803 = vadd.xlane.f32.xlu0 %v1802
    %v1804 = vpop.xlane.xlu0 %1803
    %v1805 = vsel %vm1166, %v1712, 0.0
    %1806 = vadd.xlane.f32.xlu0 %v1805
    %v1807 = vpop.xlane.xlu0 %1806
    %v1808 = vsel %vm1166, %v1714, 0.0
    %1809 = vadd.xlane.f32.xlu0 %v1808
    %v1810 = vpop.xlane.xlu0 %1809
    %v1811 = vrcp.pop %v1717
    %v1812 = vrcp.pop %v1720
    %v1813 = vrcp.pop %v1723
    %v1814 = vrcp.pop %v1726
    %v1815 = vrcp.pop %v1729
    %v1816 = vrcp.pop %v1732
    %v1817 = vrcp.pop %v1735
    %v1818 = vrcp.pop %v1738
    %v1819 = vrcp.pop %v1741
    %v1820 = vrcp.pop %v1744
    %v1821 = vrcp.pop %v1747
    %v1822 = vrcp.pop %v1750
    %v1823 = vrcp.pop %v1753
    %v1824 = vrcp.pop %v1756
    %v1825 = vrcp.pop %v1759
    %v1826 = vrcp.pop %v1762
    %v1827 = vrcp.pop %v1765
    %v1828 = vrcp.pop %v1768
    %v1829 = vrcp.pop %v1771
    %v1830 = vrcp.pop %v1774
    %v1831 = vrcp.pop %v1777
    %v1832 = vrcp.pop %v1780
    %v1833 = vrcp.pop %v1783
    %v1834 = vrcp.pop %v1786
    %v1835 = vrcp.pop %v1789
    %v1836 = vrcp.pop %v1792
    %v1837 = vrcp.pop %v1795
    %v1838 = vrcp.pop %v1798
    %v1839 = vrcp.pop %v1801
    %v1840 = vrcp.pop %v1804
    %v1841 = vrcp.pop %v1807
    %v1842 = vrcp.pop %v1810
    %v1843 = vmul.f32 %v1652, %v1811
    %v1844 = vmul.f32 %v1654, %v1812
    %v1845 = vmul.f32 %v1656, %v1813
    %v1846 = vmul.f32 %v1658, %v1814
    %v1847 = vmul.f32 %v1660, %v1815
    %v1848 = vmul.f32 %v1662, %v1816
    %v1849 = vmul.f32 %v1664, %v1817
    %v1850 = vmul.f32 %v1666, %v1818
    %v1851 = vmul.f32 %v1668, %v1819
    %v1852 = vmul.f32 %v1670, %v1820
    %v1853 = vmul.f32 %v1672, %v1821
    %v1854 = vmul.f32 %v1674, %v1822
    %v1855 = vmul.f32 %v1676, %v1823
    %v1856 = vmul.f32 %v1678, %v1824
    %v1857 = vmul.f32 %v1680, %v1825
    %v1858 = vmul.f32 %v1682, %v1826
    %v1859 = vmul.f32 %v1684, %v1827
    %v1860 = vmul.f32 %v1686, %v1828
    %v1861 = vmul.f32 %v1688, %v1829
    %v1862 = vmul.f32 %v1690, %v1830
    %v1863 = vmul.f32 %v1692, %v1831
    %v1864 = vmul.f32 %v1694, %v1832
    %v1865 = vmul.f32 %v1696, %v1833
    %v1866 = vmul.f32 %v1698, %v1834
    %v1867 = vmul.f32 %v1700, %v1835
    %v1868 = vmul.f32 %v1702, %v1836
    %v1869 = vmul.f32 %v1704, %v1837
    %v1870 = vmul.f32 %v1706, %v1838
    %v1871 = vmul.f32 %v1708, %v1839
    %v1872 = vmul.f32 %v1710, %v1840
    %v1873 = vmul.f32 %v1712, %v1841
    %v1874 = vmul.f32 %v1714, %v1842
    %v1875 = vpack.c.bf16 %v1844, %v1843
    %v1876 = vpack.c.bf16 %v1846, %v1845
    %v1877 = vpack.c.bf16 %v1848, %v1847
    %v1878 = vpack.c.bf16 %v1850, %v1849
    %v1879 = vpack.c.bf16 %v1852, %v1851
    %v1880 = vpack.c.bf16 %v1854, %v1853
    %v1881 = vpack.c.bf16 %v1856, %v1855
    %v1882 = vpack.c.bf16 %v1858, %v1857
    %v1883 = vpack.c.bf16 %v1860, %v1859
    %v1884 = vpack.c.bf16 %v1862, %v1861
    %v1885 = vpack.c.bf16 %v1864, %v1863
    %v1886 = vpack.c.bf16 %v1866, %v1865
    %v1887 = vpack.c.bf16 %v1868, %v1867
    %v1888 = vpack.c.bf16 %v1870, %v1869
    %v1889 = vpack.c.bf16 %v1872, %v1871
    %v1890 = vpack.c.bf16 %v1874, %v1873
    %v1892 = vsel %vm1166, %v1875, 0
    %v1895 = vsel %vm1166, %v1876, 0
    %v1898 = vsel %vm1166, %v1877, 0
    %v1901 = vsel %vm1166, %v1878, 0
    %1903 = vmatprep.subr.bf16.mxu0 0
    %1904 = vmatpush1.bf16.msra.mxu0 0
    %1905 = vmatprep.subr.bf16.mxu0 0
    %1906 = vmatpush1.bf16.msra.mxu0 0
    %1907 = vmatprep.subr.bf16.mxu0 0
    %1908 = vmatpush1.bf16.msra.mxu0 0
    %1909 = vmatprep.subr.bf16.mxu0 0
    %1910 = vmatpush1.bf16.msra.mxu0 0
    %1911 = vmatprep.subr.bf16.mxu0 0
    %1912 = vmatpush1.bf16.msra.mxu0 %v1153
    %1913 = vmatprep.subr.bf16.mxu0 0
    %1914 = vmatpush1.bf16.msra.mxu0 %v1152
    %1915 = vmatprep.subr.bf16.mxu0 0
    %1916 = vmatpush1.bf16.msra.mxu0 %v1151
    %1917 = vmatprep.subr.bf16.mxu0 0
    %1918 = vmatpush1.bf16.msra.mxu0 %v1150
    %1919 = vmatprep.subr.bf16.mxu0 0
    %1920 = vmatpush2.bf16.msra.mxu0 0
    %1921 = vmatprep.subr.bf16.mxu0 0
    %1922 = vmatpush2.bf16.msra.mxu0 0
    %1923 = vmatprep.subr.bf16.mxu0 0
    %1924 = vmatpush2.bf16.msra.mxu0 0
    %1925 = vmatprep.subr.bf16.mxu0 0
    %1926 = vmatpush2.bf16.msra.mxu0 0
    %1927 = vmatprep.subr.bf16.mxu0 0
    %1928 = vmatpush2.bf16.msra.mxu0 0
    %1929 = vmatprep.subr.bf16.mxu0 0
    %1930 = vmatpush2.bf16.msra.mxu0 0
    %1931 = vmatprep.subr.bf16.mxu0 0
    %1932 = vmatpush2.bf16.msra.mxu0 0
    %1933 = vmatprep.subr.bf16.mxu0 0
    %1934 = vmatpush2.bf16.msra.mxu0 0
    %1935 = vmatprep.mubr.bf16.mxu0 0
    %1936 = vmatmul.mubr.bf16.gmra.mxu0 %v1892
    %v1937 = vpop.f32.mrf.mxu0
    %v1938 = vadd.f32 0.0, %v1937
    %v1939 = vpop.f32.mrf.mxu0
    %v1940 = vpop.f32.mrf.mxu0
    %v1941 = vadd.f32 0.0, %v1940
    %v1942 = vpop.f32.mrf.mxu0
    %1943 = vmatprep.mubr.bf16.mxu0 0
    %1944 = vmatmul.mubr.bf16.gmra.mxu0 %v1895
    %v1945 = vpop.f32.mrf.mxu0
    %v1946 = vadd.f32 0.0, %v1945
    %v1947 = vpop.f32.mrf.mxu0
    %v1948 = vpop.f32.mrf.mxu0
    %v1949 = vadd.f32 0.0, %v1948
    %v1950 = vpop.f32.mrf.mxu0
    %1951 = vmatprep.mubr.bf16.mxu0 0
    %1952 = vmatmul.mubr.bf16.gmra.mxu0 %v1898
    %v1953 = vpop.f32.mrf.mxu0
    %v1954 = vadd.f32 0.0, %v1953
    %v1955 = vpop.f32.mrf.mxu0
    %v1956 = vpop.f32.mrf.mxu0
    %v1957 = vadd.f32 0.0, %v1956
    %v1958 = vpop.f32.mrf.mxu0
    %1959 = vmatprep.mubr.bf16.mxu0 0
    %1960 = vmatmul.mubr.bf16.gmra.mxu0 %v1901
    %v1961 = vpop.f32.mrf.mxu0
    %v1962 = vadd.f32 0.0, %v1961
    %v1963 = vpop.f32.mrf.mxu0
    %v1964 = vpop.f32.mrf.mxu0
    %v1965 = vadd.f32 0.0, %v1964
    %v1966 = vpop.f32.mrf.mxu0
    %1967 = vdwg.mxu0
    %v1969 = vsel %vm1166, %v1879, 0
    %v1972 = vsel %vm1166, %v1880, 0
    %v1975 = vsel %vm1166, %v1881, 0
    %v1978 = vsel %vm1166, %v1882, 0
    %1980 = vmatprep.subr.bf16.mxu0 0
    %1981 = vmatpush1.bf16.msra.mxu0 0
    %1982 = vmatprep.subr.bf16.mxu0 0
    %1983 = vmatpush1.bf16.msra.mxu0 0
    %1984 = vmatprep.subr.bf16.mxu0 0
    %1985 = vmatpush1.bf16.msra.mxu0 0
    %1986 = vmatprep.subr.bf16.mxu0 0
    %1987 = vmatpush1.bf16.msra.mxu0 0
    %1988 = vmatprep.subr.bf16.mxu0 0
    %1989 = vmatpush1.bf16.msra.mxu0 %v1157
    %1990 = vmatprep.subr.bf16.mxu0 0
    %1991 = vmatpush1.bf16.msra.mxu0 %v1156
    %1992 = vmatprep.subr.bf16.mxu0 0
    %1993 = vmatpush1.bf16.msra.mxu0 %v1155
    %1994 = vmatprep.subr.bf16.mxu0 0
    %1995 = vmatpush1.bf16.msra.mxu0 %v1154
    %1996 = vmatprep.subr.bf16.mxu0 0
    %1997 = vmatpush2.bf16.msra.mxu0 0
    %1998 = vmatprep.subr.bf16.mxu0 0
    %1999 = vmatpush2.bf16.msra.mxu0 0
    %2000 = vmatprep.subr.bf16.mxu0 0
    %2001 = vmatpush2.bf16.msra.mxu0 0
    %2002 = vmatprep.subr.bf16.mxu0 0
    %2003 = vmatpush2.bf16.msra.mxu0 0
    %2004 = vmatprep.subr.bf16.mxu0 0
    %2005 = vmatpush2.bf16.msra.mxu0 0
    %2006 = vmatprep.subr.bf16.mxu0 0
    %2007 = vmatpush2.bf16.msra.mxu0 0
    %2008 = vmatprep.subr.bf16.mxu0 0
    %2009 = vmatpush2.bf16.msra.mxu0 0
    %2010 = vmatprep.subr.bf16.mxu0 0
    %2011 = vmatpush2.bf16.msra.mxu0 0
    %2012 = vmatprep.mubr.bf16.mxu0 0
    %2013 = vmatmul.mubr.bf16.gmra.mxu0 %v1969
    %v2014 = vpop.f32.mrf.mxu0
    %v2015 = vadd.f32 0.0, %v2014
    %v2016 = vpop.f32.mrf.mxu0
    %v2017 = vpop.f32.mrf.mxu0
    %v2018 = vadd.f32 0.0, %v2017
    %v2019 = vpop.f32.mrf.mxu0
    %2020 = vmatprep.mubr.bf16.mxu0 0
    %2021 = vmatmul.mubr.bf16.gmra.mxu0 %v1972
    %v2022 = vpop.f32.mrf.mxu0
    %v2023 = vadd.f32 0.0, %v2022
    %v2024 = vpop.f32.mrf.mxu0
    %v2025 = vpop.f32.mrf.mxu0
    %v2026 = vadd.f32 0.0, %v2025
    %v2027 = vpop.f32.mrf.mxu0
    %2028 = vmatprep.mubr.bf16.mxu0 0
    %2029 = vmatmul.mubr.bf16.gmra.mxu0 %v1975
    %v2030 = vpop.f32.mrf.mxu0
    %v2031 = vadd.f32 0.0, %v2030
    %v2032 = vpop.f32.mrf.mxu0
    %v2033 = vpop.f32.mrf.mxu0
    %v2034 = vadd.f32 0.0, %v2033
    %v2035 = vpop.f32.mrf.mxu0
    %2036 = vmatprep.mubr.bf16.mxu0 0
    %2037 = vmatmul.mubr.bf16.gmra.mxu0 %v1978
    %v2038 = vpop.f32.mrf.mxu0
    %v2039 = vadd.f32 0.0, %v2038
    %v2040 = vpop.f32.mrf.mxu0
    %v2041 = vpop.f32.mrf.mxu0
    %v2042 = vadd.f32 0.0, %v2041
    %v2043 = vpop.f32.mrf.mxu0
    %2044 = vdwg.mxu0
    %v2046 = vsel %vm1166, %v1883, 0
    %v2049 = vsel %vm1166, %v1884, 0
    %v2052 = vsel %vm1166, %v1885, 0
    %v2055 = vsel %vm1166, %v1886, 0
    %2057 = vmatprep.subr.bf16.mxu0 0
    %2058 = vmatpush1.bf16.msra.mxu0 0
    %2059 = vmatprep.subr.bf16.mxu0 0
    %2060 = vmatpush1.bf16.msra.mxu0 0
    %2061 = vmatprep.subr.bf16.mxu0 0
    %2062 = vmatpush1.bf16.msra.mxu0 0
    %2063 = vmatprep.subr.bf16.mxu0 0
    %2064 = vmatpush1.bf16.msra.mxu0 0
    %2065 = vmatprep.subr.bf16.mxu0 0
    %2066 = vmatpush1.bf16.msra.mxu0 %v1161
    %2067 = vmatprep.subr.bf16.mxu0 0
    %2068 = vmatpush1.bf16.msra.mxu0 %v1160
    %2069 = vmatprep.subr.bf16.mxu0 0
    %2070 = vmatpush1.bf16.msra.mxu0 %v1159
    %2071 = vmatprep.subr.bf16.mxu0 0
    %2072 = vmatpush1.bf16.msra.mxu0 %v1158
    %2073 = vmatprep.subr.bf16.mxu0 0
    %2074 = vmatpush2.bf16.msra.mxu0 0
    %2075 = vmatprep.subr.bf16.mxu0 0
    %2076 = vmatpush2.bf16.msra.mxu0 0
    %2077 = vmatprep.subr.bf16.mxu0 0
    %2078 = vmatpush2.bf16.msra.mxu0 0
    %2079 = vmatprep.subr.bf16.mxu0 0
    %2080 = vmatpush2.bf16.msra.mxu0 0
    %2081 = vmatprep.subr.bf16.mxu0 0
    %2082 = vmatpush2.bf16.msra.mxu0 0
    %2083 = vmatprep.subr.bf16.mxu0 0
    %2084 = vmatpush2.bf16.msra.mxu0 0
    %2085 = vmatprep.subr.bf16.mxu0 0
    %2086 = vmatpush2.bf16.msra.mxu0 0
    %2087 = vmatprep.subr.bf16.mxu0 0
    %2088 = vmatpush2.bf16.msra.mxu0 0
    %2089 = vmatprep.mubr.bf16.mxu0 0
    %2090 = vmatmul.mubr.bf16.gmra.mxu0 %v2046
    %v2091 = vpop.f32.mrf.mxu0
    %v2092 = vadd.f32 0.0, %v2091
    %v2093 = vpop.f32.mrf.mxu0
    %v2094 = vpop.f32.mrf.mxu0
    %v2095 = vadd.f32 0.0, %v2094
    %v2096 = vpop.f32.mrf.mxu0
    %2097 = vmatprep.mubr.bf16.mxu0 0
    %2098 = vmatmul.mubr.bf16.gmra.mxu0 %v2049
    %v2099 = vpop.f32.mrf.mxu0
    %v2100 = vadd.f32 0.0, %v2099
    %v2101 = vpop.f32.mrf.mxu0
    %v2102 = vpop.f32.mrf.mxu0
    %v2103 = vadd.f32 0.0, %v2102
    %v2104 = vpop.f32.mrf.mxu0
    %2105 = vmatprep.mubr.bf16.mxu0 0
    %2106 = vmatmul.mubr.bf16.gmra.mxu0 %v2052
    %v2107 = vpop.f32.mrf.mxu0
    %v2108 = vadd.f32 0.0, %v2107
    %v2109 = vpop.f32.mrf.mxu0
    %v2110 = vpop.f32.mrf.mxu0
    %v2111 = vadd.f32 0.0, %v2110
    %v2112 = vpop.f32.mrf.mxu0
    %2113 = vmatprep.mubr.bf16.mxu0 0
    %2114 = vmatmul.mubr.bf16.gmra.mxu0 %v2055
    %v2115 = vpop.f32.mrf.mxu0
    %v2116 = vadd.f32 0.0, %v2115
    %v2117 = vpop.f32.mrf.mxu0
    %v2118 = vpop.f32.mrf.mxu0
    %v2119 = vadd.f32 0.0, %v2118
    %v2120 = vpop.f32.mrf.mxu0
    %2121 = vdwg.mxu0
    %v2123 = vsel %vm1166, %v1887, 0
    %v2126 = vsel %vm1166, %v1888, 0
    %v2129 = vsel %vm1166, %v1889, 0
    %v2132 = vsel %vm1166, %v1890, 0
    %2134 = vmatprep.subr.bf16.mxu0 0
    %2135 = vmatpush1.bf16.msra.mxu0 0
    %2136 = vmatprep.subr.bf16.mxu0 0
    %2137 = vmatpush1.bf16.msra.mxu0 0
    %2138 = vmatprep.subr.bf16.mxu0 0
    %2139 = vmatpush1.bf16.msra.mxu0 0
    %2140 = vmatprep.subr.bf16.mxu0 0
    %2141 = vmatpush1.bf16.msra.mxu0 0
    %2142 = vmatprep.subr.bf16.mxu0 0
    %2143 = vmatpush1.bf16.msra.mxu0 %v1165
    %2144 = vmatprep.subr.bf16.mxu0 0
    %2145 = vmatpush1.bf16.msra.mxu0 %v1164
    %2146 = vmatprep.subr.bf16.mxu0 0
    %2147 = vmatpush1.bf16.msra.mxu0 %v1163
    %2148 = vmatprep.subr.bf16.mxu0 0
    %2149 = vmatpush1.bf16.msra.mxu0 %v1162
    %2150 = vmatprep.subr.bf16.mxu0 0
    %2151 = vmatpush2.bf16.msra.mxu0 0
    %2152 = vmatprep.subr.bf16.mxu0 0
    %2153 = vmatpush2.bf16.msra.mxu0 0
    %2154 = vmatprep.subr.bf16.mxu0 0
    %2155 = vmatpush2.bf16.msra.mxu0 0
    %2156 = vmatprep.subr.bf16.mxu0 0
    %2157 = vmatpush2.bf16.msra.mxu0 0
    %2158 = vmatprep.subr.bf16.mxu0 0
    %2159 = vmatpush2.bf16.msra.mxu0 0
    %2160 = vmatprep.subr.bf16.mxu0 0
    %2161 = vmatpush2.bf16.msra.mxu0 0
    %2162 = vmatprep.subr.bf16.mxu0 0
    %2163 = vmatpush2.bf16.msra.mxu0 0
    %2164 = vmatprep.subr.bf16.mxu0 0
    %2165 = vmatpush2.bf16.msra.mxu0 0
    %2166 = vmatprep.mubr.bf16.mxu0 0
    %2167 = vmatmul.mubr.bf16.gmra.mxu0 %v2123
    %v2168 = vpop.f32.mrf.mxu0
    %v2169 = vadd.f32 0.0, %v2168
    %v2170 = vpop.f32.mrf.mxu0
    %v2171 = vpop.f32.mrf.mxu0
    %v2172 = vadd.f32 0.0, %v2171
    %v2173 = vpop.f32.mrf.mxu0
    %2174 = vmatprep.mubr.bf16.mxu0 0
    %2175 = vmatmul.mubr.bf16.gmra.mxu0 %v2126
    %v2176 = vpop.f32.mrf.mxu0
    %v2177 = vadd.f32 0.0, %v2176
    %v2178 = vpop.f32.mrf.mxu0
    %v2179 = vpop.f32.mrf.mxu0
    %v2180 = vadd.f32 0.0, %v2179
    %v2181 = vpop.f32.mrf.mxu0
    %2182 = vmatprep.mubr.bf16.mxu0 0
    %2183 = vmatmul.mubr.bf16.gmra.mxu0 %v2129
    %v2184 = vpop.f32.mrf.mxu0
    %v2185 = vadd.f32 0.0, %v2184
    %v2186 = vpop.f32.mrf.mxu0
    %v2187 = vpop.f32.mrf.mxu0
    %v2188 = vadd.f32 0.0, %v2187
    %v2189 = vpop.f32.mrf.mxu0
    %2190 = vmatprep.mubr.bf16.mxu0 0
    %2191 = vmatmul.mubr.bf16.gmra.mxu0 %v2132
    %v2192 = vpop.f32.mrf.mxu0
    %v2193 = vadd.f32 0.0, %v2192
    %v2194 = vpop.f32.mrf.mxu0
    %v2195 = vpop.f32.mrf.mxu0
    %v2196 = vadd.f32 0.0, %v2195
    %v2197 = vpop.f32.mrf.mxu0
    %2198 = vdwg.mxu0
    %2215 = vrot.lane.b32.xlu0 %v2092, 64
    %v2216 = vpop.permute.xlu0 %2215
    %2217 = vrot.lane.b32.xlu0 %v2095, 64
    %v2218 = vpop.permute.xlu0 %2217
    %2219 = vrot.lane.b32.xlu0 %v2100, 64
    %v2220 = vpop.permute.xlu0 %2219
    %2221 = vrot.lane.b32.xlu0 %v2103, 64
    %v2222 = vpop.permute.xlu0 %2221
    %2223 = vrot.lane.b32.xlu0 %v2108, 64
    %v2224 = vpop.permute.xlu0 %2223
    %2225 = vrot.lane.b32.xlu0 %v2111, 64
    %v2226 = vpop.permute.xlu0 %2225
    %2227 = vrot.lane.b32.xlu0 %v2116, 64
    %v2228 = vpop.permute.xlu0 %2227
    %2229 = vrot.lane.b32.xlu0 %v2119, 64
    %v2230 = vpop.permute.xlu0 %2229
    %2231 = vrot.lane.b32.xlu0 %v2169, 64
    %v2232 = vpop.permute.xlu0 %2231
    %2233 = vrot.lane.b32.xlu0 %v2172, 64
    %v2234 = vpop.permute.xlu0 %2233
    %2235 = vrot.lane.b32.xlu0 %v2177, 64
    %v2236 = vpop.permute.xlu0 %2235
    %2237 = vrot.lane.b32.xlu0 %v2180, 64
    %v2238 = vpop.permute.xlu0 %2237
    %2239 = vrot.lane.b32.xlu0 %v2185, 64
    %v2240 = vpop.permute.xlu0 %2239
    %2241 = vrot.lane.b32.xlu0 %v2188, 64
    %v2242 = vpop.permute.xlu0 %2241
    %2243 = vrot.lane.b32.xlu0 %v2193, 64
    %v2244 = vpop.permute.xlu0 %2243
    %2245 = vrot.lane.b32.xlu0 %v2196, 64
    %v2246 = vpop.permute.xlu0 %2245
    %v2263 = vsel %vm1166, %v1938, %v2216
    %v2264 = vsel %vm1166, %v1941, %v2218
    %v2265 = vsel %vm1166, %v1946, %v2220
    %v2266 = vsel %vm1166, %v1949, %v2222
    %v2267 = vsel %vm1166, %v1954, %v2224
    %v2268 = vsel %vm1166, %v1957, %v2226
    %v2269 = vsel %vm1166, %v1962, %v2228
    %v2270 = vsel %vm1166, %v1965, %v2230
    %v2271 = vsel %vm1166, %v2015, %v2232
    %v2272 = vsel %vm1166, %v2018, %v2234
    %v2273 = vsel %vm1166, %v2023, %v2236
    %v2274 = vsel %vm1166, %v2026, %v2238
    %v2275 = vsel %vm1166, %v2031, %v2240
    %v2276 = vsel %vm1166, %v2034, %v2242
    %v2277 = vsel %vm1166, %v2039, %v2244
    %v2278 = vsel %vm1166, %v2042, %v2246
    %v2279 = vpack.c.bf16 %v2264, %v2263
    %v2280 = vpack.c.bf16 %v2266, %v2265
    %v2281 = vpack.c.bf16 %v2268, %v2267
    %v2282 = vpack.c.bf16 %v2270, %v2269
    %v2283 = vpack.c.bf16 %v2272, %v2271
    %v2284 = vpack.c.bf16 %v2274, %v2273
    %v2285 = vpack.c.bf16 %v2276, %v2275
    %v2286 = vpack.c.bf16 %v2278, %v2277
    %v2287 = vld [vmem:[#allocation4] sm:$0xf]
    %v2288 = vld [vmem:[#allocation4 + $0x4] sm:$0xf]
    %v2289 = vld [vmem:[#allocation4 + $0x8] sm:$0xf]
    %v2290 = vld [vmem:[#allocation4 + $0xc] sm:$0xf]
    %v2291 = vld [vmem:[#allocation4 + $0x10] sm:$0xf]
    %v2292 = vld [vmem:[#allocation4 + $0x14] sm:$0xf]
    %v2293 = vld [vmem:[#allocation4 + $0x18] sm:$0xf]
    %v2294 = vld [vmem:[#allocation4 + $0x1c] sm:$0xf]
    %v2295 = vld [vmem:[#allocation4 + $0x20] sm:$0xf]
    %v2296 = vld [vmem:[#allocation4 + $0x24] sm:$0xf]
    %v2297 = vld [vmem:[#allocation4 + $0x28] sm:$0xf]
    %v2298 = vld [vmem:[#allocation4 + $0x2c] sm:$0xf]
    %v2299 = vld [vmem:[#allocation4 + $0x30] sm:$0xf]
    %v2300 = vld [vmem:[#allocation4 + $0x34] sm:$0xf]
    %v2301 = vld [vmem:[#allocation4 + $0x38] sm:$0xf]
    %v2302 = vld [vmem:[#allocation4 + $0x3c] sm:$0xf]
    %v2319 = vunpack.c.l.b16 %v2287
    %v2320 = vunpack.c.l.b16 %v2288
    %v2321 = vunpack.c.l.b16 %v2289
    %v2322 = vunpack.c.l.b16 %v2290
    %v2323 = vunpack.c.l.b16 %v2291
    %v2324 = vunpack.c.l.b16 %v2292
    %v2325 = vunpack.c.l.b16 %v2293
    %v2326 = vunpack.c.l.b16 %v2294
    %v2327 = vunpack.c.l.b16 %v2295
    %v2328 = vunpack.c.l.b16 %v2296
    %v2329 = vunpack.c.l.b16 %v2297
    %v2330 = vunpack.c.l.b16 %v2298
    %v2331 = vunpack.c.l.b16 %v2299
    %v2332 = vunpack.c.l.b16 %v2300
    %v2333 = vunpack.c.l.b16 %v2301
    %v2334 = vunpack.c.l.b16 %v2302
    %v2335 = vpack.c.b16 %v2320, %v2319
    %v2336 = vpack.c.b16 %v2322, %v2321
    %v2337 = vpack.c.b16 %v2324, %v2323
    %v2338 = vpack.c.b16 %v2326, %v2325
    %v2339 = vpack.c.b16 %v2328, %v2327
    %v2340 = vpack.c.b16 %v2330, %v2329
    %v2341 = vpack.c.b16 %v2332, %v2331
    %v2342 = vpack.c.b16 %v2334, %v2333
    %2351 = vmatprep.subr.bf16.mxu0 0
    %2352 = vmatpush1.bf16.msra.mxu0 %v2342
    %2353 = vmatprep.subr.bf16.mxu0 0
    %2354 = vmatpush1.bf16.msra.mxu0 %v2341
    %2355 = vmatprep.subr.bf16.mxu0 0
    %2356 = vmatpush1.bf16.msra.mxu0 %v2340
    %2357 = vmatprep.subr.bf16.mxu0 0
    %2358 = vmatpush1.bf16.msra.mxu0 %v2339
    %2359 = vmatprep.subr.bf16.mxu0 0
    %2360 = vmatpush1.bf16.msra.mxu0 %v2338
    %2361 = vmatprep.subr.bf16.mxu0 0
    %2362 = vmatpush1.bf16.msra.mxu0 %v2337
    %2363 = vmatprep.subr.bf16.mxu0 0
    %2364 = vmatpush1.bf16.msra.mxu0 %v2336
    %2365 = vmatprep.subr.bf16.mxu0 0
    %2366 = vmatpush1.bf16.msra.mxu0 %v2335
    %2367 = vmatprep.subr.bf16.mxu0 0
    %2368 = vmatpush2.bf16.msra.mxu0 0
    %2369 = vmatprep.subr.bf16.mxu0 0
    %2370 = vmatpush2.bf16.msra.mxu0 0
    %2371 = vmatprep.subr.bf16.mxu0 0
    %2372 = vmatpush2.bf16.msra.mxu0 0
    %2373 = vmatprep.subr.bf16.mxu0 0
    %2374 = vmatpush2.bf16.msra.mxu0 0
    %2375 = vmatprep.subr.bf16.mxu0 0
    %2376 = vmatpush2.bf16.msra.mxu0 0
    %2377 = vmatprep.subr.bf16.mxu0 0
    %2378 = vmatpush2.bf16.msra.mxu0 0
    %2379 = vmatprep.subr.bf16.mxu0 0
    %2380 = vmatpush2.bf16.msra.mxu0 0
    %2381 = vmatprep.subr.bf16.mxu0 0
    %2382 = vmatpush2.bf16.msra.mxu0 0
    %2383 = vmatprep.mubr.bf16.mxu0 0
    %2384 = vmatmul.mubr.bf16.gmra.mxu0 %v2279
    %v2385 = vpop.f32.mrf.mxu0
    %v2386 = vadd.f32 0.0, %v2385
    %v2387 = vpop.f32.mrf.mxu0
    %v2388 = vpop.f32.mrf.mxu0
    %v2389 = vadd.f32 0.0, %v2388
    %v2390 = vpop.f32.mrf.mxu0
    %2391 = vmatprep.mubr.bf16.mxu0 0
    %2392 = vmatmul.mubr.bf16.gmra.mxu0 %v2280
    %v2393 = vpop.f32.mrf.mxu0
    %v2394 = vadd.f32 0.0, %v2393
    %v2395 = vpop.f32.mrf.mxu0
    %v2396 = vpop.f32.mrf.mxu0
    %v2397 = vadd.f32 0.0, %v2396
    %v2398 = vpop.f32.mrf.mxu0
    %2399 = vmatprep.mubr.bf16.mxu0 0
    %2400 = vmatmul.mubr.bf16.gmra.mxu0 %v2281
    %v2401 = vpop.f32.mrf.mxu0
    %v2402 = vadd.f32 0.0, %v2401
    %v2403 = vpop.f32.mrf.mxu0
    %v2404 = vpop.f32.mrf.mxu0
    %v2405 = vadd.f32 0.0, %v2404
    %v2406 = vpop.f32.mrf.mxu0
    %2407 = vmatprep.mubr.bf16.mxu0 0
    %2408 = vmatmul.mubr.bf16.gmra.mxu0 %v2282
    %v2409 = vpop.f32.mrf.mxu0
    %v2410 = vadd.f32 0.0, %v2409
    %v2411 = vpop.f32.mrf.mxu0
    %v2412 = vpop.f32.mrf.mxu0
    %v2413 = vadd.f32 0.0, %v2412
    %v2414 = vpop.f32.mrf.mxu0
    %2415 = vmatprep.mubr.bf16.mxu0 0
    %2416 = vmatmul.mubr.bf16.gmra.mxu0 %v2283
    %v2417 = vpop.f32.mrf.mxu0
    %v2418 = vadd.f32 0.0, %v2417
    %v2419 = vpop.f32.mrf.mxu0
    %v2420 = vpop.f32.mrf.mxu0
    %v2421 = vadd.f32 0.0, %v2420
    %v2422 = vpop.f32.mrf.mxu0
    %2423 = vmatprep.mubr.bf16.mxu0 0
    %2424 = vmatmul.mubr.bf16.gmra.mxu0 %v2284
    %v2425 = vpop.f32.mrf.mxu0
    %v2426 = vadd.f32 0.0, %v2425
    %v2427 = vpop.f32.mrf.mxu0
    %v2428 = vpop.f32.mrf.mxu0
    %v2429 = vadd.f32 0.0, %v2428
    %v2430 = vpop.f32.mrf.mxu0
    %2431 = vmatprep.mubr.bf16.mxu0 0
    %2432 = vmatmul.mubr.bf16.gmra.mxu0 %v2285
    %v2433 = vpop.f32.mrf.mxu0
    %v2434 = vadd.f32 0.0, %v2433
    %v2435 = vpop.f32.mrf.mxu0
    %v2436 = vpop.f32.mrf.mxu0
    %v2437 = vadd.f32 0.0, %v2436
    %v2438 = vpop.f32.mrf.mxu0
    %2439 = vmatprep.mubr.bf16.mxu0 0
    %2440 = vmatmul.mubr.bf16.gmra.mxu0 %v2286
    %v2441 = vpop.f32.mrf.mxu0
    %v2442 = vadd.f32 0.0, %v2441
    %v2443 = vpop.f32.mrf.mxu0
    %v2444 = vpop.f32.mrf.mxu0
    %v2445 = vadd.f32 0.0, %v2444
    %v2446 = vpop.f32.mrf.mxu0
    %2447 = vdwg.mxu0
    %v2448 = vadd.f32 %v116, %v2386
    %v2449 = vadd.f32 %v117, %v2389
    %v2450 = vadd.f32 %v118, %v2394
    %v2451 = vadd.f32 %v119, %v2397
    %v2452 = vadd.f32 %v120, %v2402
    %v2453 = vadd.f32 %v121, %v2405
    %v2454 = vadd.f32 %v122, %v2410
    %v2455 = vadd.f32 %v123, %v2413
    %v2456 = vadd.f32 %v148, %v2418
    %v2457 = vadd.f32 %v149, %v2421
    %v2458 = vadd.f32 %v150, %v2426
    %v2459 = vadd.f32 %v151, %v2429
    %v2460 = vadd.f32 %v152, %v2434
    %v2461 = vadd.f32 %v153, %v2437
    %v2462 = vadd.f32 %v154, %v2442
    %v2463 = vadd.f32 %v155, %v2445
    %v2464 = vadd.f32 %v2448, %v2449
    %v2465 = vadd.f32 %v2464, %v2450
    %v2466 = vadd.f32 %v2465, %v2451
    %v2467 = vadd.f32 %v2466, %v2452
    %v2468 = vadd.f32 %v2467, %v2453
    %v2469 = vadd.f32 %v2468, %v2454
    %v2470 = vadd.f32 %v2469, %v2455
    %v2471 = vrot.slane %v2470, 4
    %v2472 = vadd.f32 %v2470, %v2471
    %v2473 = vrot.slane %v2472, 2
    %v2474 = vadd.f32 %v2472, %v2473
    %v2475 = vrot.slane %v2474, 1
    %v2476 = vadd.f32 %v2474, %v2475
    %v2477 = vadd.f32 %v2456, %v2457
    %v2478 = vadd.f32 %v2477, %v2458
    %v2479 = vadd.f32 %v2478, %v2459
    %v2480 = vadd.f32 %v2479, %v2460
    %v2481 = vadd.f32 %v2480, %v2461
    %v2482 = vadd.f32 %v2481, %v2462
    %v2483 = vadd.f32 %v2482, %v2463
    %v2484 = vrot.slane %v2483, 4
    %v2485 = vadd.f32 %v2483, %v2484
    %v2486 = vrot.slane %v2485, 2
    %v2487 = vadd.f32 %v2485, %v2486
    %v2488 = vrot.slane %v2487, 1
    %v2489 = vadd.f32 %v2487, %v2488
    %v2492 = vsel %vm210, %v2489, %v2476
    %2494 = vmatprep.subr.mxu0 0.0
    %2495 = vmatpush1.msra.mxu0 %v181
    %2496 = vmatprep.subr.mxu0 0.0
    %2497 = vmatpush1.msra.mxu0 %v180
    %2498 = vmatprep.subr.mxu0 0.0
    %2499 = vmatpush1.msra.mxu0 %v179
    %2500 = vmatprep.subr.mxu0 0.0
    %2501 = vmatpush1.msra.mxu0 %v178
    %2502 = vmatprep.subr.mxu0 0.0
    %2503 = vmatpush1.msra.mxu0 %v177
    %2504 = vmatprep.subr.mxu0 0.0
    %2505 = vmatpush1.msra.mxu0 %v176
    %2506 = vmatprep.subr.mxu0 0.0
    %2507 = vmatpush1.msra.mxu0 %v175
    %2508 = vmatprep.subr.mxu0 0.0
    %2509 = vmatpush1.msra.mxu0 %v174
    %2510 = vmatprep.subr.mxu0 0.0
    %2511 = vmatpush1.msra.mxu0 %v173
    %2512 = vmatprep.subr.mxu0 0.0
    %2513 = vmatpush1.msra.mxu0 %v172
    %2514 = vmatprep.subr.mxu0 0.0
    %2515 = vmatpush1.msra.mxu0 %v171
    %2516 = vmatprep.subr.mxu0 0.0
    %2517 = vmatpush1.msra.mxu0 %v170
    %2518 = vmatprep.subr.mxu0 0.0
    %2519 = vmatpush1.msra.mxu0 %v169
    %2520 = vmatprep.subr.mxu0 0.0
    %2521 = vmatpush1.msra.mxu0 %v168
    %2522 = vmatprep.subr.mxu0 0.0
    %2523 = vmatpush1.msra.mxu0 %v167
    %2524 = vmatprep.subr.mxu0 0.0
    %2525 = vmatpush1.msra.mxu0 %v166
    %2526 = vmatprep.subr.mxu0 0.0
    %2527 = vmatpush2.msra.mxu0 0.0
    %2528 = vmatprep.subr.mxu0 0.0
    %2529 = vmatpush2.msra.mxu0 0.0
    %2530 = vmatprep.subr.mxu0 0.0
    %2531 = vmatpush2.msra.mxu0 0.0
    %2532 = vmatprep.subr.mxu0 0.0
    %2533 = vmatpush2.msra.mxu0 0.0
    %2534 = vmatprep.subr.mxu0 0.0
    %2535 = vmatpush2.msra.mxu0 0.0
    %2536 = vmatprep.subr.mxu0 0.0
    %2537 = vmatpush2.msra.mxu0 0.0
    %2538 = vmatprep.subr.mxu0 0.0
    %2539 = vmatpush2.msra.mxu0 0.0
    %2540 = vmatprep.subr.mxu0 0.0
    %2541 = vmatpush2.msra.mxu0 0.0
    %2542 = vmatprep.subr.mxu0 0.0
    %2543 = vmatpush2.msra.mxu0 0.0
    %2544 = vmatprep.subr.mxu0 0.0
    %2545 = vmatpush2.msra.mxu0 0.0
    %2546 = vmatprep.subr.mxu0 0.0
    %2547 = vmatpush2.msra.mxu0 0.0
    %2548 = vmatprep.subr.mxu0 0.0
    %2549 = vmatpush2.msra.mxu0 0.0
    %2550 = vmatprep.subr.mxu0 0.0
    %2551 = vmatpush2.msra.mxu0 0.0
    %2552 = vmatprep.subr.mxu0 0.0
    %2553 = vmatpush2.msra.mxu0 0.0
    %2554 = vmatprep.subr.mxu0 0.0
    %2555 = vmatpush2.msra.mxu0 0.0
    %2556 = vmatprep.subr.mxu0 0.0
    %2557 = vmatpush2.msra.mxu0 0.0
    %2558 = vmatprep.mubr.f32.mxu0 0.0
    %2559 = vmatmul.mubr.f32.gmra.mxu0 %v2492
    %v2560 = vpop.f32.mrf.mxu0
    %v2561 = vadd.f32 0.0, %v2560
    %v2562 = vpop.f32.mrf.mxu0
    %2563 = vdwg.mxu0
    %v2566 = vunpack.c.l.s4 1966171168
    %v2567 = vunpack.c.0.s8 %v2566
    %v2568 = vlaneseq
    %v2569 = vshrl.u32 %v2568, 7
    %v2570 = vsub.s32 %v2567, %v2569
    %v2571 = vrot.slane %v2561, %v2570
    %v2572 = vcombine.high %v2571, %v2571
    %v2574 = vunpack.c.l.s4 1966171168
    %v2575 = vunpack.c.0.s8 %v2574
    %v2576 = vlaneseq
    %v2577 = vshrl.u32 %v2576, 7
    %v2578 = vsub.s32 %v2575, %v2577
    %v2579 = vrot.slane %v2571, %v2578
    %v2581 = vunpack.c.l.s4 1966171168
    %v2582 = vunpack.c.0.s8 %v2581
    %v2583 = vlaneseq
    %v2584 = vshrl.u32 %v2583, 7
    %v2585 = vsub.s32 %v2582, %v2584
    %v2586 = vrot.slane %v2572, %v2585
    %v2587 = vlaneseq
    %v2588 = vshrl.u32 %v2587, 7
    %v2589 = vsub.s32 0, %v2588
    %v2590 = vrot.slane %v2579, %v2589
    %v2591 = vlaneseq
    %v2592 = vshrl.u32 %v2591, 7
    %v2593 = vsub.s32 0, %v2592
    %v2594 = vrot.slane %v2586, %v2593
    %v2597 = vsub.f32 %v2448, %v2590
    %v2598 = vsub.f32 %v2449, %v2590
    %v2599 = vsub.f32 %v2450, %v2590
    %v2600 = vsub.f32 %v2451, %v2590
    %v2601 = vsub.f32 %v2452, %v2590
    %v2602 = vsub.f32 %v2453, %v2590
    %v2603 = vsub.f32 %v2454, %v2590
    %v2604 = vsub.f32 %v2455, %v2590
    %v2605 = vsub.f32 %v2456, %v2594
    %v2606 = vsub.f32 %v2457, %v2594
    %v2607 = vsub.f32 %v2458, %v2594
    %v2608 = vsub.f32 %v2459, %v2594
    %v2609 = vsub.f32 %v2460, %v2594
    %v2610 = vsub.f32 %v2461, %v2594
    %v2611 = vsub.f32 %v2462, %v2594
    %v2612 = vsub.f32 %v2463, %v2594
    %v2613 = vmul.f32 %v2597, %v2597
    %v2614 = vmul.f32 %v2598, %v2598
    %v2615 = vmul.f32 %v2599, %v2599
    %v2616 = vmul.f32 %v2600, %v2600
    %v2617 = vmul.f32 %v2601, %v2601
    %v2618 = vmul.f32 %v2602, %v2602
    %v2619 = vmul.f32 %v2603, %v2603
    %v2620 = vmul.f32 %v2604, %v2604
    %v2621 = vmul.f32 %v2605, %v2605
    %v2622 = vmul.f32 %v2606, %v2606
    %v2623 = vmul.f32 %v2607, %v2607
    %v2624 = vmul.f32 %v2608, %v2608
    %v2625 = vmul.f32 %v2609, %v2609
    %v2626 = vmul.f32 %v2610, %v2610
    %v2627 = vmul.f32 %v2611, %v2611
    %v2628 = vmul.f32 %v2612, %v2612
    %v2629 = vadd.f32 %v2613, %v2614
    %v2630 = vadd.f32 %v2629, %v2615
    %v2631 = vadd.f32 %v2630, %v2616
    %v2632 = vadd.f32 %v2631, %v2617
    %v2633 = vadd.f32 %v2632, %v2618
    %v2634 = vadd.f32 %v2633, %v2619
    %v2635 = vadd.f32 %v2634, %v2620
    %v2636 = vrot.slane %v2635, 4
    %v2637 = vadd.f32 %v2635, %v2636
    %v2638 = vrot.slane %v2637, 2
    %v2639 = vadd.f32 %v2637, %v2638
    %v2640 = vrot.slane %v2639, 1
    %v2641 = vadd.f32 %v2639, %v2640
    %v2642 = vadd.f32 %v2621, %v2622
    %v2643 = vadd.f32 %v2642, %v2623
    %v2644 = vadd.f32 %v2643, %v2624
    %v2645 = vadd.f32 %v2644, %v2625
    %v2646 = vadd.f32 %v2645, %v2626
    %v2647 = vadd.f32 %v2646, %v2627
    %v2648 = vadd.f32 %v2647, %v2628
    %v2649 = vrot.slane %v2648, 4
    %v2650 = vadd.f32 %v2648, %v2649
    %v2651 = vrot.slane %v2650, 2
    %v2652 = vadd.f32 %v2650, %v2651
    %v2653 = vrot.slane %v2652, 1
    %v2654 = vadd.f32 %v2652, %v2653
    %v2657 = vsel %vm210, %v2654, %v2641
    %2659 = vmatprep.subr.mxu0 0.0
    %2660 = vmatpush1.msra.mxu0 %v181
    %2661 = vmatprep.subr.mxu0 0.0
    %2662 = vmatpush1.msra.mxu0 %v180
    %2663 = vmatprep.subr.mxu0 0.0
    %2664 = vmatpush1.msra.mxu0 %v179
    %2665 = vmatprep.subr.mxu0 0.0
    %2666 = vmatpush1.msra.mxu0 %v178
    %2667 = vmatprep.subr.mxu0 0.0
    %2668 = vmatpush1.msra.mxu0 %v177
    %2669 = vmatprep.subr.mxu0 0.0
    %2670 = vmatpush1.msra.mxu0 %v176
    %2671 = vmatprep.subr.mxu0 0.0
    %2672 = vmatpush1.msra.mxu0 %v175
    %2673 = vmatprep.subr.mxu0 0.0
    %2674 = vmatpush1.msra.mxu0 %v174
    %2675 = vmatprep.subr.mxu0 0.0
    %2676 = vmatpush1.msra.mxu0 %v173
    %2677 = vmatprep.subr.mxu0 0.0
    %2678 = vmatpush1.msra.mxu0 %v172
    %2679 = vmatprep.subr.mxu0 0.0
    %2680 = vmatpush1.msra.mxu0 %v171
    %2681 = vmatprep.subr.mxu0 0.0
    %2682 = vmatpush1.msra.mxu0 %v170
    %2683 = vmatprep.subr.mxu0 0.0
    %2684 = vmatpush1.msra.mxu0 %v169
    %2685 = vmatprep.subr.mxu0 0.0
    %2686 = vmatpush1.msra.mxu0 %v168
    %2687 = vmatprep.subr.mxu0 0.0
    %2688 = vmatpush1.msra.mxu0 %v167
    %2689 = vmatprep.subr.mxu0 0.0
    %2690 = vmatpush1.msra.mxu0 %v166
    %2691 = vmatprep.subr.mxu0 0.0
    %2692 = vmatpush2.msra.mxu0 0.0
    %2693 = vmatprep.subr.mxu0 0.0
    %2694 = vmatpush2.msra.mxu0 0.0
    %2695 = vmatprep.subr.mxu0 0.0
    %2696 = vmatpush2.msra.mxu0 0.0
    %2697 = vmatprep.subr.mxu0 0.0
    %2698 = vmatpush2.msra.mxu0 0.0
    %2699 = vmatprep.subr.mxu0 0.0
    %2700 = vmatpush2.msra.mxu0 0.0
    %2701 = vmatprep.subr.mxu0 0.0
    %2702 = vmatpush2.msra.mxu0 0.0
    %2703 = vmatprep.subr.mxu0 0.0
    %2704 = vmatpush2.msra.mxu0 0.0
    %2705 = vmatprep.subr.mxu0 0.0
    %2706 = vmatpush2.msra.mxu0 0.0
    %2707 = vmatprep.subr.mxu0 0.0
    %2708 = vmatpush2.msra.mxu0 0.0
    %2709 = vmatprep.subr.mxu0 0.0
    %2710 = vmatpush2.msra.mxu0 0.0
    %2711 = vmatprep.subr.mxu0 0.0
    %2712 = vmatpush2.msra.mxu0 0.0
    %2713 = vmatprep.subr.mxu0 0.0
    %2714 = vmatpush2.msra.mxu0 0.0
    %2715 = vmatprep.subr.mxu0 0.0
    %2716 = vmatpush2.msra.mxu0 0.0
    %2717 = vmatprep.subr.mxu0 0.0
    %2718 = vmatpush2.msra.mxu0 0.0
    %2719 = vmatprep.subr.mxu0 0.0
    %2720 = vmatpush2.msra.mxu0 0.0
    %2721 = vmatprep.subr.mxu0 0.0
    %2722 = vmatpush2.msra.mxu0 0.0
    %2723 = vmatprep.mubr.f32.mxu0 0.0
    %2724 = vmatmul.mubr.f32.gmra.mxu0 %v2657
    %v2725 = vpop.f32.mrf.mxu0
    %v2726 = vadd.f32 1e-05, %v2725
    %v2727 = vpop.f32.mrf.mxu0
    %2728 = vdwg.mxu0
    %v2729 = vrsqrt.pop %v2726
    %v2732 = vunpack.c.l.s4 1966171168
    %v2733 = vunpack.c.0.s8 %v2732
    %v2734 = vlaneseq
    %v2735 = vshrl.u32 %v2734, 7
    %v2736 = vsub.s32 %v2733, %v2735
    %v2737 = vrot.slane %v2729, %v2736
    %v2738 = vcombine.high %v2737, %v2737
    %v2740 = vunpack.c.l.s4 1966171168
    %v2741 = vunpack.c.0.s8 %v2740
    %v2742 = vlaneseq
    %v2743 = vshrl.u32 %v2742, 7
    %v2744 = vsub.s32 %v2741, %v2743
    %v2745 = vrot.slane %v2737, %v2744
    %v2747 = vunpack.c.l.s4 1966171168
    %v2748 = vunpack.c.0.s8 %v2747
    %v2749 = vlaneseq
    %v2750 = vshrl.u32 %v2749, 7
    %v2751 = vsub.s32 %v2748, %v2750
    %v2752 = vrot.slane %v2738, %v2751
    %v2753 = vlaneseq
    %v2754 = vshrl.u32 %v2753, 7
    %v2755 = vsub.s32 0, %v2754
    %v2756 = vrot.slane %v2745, %v2755
    %v2757 = vlaneseq
    %v2758 = vshrl.u32 %v2757, 7
    %v2759 = vsub.s32 0, %v2758
    %v2760 = vrot.slane %v2752, %v2759
    %v2763 = vmul.f32 %v2597, %v2756
    %v2764 = vmul.f32 %v2598, %v2756
    %v2765 = vmul.f32 %v2599, %v2756
    %v2766 = vmul.f32 %v2600, %v2756
    %v2767 = vmul.f32 %v2601, %v2756
    %v2768 = vmul.f32 %v2602, %v2756
    %v2769 = vmul.f32 %v2603, %v2756
    %v2770 = vmul.f32 %v2604, %v2756
    %v2771 = vmul.f32 %v2605, %v2760
    %v2772 = vmul.f32 %v2606, %v2760
    %v2773 = vmul.f32 %v2607, %v2760
    %v2774 = vmul.f32 %v2608, %v2760
    %v2775 = vmul.f32 %v2609, %v2760
    %v2776 = vmul.f32 %v2610, %v2760
    %v2777 = vmul.f32 %v2611, %v2760
    %v2778 = vmul.f32 %v2612, %v2760
    %v2779 = vlaneseq
    %v2780 = vshrl.u32 %v2779, 7
    %v2781 = vsub.s32 2, %v2780
    %v2782 = vrot.slane %v498, %v2781
    %v2783 = vlaneseq
    %v2784 = vshrl.u32 %v2783, 7
    %v2785 = vsub.s32 2, %v2784
    %v2786 = vrot.slane %v499, %v2785
    %v2787 = vmul.f32 %v2763, %v2782
    %v2788 = vmul.f32 %v2764, %v2782
    %v2789 = vmul.f32 %v2765, %v2782
    %v2790 = vmul.f32 %v2766, %v2782
    %v2791 = vmul.f32 %v2767, %v2782
    %v2792 = vmul.f32 %v2768, %v2782
    %v2793 = vmul.f32 %v2769, %v2782
    %v2794 = vmul.f32 %v2770, %v2782
    %v2795 = vmul.f32 %v2771, %v2786
    %v2796 = vmul.f32 %v2772, %v2786
    %v2797 = vmul.f32 %v2773, %v2786
    %v2798 = vmul.f32 %v2774, %v2786
    %v2799 = vmul.f32 %v2775, %v2786
    %v2800 = vmul.f32 %v2776, %v2786
    %v2801 = vmul.f32 %v2777, %v2786
    %v2802 = vmul.f32 %v2778, %v2786
    %v2803 = vlaneseq
    %v2804 = vshrl.u32 %v2803, 7
    %v2805 = vsub.s32 3, %v2804
    %v2806 = vrot.slane %v164, %v2805
    %v2807 = vlaneseq
    %v2808 = vshrl.u32 %v2807, 7
    %v2809 = vsub.s32 3, %v2808
    %v2810 = vrot.slane %v165, %v2809
    %v2811 = vadd.f32 %v2787, %v2806
    %v2812 = vadd.f32 %v2788, %v2806
    %v2813 = vadd.f32 %v2789, %v2806
    %v2814 = vadd.f32 %v2790, %v2806
    %v2815 = vadd.f32 %v2791, %v2806
    %v2816 = vadd.f32 %v2792, %v2806
    %v2817 = vadd.f32 %v2793, %v2806
    %v2818 = vadd.f32 %v2794, %v2806
    %v2819 = vadd.f32 %v2795, %v2810
    %v2820 = vadd.f32 %v2796, %v2810
    %v2821 = vadd.f32 %v2797, %v2810
    %v2822 = vadd.f32 %v2798, %v2810
    %v2823 = vadd.f32 %v2799, %v2810
    %v2824 = vadd.f32 %v2800, %v2810
    %v2825 = vadd.f32 %v2801, %v2810
    %v2826 = vadd.f32 %v2802, %v2810
    %v2827 = vpack.c.bf16 %v2812, %v2811
    %v2828 = vpack.c.bf16 %v2814, %v2813
    %v2829 = vpack.c.bf16 %v2816, %v2815
    %v2830 = vpack.c.bf16 %v2818, %v2817
    %v2831 = vpack.c.bf16 %v2820, %v2819
    %v2832 = vpack.c.bf16 %v2822, %v2821
    %v2833 = vpack.c.bf16 %v2824, %v2823
    %v2834 = vpack.c.bf16 %v2826, %v2825
    %v2835 = vld [vmem:[%s5] sm:$0xff]
    %v2836 = vld [vmem:[%s5 + $0x8] sm:$0xff]
    %v2837 = vld [vmem:[%s5 + $0x10] sm:$0xff]
    %v2838 = vld [vmem:[%s5 + $0x18] sm:$0xff]
    %v2839 = vld [vmem:[%s5 + $0x20] sm:$0xff]
    %v2840 = vld [vmem:[%s5 + $0x28] sm:$0xff]
    %v2841 = vld [vmem:[%s5 + $0x30] sm:$0xff]
    %v2842 = vld [vmem:[%s5 + $0x38] sm:$0xff]
    %v2843 = vld [vmem:[%s5 + $0x40] sm:$0xff]
    %v2844 = vld [vmem:[%s5 + $0x48] sm:$0xff]
    %v2845 = vld [vmem:[%s5 + $0x50] sm:$0xff]
    %v2846 = vld [vmem:[%s5 + $0x58] sm:$0xff]
    %v2847 = vld [vmem:[%s5 + $0x60] sm:$0xff]
    %v2848 = vld [vmem:[%s5 + $0x68] sm:$0xff]
    %v2849 = vld [vmem:[%s5 + $0x70] sm:$0xff]
    %v2850 = vld [vmem:[%s5 + $0x78] sm:$0xff]
    %v2851 = vld [vmem:[%s5 + $0x80] sm:$0xff]
    %v2852 = vld [vmem:[%s5 + $0x88] sm:$0xff]
    %v2853 = vld [vmem:[%s5 + $0x90] sm:$0xff]
    %v2854 = vld [vmem:[%s5 + $0x98] sm:$0xff]
    %v2855 = vld [vmem:[%s5 + $0xa0] sm:$0xff]
    %v2856 = vld [vmem:[%s5 + $0xa8] sm:$0xff]
    %v2857 = vld [vmem:[%s5 + $0xb0] sm:$0xff]
    %v2858 = vld [vmem:[%s5 + $0xb8] sm:$0xff]
    %v2859 = vld [vmem:[%s5 + $0xc0] sm:$0xff]
    %v2860 = vld [vmem:[%s5 + $0xc8] sm:$0xff]
    %v2861 = vld [vmem:[%s5 + $0xd0] sm:$0xff]
    %v2862 = vld [vmem:[%s5 + $0xd8] sm:$0xff]
    %v2863 = vld [vmem:[%s5 + $0xe0] sm:$0xff]
    %v2864 = vld [vmem:[%s5 + $0xe8] sm:$0xff]
    %v2865 = vld [vmem:[%s5 + $0xf0] sm:$0xff]
    %v2866 = vld [vmem:[%s5 + $0xf8] sm:$0xff]
    %v2899 = vunpack.c.l.b16 %v2835
    %v2900 = vunpack.c.h.b16 %v2835
    %v2901 = vunpack.c.l.b16 %v2836
    %v2902 = vunpack.c.h.b16 %v2836
    %v2903 = vunpack.c.l.b16 %v2837
    %v2904 = vunpack.c.h.b16 %v2837
    %v2905 = vunpack.c.l.b16 %v2838
    %v2906 = vunpack.c.h.b16 %v2838
    %v2907 = vunpack.c.l.b16 %v2839
    %v2908 = vunpack.c.h.b16 %v2839
    %v2909 = vunpack.c.l.b16 %v2840
    %v2910 = vunpack.c.h.b16 %v2840
    %v2911 = vunpack.c.l.b16 %v2841
    %v2912 = vunpack.c.h.b16 %v2841
    %v2913 = vunpack.c.l.b16 %v2842
    %v2914 = vunpack.c.h.b16 %v2842
    %v2915 = vunpack.c.l.b16 %v2843
    %v2916 = vunpack.c.h.b16 %v2843
    %v2917 = vunpack.c.l.b16 %v2844
    %v2918 = vunpack.c.h.b16 %v2844
    %v2919 = vunpack.c.l.b16 %v2845
    %v2920 = vunpack.c.h.b16 %v2845
    %v2921 = vunpack.c.l.b16 %v2846
    %v2922 = vunpack.c.h.b16 %v2846
    %v2923 = vunpack.c.l.b16 %v2847
    %v2924 = vunpack.c.h.b16 %v2847
    %v2925 = vunpack.c.l.b16 %v2848
    %v2926 = vunpack.c.h.b16 %v2848
    %v2927 = vunpack.c.l.b16 %v2849
    %v2928 = vunpack.c.h.b16 %v2849
    %v2929 = vunpack.c.l.b16 %v2850
    %v2930 = vunpack.c.h.b16 %v2850
    %v2931 = vunpack.c.l.b16 %v2851
    %v2932 = vunpack.c.h.b16 %v2851
    %v2933 = vunpack.c.l.b16 %v2852
    %v2934 = vunpack.c.h.b16 %v2852
    %v2935 = vunpack.c.l.b16 %v2853
    %v2936 = vunpack.c.h.b16 %v2853
    %v2937 = vunpack.c.l.b16 %v2854
    %v2938 = vunpack.c.h.b16 %v2854
    %v2939 = vunpack.c.l.b16 %v2855
    %v2940 = vunpack.c.h.b16 %v2855
    %v2941 = vunpack.c.l.b16 %v2856
    %v2942 = vunpack.c.h.b16 %v2856
    %v2943 = vunpack.c.l.b16 %v2857
    %v2944 = vunpack.c.h.b16 %v2857
    %v2945 = vunpack.c.l.b16 %v2858
    %v2946 = vunpack.c.h.b16 %v2858
    %v2947 = vunpack.c.l.b16 %v2859
    %v2948 = vunpack.c.h.b16 %v2859
    %v2949 = vunpack.c.l.b16 %v2860
    %v2950 = vunpack.c.h.b16 %v2860
    %v2951 = vunpack.c.l.b16 %v2861
    %v2952 = vunpack.c.h.b16 %v2861
    %v2953 = vunpack.c.l.b16 %v2862
    %v2954 = vunpack.c.h.b16 %v2862
    %v2955 = vunpack.c.l.b16 %v2863
    %v2956 = vunpack.c.h.b16 %v2863
    %v2957 = vunpack.c.l.b16 %v2864
    %v2958 = vunpack.c.h.b16 %v2864
    %v2959 = vunpack.c.l.b16 %v2865
    %v2960 = vunpack.c.h.b16 %v2865
    %v2961 = vunpack.c.l.b16 %v2866
    %v2962 = vunpack.c.h.b16 %v2866
    %v2963 = vpack.c.b16 %v2903, %v2899
    %v2964 = vpack.c.b16 %v2904, %v2900
    %v2965 = vpack.c.b16 %v2905, %v2901
    %v2966 = vpack.c.b16 %v2906, %v2902
    %v2967 = vpack.c.b16 %v2911, %v2907
    %v2968 = vpack.c.b16 %v2912, %v2908
    %v2969 = vpack.c.b16 %v2913, %v2909
    %v2970 = vpack.c.b16 %v2914, %v2910
    %v2971 = vpack.c.b16 %v2919, %v2915
    %v2972 = vpack.c.b16 %v2920, %v2916
    %v2973 = vpack.c.b16 %v2921, %v2917
    %v2974 = vpack.c.b16 %v2922, %v2918
    %v2975 = vpack.c.b16 %v2927, %v2923
    %v2976 = vpack.c.b16 %v2928, %v2924
    %v2977 = vpack.c.b16 %v2929, %v2925
    %v2978 = vpack.c.b16 %v2930, %v2926
    %v2979 = vpack.c.b16 %v2935, %v2931
    %v2980 = vpack.c.b16 %v2936, %v2932
    %v2981 = vpack.c.b16 %v2937, %v2933
    %v2982 = vpack.c.b16 %v2938, %v2934
    %v2983 = vpack.c.b16 %v2943, %v2939
    %v2984 = vpack.c.b16 %v2944, %v2940
    %v2985 = vpack.c.b16 %v2945, %v2941
    %v2986 = vpack.c.b16 %v2946, %v2942
    %v2987 = vpack.c.b16 %v2951, %v2947
    %v2988 = vpack.c.b16 %v2952, %v2948
    %v2989 = vpack.c.b16 %v2953, %v2949
    %v2990 = vpack.c.b16 %v2954, %v2950
    %v2991 = vpack.c.b16 %v2959, %v2955
    %v2992 = vpack.c.b16 %v2960, %v2956
    %v2993 = vpack.c.b16 %v2961, %v2957
    %v2994 = vpack.c.b16 %v2962, %v2958
    %3027 = vmatprep.subr.bf16.mxu0 %v2992
    %3028 = vmatpush1.bf16.msra.mxu0 %v2991
    %3029 = vmatprep.subr.bf16.mxu0 %v2988
    %3030 = vmatpush1.bf16.msra.mxu0 %v2987
    %3031 = vmatprep.subr.bf16.mxu0 %v2984
    %3032 = vmatpush1.bf16.msra.mxu0 %v2983
    %3033 = vmatprep.subr.bf16.mxu0 %v2980
    %3034 = vmatpush1.bf16.msra.mxu0 %v2979
    %3035 = vmatprep.subr.bf16.mxu0 %v2976
    %3036 = vmatpush1.bf16.msra.mxu0 %v2975
    %3037 = vmatprep.subr.bf16.mxu0 %v2972
    %3038 = vmatpush1.bf16.msra.mxu0 %v2971
    %3039 = vmatprep.subr.bf16.mxu0 %v2968
    %3040 = vmatpush1.bf16.msra.mxu0 %v2967
    %3041 = vmatprep.subr.bf16.mxu0 %v2964
    %3042 = vmatpush1.bf16.msra.mxu0 %v2963
    %3043 = vmatprep.subr.bf16.mxu0 0
    %3044 = vmatpush2.bf16.msra.mxu0 0
    %3045 = vmatprep.subr.bf16.mxu0 0
    %3046 = vmatpush2.bf16.msra.mxu0 0
    %3047 = vmatprep.subr.bf16.mxu0 0
    %3048 = vmatpush2.bf16.msra.mxu0 0
    %3049 = vmatprep.subr.bf16.mxu0 0
    %3050 = vmatpush2.bf16.msra.mxu0 0
    %3051 = vmatprep.subr.bf16.mxu0 0
    %3052 = vmatpush2.bf16.msra.mxu0 0
    %3053 = vmatprep.subr.bf16.mxu0 0
    %3054 = vmatpush2.bf16.msra.mxu0 0
    %3055 = vmatprep.subr.bf16.mxu0 0
    %3056 = vmatpush2.bf16.msra.mxu0 0
    %3057 = vmatprep.subr.bf16.mxu0 0
    %3058 = vmatpush2.bf16.msra.mxu0 0
    %3059 = vmatprep.mubr.bf16.mxu0 0
    %3060 = vmatmul.mubr.bf16.gmra.mxu0 %v2827
    %v3061 = vpop.f32.mrf.mxu0
    %v3062 = vadd.f32 0.0, %v3061
    %v3063 = vpop.f32.mrf.mxu0
    %v3064 = vadd.f32 0.0, %v3063
    %v3065 = vpop.f32.mrf.mxu0
    %v3066 = vadd.f32 0.0, %v3065
    %v3067 = vpop.f32.mrf.mxu0
    %v3068 = vadd.f32 0.0, %v3067
    %3069 = vmatprep.mubr.bf16.mxu0 0
    %3070 = vmatmul.mubr.bf16.gmra.mxu0 %v2828
    %v3071 = vpop.f32.mrf.mxu0
    %v3072 = vadd.f32 0.0, %v3071
    %v3073 = vpop.f32.mrf.mxu0
    %v3074 = vadd.f32 0.0, %v3073
    %v3075 = vpop.f32.mrf.mxu0
    %v3076 = vadd.f32 0.0, %v3075
    %v3077 = vpop.f32.mrf.mxu0
    %v3078 = vadd.f32 0.0, %v3077
    %3079 = vmatprep.mubr.bf16.mxu0 0
    %3080 = vmatmul.mubr.bf16.gmra.mxu0 %v2829
    %v3081 = vpop.f32.mrf.mxu0
    %v3082 = vadd.f32 0.0, %v3081
    %v3083 = vpop.f32.mrf.mxu0
    %v3084 = vadd.f32 0.0, %v3083
    %v3085 = vpop.f32.mrf.mxu0
    %v3086 = vadd.f32 0.0, %v3085
    %v3087 = vpop.f32.mrf.mxu0
    %v3088 = vadd.f32 0.0, %v3087
    %3089 = vmatprep.mubr.bf16.mxu0 0
    %3090 = vmatmul.mubr.bf16.gmra.mxu0 %v2830
    %v3091 = vpop.f32.mrf.mxu0
    %v3092 = vadd.f32 0.0, %v3091
    %v3093 = vpop.f32.mrf.mxu0
    %v3094 = vadd.f32 0.0, %v3093
    %v3095 = vpop.f32.mrf.mxu0
    %v3096 = vadd.f32 0.0, %v3095
    %v3097 = vpop.f32.mrf.mxu0
    %v3098 = vadd.f32 0.0, %v3097
    %3099 = vmatprep.mubr.bf16.mxu0 0
    %3100 = vmatmul.mubr.bf16.gmra.mxu0 %v2831
    %v3101 = vpop.f32.mrf.mxu0
    %v3102 = vadd.f32 0.0, %v3101
    %v3103 = vpop.f32.mrf.mxu0
    %v3104 = vadd.f32 0.0, %v3103
    %v3105 = vpop.f32.mrf.mxu0
    %v3106 = vadd.f32 0.0, %v3105
    %v3107 = vpop.f32.mrf.mxu0
    %v3108 = vadd.f32 0.0, %v3107
    %3109 = vmatprep.mubr.bf16.mxu0 0
    %3110 = vmatmul.mubr.bf16.gmra.mxu0 %v2832
    %v3111 = vpop.f32.mrf.mxu0
    %v3112 = vadd.f32 0.0, %v3111
    %v3113 = vpop.f32.mrf.mxu0
    %v3114 = vadd.f32 0.0, %v3113
    %v3115 = vpop.f32.mrf.mxu0
    %v3116 = vadd.f32 0.0, %v3115
    %v3117 = vpop.f32.mrf.mxu0
    %v3118 = vadd.f32 0.0, %v3117
    %3119 = vmatprep.mubr.bf16.mxu0 0
    %3120 = vmatmul.mubr.bf16.gmra.mxu0 %v2833
    %v3121 = vpop.f32.mrf.mxu0
    %v3122 = vadd.f32 0.0, %v3121
    %v3123 = vpop.f32.mrf.mxu0
    %v3124 = vadd.f32 0.0, %v3123
    %v3125 = vpop.f32.mrf.mxu0
    %v3126 = vadd.f32 0.0, %v3125
    %v3127 = vpop.f32.mrf.mxu0
    %v3128 = vadd.f32 0.0, %v3127
    %3129 = vmatprep.mubr.bf16.mxu0 0
    %3130 = vmatmul.mubr.bf16.gmra.mxu0 %v2834
    %v3131 = vpop.f32.mrf.mxu0
    %v3132 = vadd.f32 0.0, %v3131
    %v3133 = vpop.f32.mrf.mxu0
    %v3134 = vadd.f32 0.0, %v3133
    %v3135 = vpop.f32.mrf.mxu0
    %v3136 = vadd.f32 0.0, %v3135
    %v3137 = vpop.f32.mrf.mxu0
    %v3138 = vadd.f32 0.0, %v3137
    %3139 = vdwg.mxu0
    %3140 = vmatprep.subr.bf16.mxu0 %v2994
    %3141 = vmatpush1.bf16.msra.mxu0 %v2993
    %3142 = vmatprep.subr.bf16.mxu0 %v2990
    %3143 = vmatpush1.bf16.msra.mxu0 %v2989
    %3144 = vmatprep.subr.bf16.mxu0 %v2986
    %3145 = vmatpush1.bf16.msra.mxu0 %v2985
    %3146 = vmatprep.subr.bf16.mxu0 %v2982
    %3147 = vmatpush1.bf16.msra.mxu0 %v2981
    %3148 = vmatprep.subr.bf16.mxu0 %v2978
    %3149 = vmatpush1.bf16.msra.mxu0 %v2977
    %3150 = vmatprep.subr.bf16.mxu0 %v2974
    %3151 = vmatpush1.bf16.msra.mxu0 %v2973
    %3152 = vmatprep.subr.bf16.mxu0 %v2970
    %3153 = vmatpush1.bf16.msra.mxu0 %v2969
    %3154 = vmatprep.subr.bf16.mxu0 %v2966
    %3155 = vmatpush1.bf16.msra.mxu0 %v2965
    %3156 = vmatprep.subr.bf16.mxu0 0
    %3157 = vmatpush2.bf16.msra.mxu0 0
    %3158 = vmatprep.subr.bf16.mxu0 0
    %3159 = vmatpush2.bf16.msra.mxu0 0
    %3160 = vmatprep.subr.bf16.mxu0 0
    %3161 = vmatpush2.bf16.msra.mxu0 0
    %3162 = vmatprep.subr.bf16.mxu0 0
    %3163 = vmatpush2.bf16.msra.mxu0 0
    %3164 = vmatprep.subr.bf16.mxu0 0
    %3165 = vmatpush2.bf16.msra.mxu0 0
    %3166 = vmatprep.subr.bf16.mxu0 0
    %3167 = vmatpush2.bf16.msra.mxu0 0
    %3168 = vmatprep.subr.bf16.mxu0 0
    %3169 = vmatpush2.bf16.msra.mxu0 0
    %3170 = vmatprep.subr.bf16.mxu0 0
    %3171 = vmatpush2.bf16.msra.mxu0 0
    %3172 = vmatprep.mubr.bf16.mxu0 0
    %3173 = vmatmul.mubr.bf16.gmra.mxu0 %v2827
    %v3174 = vpop.f32.mrf.mxu0
    %v3175 = vadd.f32 0.0, %v3174
    %v3176 = vpop.f32.mrf.mxu0
    %v3177 = vadd.f32 0.0, %v3176
    %v3178 = vpop.f32.mrf.mxu0
    %v3179 = vadd.f32 0.0, %v3178
    %v3180 = vpop.f32.mrf.mxu0
    %v3181 = vadd.f32 0.0, %v3180
    %3182 = vmatprep.mubr.bf16.mxu0 0
    %3183 = vmatmul.mubr.bf16.gmra.mxu0 %v2828
    %v3184 = vpop.f32.mrf.mxu0
    %v3185 = vadd.f32 0.0, %v3184
    %v3186 = vpop.f32.mrf.mxu0
    %v3187 = vadd.f32 0.0, %v3186
    %v3188 = vpop.f32.mrf.mxu0
    %v3189 = vadd.f32 0.0, %v3188
    %v3190 = vpop.f32.mrf.mxu0
    %v3191 = vadd.f32 0.0, %v3190
    %3192 = vmatprep.mubr.bf16.mxu0 0
    %3193 = vmatmul.mubr.bf16.gmra.mxu0 %v2829
    %v3194 = vpop.f32.mrf.mxu0
    %v3195 = vadd.f32 0.0, %v3194
    %v3196 = vpop.f32.mrf.mxu0
    %v3197 = vadd.f32 0.0, %v3196
    %v3198 = vpop.f32.mrf.mxu0
    %v3199 = vadd.f32 0.0, %v3198
    %v3200 = vpop.f32.mrf.mxu0
    %v3201 = vadd.f32 0.0, %v3200
    %3202 = vmatprep.mubr.bf16.mxu0 0
    %3203 = vmatmul.mubr.bf16.gmra.mxu0 %v2830
    %v3204 = vpop.f32.mrf.mxu0
    %v3205 = vadd.f32 0.0, %v3204
    %v3206 = vpop.f32.mrf.mxu0
    %v3207 = vadd.f32 0.0, %v3206
    %v3208 = vpop.f32.mrf.mxu0
    %v3209 = vadd.f32 0.0, %v3208
    %v3210 = vpop.f32.mrf.mxu0
    %v3211 = vadd.f32 0.0, %v3210
    %3212 = vmatprep.mubr.bf16.mxu0 0
    %3213 = vmatmul.mubr.bf16.gmra.mxu0 %v2831
    %v3214 = vpop.f32.mrf.mxu0
    %v3215 = vadd.f32 0.0, %v3214
    %v3216 = vpop.f32.mrf.mxu0
    %v3217 = vadd.f32 0.0, %v3216
    %v3218 = vpop.f32.mrf.mxu0
    %v3219 = vadd.f32 0.0, %v3218
    %v3220 = vpop.f32.mrf.mxu0
    %v3221 = vadd.f32 0.0, %v3220
    %3222 = vmatprep.mubr.bf16.mxu0 0
    %3223 = vmatmul.mubr.bf16.gmra.mxu0 %v2832
    %v3224 = vpop.f32.mrf.mxu0
    %v3225 = vadd.f32 0.0, %v3224
    %v3226 = vpop.f32.mrf.mxu0
    %v3227 = vadd.f32 0.0, %v3226
    %v3228 = vpop.f32.mrf.mxu0
    %v3229 = vadd.f32 0.0, %v3228
    %v3230 = vpop.f32.mrf.mxu0
    %v3231 = vadd.f32 0.0, %v3230
    %3232 = vmatprep.mubr.bf16.mxu0 0
    %3233 = vmatmul.mubr.bf16.gmra.mxu0 %v2833
    %v3234 = vpop.f32.mrf.mxu0
    %v3235 = vadd.f32 0.0, %v3234
    %v3236 = vpop.f32.mrf.mxu0
    %v3237 = vadd.f32 0.0, %v3236
    %v3238 = vpop.f32.mrf.mxu0
    %v3239 = vadd.f32 0.0, %v3238
    %v3240 = vpop.f32.mrf.mxu0
    %v3241 = vadd.f32 0.0, %v3240
    %3242 = vmatprep.mubr.bf16.mxu0 0
    %3243 = vmatmul.mubr.bf16.gmra.mxu0 %v2834
    %v3244 = vpop.f32.mrf.mxu0
    %v3245 = vadd.f32 0.0, %v3244
    %v3246 = vpop.f32.mrf.mxu0
    %v3247 = vadd.f32 0.0, %v3246
    %v3248 = vpop.f32.mrf.mxu0
    %v3249 = vadd.f32 0.0, %v3248
    %v3250 = vpop.f32.mrf.mxu0
    %v3251 = vadd.f32 0.0, %v3250
    %3252 = vdwg.mxu0
    %v3253 = vxor.u32 %v3062, 2147483648
    %v3254 = vxor.u32 %v3064, 2147483648
    %v3255 = vxor.u32 %v3175, 2147483648
    %v3256 = vxor.u32 %v3177, 2147483648
    %v3257 = vxor.u32 %v3066, 2147483648
    %v3258 = vxor.u32 %v3068, 2147483648
    %v3259 = vxor.u32 %v3179, 2147483648
    %v3260 = vxor.u32 %v3181, 2147483648
    %v3261 = vxor.u32 %v3072, 2147483648
    %v3262 = vxor.u32 %v3074, 2147483648
    %v3263 = vxor.u32 %v3185, 2147483648
    %v3264 = vxor.u32 %v3187, 2147483648
    %v3265 = vxor.u32 %v3076, 2147483648
    %v3266 = vxor.u32 %v3078, 2147483648
    %v3267 = vxor.u32 %v3189, 2147483648
    %v3268 = vxor.u32 %v3191, 2147483648
    %v3269 = vxor.u32 %v3082, 2147483648
    %v3270 = vxor.u32 %v3084, 2147483648
    %v3271 = vxor.u32 %v3195, 2147483648
    %v3272 = vxor.u32 %v3197, 2147483648
    %v3273 = vxor.u32 %v3086, 2147483648
    %v3274 = vxor.u32 %v3088, 2147483648
    %v3275 = vxor.u32 %v3199, 2147483648
    %v3276 = vxor.u32 %v3201, 2147483648
    %v3277 = vxor.u32 %v3092, 2147483648
    %v3278 = vxor.u32 %v3094, 2147483648
    %v3279 = vxor.u32 %v3205, 2147483648
    %v3280 = vxor.u32 %v3207, 2147483648
    %v3281 = vxor.u32 %v3096, 2147483648
    %v3282 = vxor.u32 %v3098, 2147483648
    %v3283 = vxor.u32 %v3209, 2147483648
    %v3284 = vxor.u32 %v3211, 2147483648
    %v3285 = vxor.u32 %v3102, 2147483648
    %v3286 = vxor.u32 %v3104, 2147483648
    %v3287 = vxor.u32 %v3215, 2147483648
    %v3288 = vxor.u32 %v3217, 2147483648
    %v3289 = vxor.u32 %v3106, 2147483648
    %v3290 = vxor.u32 %v3108, 2147483648
    %v3291 = vxor.u32 %v3219, 2147483648
    %v3292 = vxor.u32 %v3221, 2147483648
    %v3293 = vxor.u32 %v3112, 2147483648
    %v3294 = vxor.u32 %v3114, 2147483648
    %v3295 = vxor.u32 %v3225, 2147483648
    %v3296 = vxor.u32 %v3227, 2147483648
    %v3297 = vxor.u32 %v3116, 2147483648
    %v3298 = vxor.u32 %v3118, 2147483648
    %v3299 = vxor.u32 %v3229, 2147483648
    %v3300 = vxor.u32 %v3231, 2147483648
    %v3301 = vxor.u32 %v3122, 2147483648
    %v3302 = vxor.u32 %v3124, 2147483648
    %v3303 = vxor.u32 %v3235, 2147483648
    %v3304 = vxor.u32 %v3237, 2147483648
    %v3305 = vxor.u32 %v3126, 2147483648
    %v3306 = vxor.u32 %v3128, 2147483648
    %v3307 = vxor.u32 %v3239, 2147483648
    %v3308 = vxor.u32 %v3241, 2147483648
    %v3309 = vxor.u32 %v3132, 2147483648
    %v3310 = vxor.u32 %v3134, 2147483648
    %v3311 = vxor.u32 %v3245, 2147483648
    %v3312 = vxor.u32 %v3247, 2147483648
    %v3313 = vxor.u32 %v3136, 2147483648
    %v3314 = vxor.u32 %v3138, 2147483648
    %v3315 = vxor.u32 %v3249, 2147483648
    %v3316 = vxor.u32 %v3251, 2147483648
    %v3317 = vmul.f32 %v3253, 1.442695
    %v3318 = vpow.pop %v3317
    %v3319 = vmul.f32 %v3254, 1.442695
    %v3320 = vpow.pop %v3319
    %v3321 = vmul.f32 %v3255, 1.442695
    %v3322 = vpow.pop %v3321
    %v3323 = vmul.f32 %v3256, 1.442695
    %v3324 = vpow.pop %v3323
    %v3325 = vmul.f32 %v3257, 1.442695
    %v3326 = vpow.pop %v3325
    %v3327 = vmul.f32 %v3258, 1.442695
    %v3328 = vpow.pop %v3327
    %v3329 = vmul.f32 %v3259, 1.442695
    %v3330 = vpow.pop %v3329
    %v3331 = vmul.f32 %v3260, 1.442695
    %v3332 = vpow.pop %v3331
    %v3333 = vmul.f32 %v3261, 1.442695
    %v3334 = vpow.pop %v3333
    %v3335 = vmul.f32 %v3262, 1.442695
    %v3336 = vpow.pop %v3335
    %v3337 = vmul.f32 %v3263, 1.442695
    %v3338 = vpow.pop %v3337
    %v3339 = vmul.f32 %v3264, 1.442695
    %v3340 = vpow.pop %v3339
    %v3341 = vmul.f32 %v3265, 1.442695
    %v3342 = vpow.pop %v3341
    %v3343 = vmul.f32 %v3266, 1.442695
    %v3344 = vpow.pop %v3343
    %v3345 = vmul.f32 %v3267, 1.442695
    %v3346 = vpow.pop %v3345
    %v3347 = vmul.f32 %v3268, 1.442695
    %v3348 = vpow.pop %v3347
    %v3349 = vmul.f32 %v3269, 1.442695
    %v3350 = vpow.pop %v3349
    %v3351 = vmul.f32 %v3270, 1.442695
    %v3352 = vpow.pop %v3351
    %v3353 = vmul.f32 %v3271, 1.442695
    %v3354 = vpow.pop %v3353
    %v3355 = vmul.f32 %v3272, 1.442695
    %v3356 = vpow.pop %v3355
    %v3357 = vmul.f32 %v3273, 1.442695
    %v3358 = vpow.pop %v3357
    %v3359 = vmul.f32 %v3274, 1.442695
    %v3360 = vpow.pop %v3359
    %v3361 = vmul.f32 %v3275, 1.442695
    %v3362 = vpow.pop %v3361
    %v3363 = vmul.f32 %v3276, 1.442695
    %v3364 = vpow.pop %v3363
    %v3365 = vmul.f32 %v3277, 1.442695
    %v3366 = vpow.pop %v3365
    %v3367 = vmul.f32 %v3278, 1.442695
    %v3368 = vpow.pop %v3367
    %v3369 = vmul.f32 %v3279, 1.442695
    %v3370 = vpow.pop %v3369
    %v3371 = vmul.f32 %v3280, 1.442695
    %v3372 = vpow.pop %v3371
    %v3373 = vmul.f32 %v3281, 1.442695
    %v3374 = vpow.pop %v3373
    %v3375 = vmul.f32 %v3282, 1.442695
    %v3376 = vpow.pop %v3375
    %v3377 = vmul.f32 %v3283, 1.442695
    %v3378 = vpow.pop %v3377
    %v3379 = vmul.f32 %v3284, 1.442695
    %v3380 = vpow.pop %v3379
    %v3381 = vmul.f32 %v3285, 1.442695
    %v3382 = vpow.pop %v3381
    %v3383 = vmul.f32 %v3286, 1.442695
    %v3384 = vpow.pop %v3383
    %v3385 = vmul.f32 %v3287, 1.442695
    %v3386 = vpow.pop %v3385
    %v3387 = vmul.f32 %v3288, 1.442695
    %v3388 = vpow.pop %v3387
    %v3389 = vmul.f32 %v3289, 1.442695
    %v3390 = vpow.pop %v3389
    %v3391 = vmul.f32 %v3290, 1.442695
    %v3392 = vpow.pop %v3391
    %v3393 = vmul.f32 %v3291, 1.442695
    %v3394 = vpow.pop %v3393
    %v3395 = vmul.f32 %v3292, 1.442695
    %v3396 = vpow.pop %v3395
    %v3397 = vmul.f32 %v3293, 1.442695
    %v3398 = vpow.pop %v3397
    %v3399 = vmul.f32 %v3294, 1.442695
    %v3400 = vpow.pop %v3399
    %v3401 = vmul.f32 %v3295, 1.442695
    %v3402 = vpow.pop %v3401
    %v3403 = vmul.f32 %v3296, 1.442695
    %v3404 = vpow.pop %v3403
    %v3405 = vmul.f32 %v3297, 1.442695
    %v3406 = vpow.pop %v3405
    %v3407 = vmul.f32 %v3298, 1.442695
    %v3408 = vpow.pop %v3407
    %v3409 = vmul.f32 %v3299, 1.442695
    %v3410 = vpow.pop %v3409
    %v3411 = vmul.f32 %v3300, 1.442695
    %v3412 = vpow.pop %v3411
    %v3413 = vmul.f32 %v3301, 1.442695
    %v3414 = vpow.pop %v3413
    %v3415 = vmul.f32 %v3302, 1.442695
    %v3416 = vpow.pop %v3415
    %v3417 = vmul.f32 %v3303, 1.442695
    %v3418 = vpow.pop %v3417
    %v3419 = vmul.f32 %v3304, 1.442695
    %v3420 = vpow.pop %v3419
    %v3421 = vmul.f32 %v3305, 1.442695
    %v3422 = vpow.pop %v3421
    %v3423 = vmul.f32 %v3306, 1.442695
    %v3424 = vpow.pop %v3423
    %v3425 = vmul.f32 %v3307, 1.442695
    %v3426 = vpow.pop %v3425
    %v3427 = vmul.f32 %v3308, 1.442695
    %v3428 = vpow.pop %v3427
    %v3429 = vmul.f32 %v3309, 1.442695
    %v3430 = vpow.pop %v3429
    %v3431 = vmul.f32 %v3310, 1.442695
    %v3432 = vpow.pop %v3431
    %v3433 = vmul.f32 %v3311, 1.442695
    %v3434 = vpow.pop %v3433
    %v3435 = vmul.f32 %v3312, 1.442695
    %v3436 = vpow.pop %v3435
    %v3437 = vmul.f32 %v3313, 1.442695
    %v3438 = vpow.pop %v3437
    %v3439 = vmul.f32 %v3314, 1.442695
    %v3440 = vpow.pop %v3439
    %v3441 = vmul.f32 %v3315, 1.442695
    %v3442 = vpow.pop %v3441
    %v3443 = vmul.f32 %v3316, 1.442695
    %v3444 = vpow.pop %v3443
    %v3445 = vadd.f32 %v3318, 1.0
    %v3446 = vadd.f32 %v3320, 1.0
    %v3447 = vadd.f32 %v3322, 1.0
    %v3448 = vadd.f32 %v3324, 1.0
    %v3449 = vadd.f32 %v3326, 1.0
    %v3450 = vadd.f32 %v3328, 1.0
    %v3451 = vadd.f32 %v3330, 1.0
    %v3452 = vadd.f32 %v3332, 1.0
    %v3453 = vadd.f32 %v3334, 1.0
    %v3454 = vadd.f32 %v3336, 1.0
    %v3455 = vadd.f32 %v3338, 1.0
    %v3456 = vadd.f32 %v3340, 1.0
    %v3457 = vadd.f32 %v3342, 1.0
    %v3458 = vadd.f32 %v3344, 1.0
    %v3459 = vadd.f32 %v3346, 1.0
    %v3460 = vadd.f32 %v3348, 1.0
    %v3461 = vadd.f32 %v3350, 1.0
    %v3462 = vadd.f32 %v3352, 1.0
    %v3463 = vadd.f32 %v3354, 1.0
    %v3464 = vadd.f32 %v3356, 1.0
    %v3465 = vadd.f32 %v3358, 1.0
    %v3466 = vadd.f32 %v3360, 1.0
    %v3467 = vadd.f32 %v3362, 1.0
    %v3468 = vadd.f32 %v3364, 1.0
    %v3469 = vadd.f32 %v3366, 1.0
    %v3470 = vadd.f32 %v3368, 1.0
    %v3471 = vadd.f32 %v3370, 1.0
    %v3472 = vadd.f32 %v3372, 1.0
    %v3473 = vadd.f32 %v3374, 1.0
    %v3474 = vadd.f32 %v3376, 1.0
    %v3475 = vadd.f32 %v3378, 1.0
    %v3476 = vadd.f32 %v3380, 1.0
    %v3477 = vadd.f32 %v3382, 1.0
    %v3478 = vadd.f32 %v3384, 1.0
    %v3479 = vadd.f32 %v3386, 1.0
    %v3480 = vadd.f32 %v3388, 1.0
    %v3481 = vadd.f32 %v3390, 1.0
    %v3482 = vadd.f32 %v3392, 1.0
    %v3483 = vadd.f32 %v3394, 1.0
    %v3484 = vadd.f32 %v3396, 1.0
    %v3485 = vadd.f32 %v3398, 1.0
    %v3486 = vadd.f32 %v3400, 1.0
    %v3487 = vadd.f32 %v3402, 1.0
    %v3488 = vadd.f32 %v3404, 1.0
    %v3489 = vadd.f32 %v3406, 1.0
    %v3490 = vadd.f32 %v3408, 1.0
    %v3491 = vadd.f32 %v3410, 1.0
    %v3492 = vadd.f32 %v3412, 1.0
    %v3493 = vadd.f32 %v3414, 1.0
    %v3494 = vadd.f32 %v3416, 1.0
    %v3495 = vadd.f32 %v3418, 1.0
    %v3496 = vadd.f32 %v3420, 1.0
    %v3497 = vadd.f32 %v3422, 1.0
    %v3498 = vadd.f32 %v3424, 1.0
    %v3499 = vadd.f32 %v3426, 1.0
    %v3500 = vadd.f32 %v3428, 1.0
    %v3501 = vadd.f32 %v3430, 1.0
    %v3502 = vadd.f32 %v3432, 1.0
    %v3503 = vadd.f32 %v3434, 1.0
    %v3504 = vadd.f32 %v3436, 1.0
    %v3505 = vadd.f32 %v3438, 1.0
    %v3506 = vadd.f32 %v3440, 1.0
    %v3507 = vadd.f32 %v3442, 1.0
    %v3508 = vadd.f32 %v3444, 1.0
    %v3509 = vrcp.pop %v3445
    %v3510 = vmul.f32 1.0, %v3509
    %v3511 = vrcp.pop %v3446
    %v3512 = vmul.f32 1.0, %v3511
    %v3513 = vrcp.pop %v3447
    %v3514 = vmul.f32 1.0, %v3513
    %v3515 = vrcp.pop %v3448
    %v3516 = vmul.f32 1.0, %v3515
    %v3517 = vrcp.pop %v3449
    %v3518 = vmul.f32 1.0, %v3517
    %v3519 = vrcp.pop %v3450
    %v3520 = vmul.f32 1.0, %v3519
    %v3521 = vrcp.pop %v3451
    %v3522 = vmul.f32 1.0, %v3521
    %v3523 = vrcp.pop %v3452
    %v3524 = vmul.f32 1.0, %v3523
    %v3525 = vrcp.pop %v3453
    %v3526 = vmul.f32 1.0, %v3525
    %v3527 = vrcp.pop %v3454
    %v3528 = vmul.f32 1.0, %v3527
    %v3529 = vrcp.pop %v3455
    %v3530 = vmul.f32 1.0, %v3529
    %v3531 = vrcp.pop %v3456
    %v3532 = vmul.f32 1.0, %v3531
    %v3533 = vrcp.pop %v3457
    %v3534 = vmul.f32 1.0, %v3533
    %v3535 = vrcp.pop %v3458
    %v3536 = vmul.f32 1.0, %v3535
    %v3537 = vrcp.pop %v3459
    %v3538 = vmul.f32 1.0, %v3537
    %v3539 = vrcp.pop %v3460
    %v3540 = vmul.f32 1.0, %v3539
    %v3541 = vrcp.pop %v3461
    %v3542 = vmul.f32 1.0, %v3541
    %v3543 = vrcp.pop %v3462
    %v3544 = vmul.f32 1.0, %v3543
    %v3545 = vrcp.pop %v3463
    %v3546 = vmul.f32 1.0, %v3545
    %v3547 = vrcp.pop %v3464
    %v3548 = vmul.f32 1.0, %v3547
    %v3549 = vrcp.pop %v3465
    %v3550 = vmul.f32 1.0, %v3549
    %v3551 = vrcp.pop %v3466
    %v3552 = vmul.f32 1.0, %v3551
    %v3553 = vrcp.pop %v3467
    %v3554 = vmul.f32 1.0, %v3553
    %v3555 = vrcp.pop %v3468
    %v3556 = vmul.f32 1.0, %v3555
    %v3557 = vrcp.pop %v3469
    %v3558 = vmul.f32 1.0, %v3557
    %v3559 = vrcp.pop %v3470
    %v3560 = vmul.f32 1.0, %v3559
    %v3561 = vrcp.pop %v3471
    %v3562 = vmul.f32 1.0, %v3561
    %v3563 = vrcp.pop %v3472
    %v3564 = vmul.f32 1.0, %v3563
    %v3565 = vrcp.pop %v3473
    %v3566 = vmul.f32 1.0, %v3565
    %v3567 = vrcp.pop %v3474
    %v3568 = vmul.f32 1.0, %v3567
    %v3569 = vrcp.pop %v3475
    %v3570 = vmul.f32 1.0, %v3569
    %v3571 = vrcp.pop %v3476
    %v3572 = vmul.f32 1.0, %v3571
    %v3573 = vrcp.pop %v3477
    %v3574 = vmul.f32 1.0, %v3573
    %v3575 = vrcp.pop %v3478
    %v3576 = vmul.f32 1.0, %v3575
    %v3577 = vrcp.pop %v3479
    %v3578 = vmul.f32 1.0, %v3577
    %v3579 = vrcp.pop %v3480
    %v3580 = vmul.f32 1.0, %v3579
    %v3581 = vrcp.pop %v3481
    %v3582 = vmul.f32 1.0, %v3581
    %v3583 = vrcp.pop %v3482
    %v3584 = vmul.f32 1.0, %v3583
    %v3585 = vrcp.pop %v3483
    %v3586 = vmul.f32 1.0, %v3585
    %v3587 = vrcp.pop %v3484
    %v3588 = vmul.f32 1.0, %v3587
    %v3589 = vrcp.pop %v3485
    %v3590 = vmul.f32 1.0, %v3589
    %v3591 = vrcp.pop %v3486
    %v3592 = vmul.f32 1.0, %v3591
    %v3593 = vrcp.pop %v3487
    %v3594 = vmul.f32 1.0, %v3593
    %v3595 = vrcp.pop %v3488
    %v3596 = vmul.f32 1.0, %v3595
    %v3597 = vrcp.pop %v3489
    %v3598 = vmul.f32 1.0, %v3597
    %v3599 = vrcp.pop %v3490
    %v3600 = vmul.f32 1.0, %v3599
    %v3601 = vrcp.pop %v3491
    %v3602 = vmul.f32 1.0, %v3601
    %v3603 = vrcp.pop %v3492
    %v3604 = vmul.f32 1.0, %v3603
    %v3605 = vrcp.pop %v3493
    %v3606 = vmul.f32 1.0, %v3605
    %v3607 = vrcp.pop %v3494
    %v3608 = vmul.f32 1.0, %v3607
    %v3609 = vrcp.pop %v3495
    %v3610 = vmul.f32 1.0, %v3609
    %v3611 = vrcp.pop %v3496
    %v3612 = vmul.f32 1.0, %v3611
    %v3613 = vrcp.pop %v3497
    %v3614 = vmul.f32 1.0, %v3613
    %v3615 = vrcp.pop %v3498
    %v3616 = vmul.f32 1.0, %v3615
    %v3617 = vrcp.pop %v3499
    %v3618 = vmul.f32 1.0, %v3617
    %v3619 = vrcp.pop %v3500
    %v3620 = vmul.f32 1.0, %v3619
    %v3621 = vrcp.pop %v3501
    %v3622 = vmul.f32 1.0, %v3621
    %v3623 = vrcp.pop %v3502
    %v3624 = vmul.f32 1.0, %v3623
    %v3625 = vrcp.pop %v3503
    %v3626 = vmul.f32 1.0, %v3625
    %v3627 = vrcp.pop %v3504
    %v3628 = vmul.f32 1.0, %v3627
    %v3629 = vrcp.pop %v3505
    %v3630 = vmul.f32 1.0, %v3629
    %v3631 = vrcp.pop %v3506
    %v3632 = vmul.f32 1.0, %v3631
    %v3633 = vrcp.pop %v3507
    %v3634 = vmul.f32 1.0, %v3633
    %v3635 = vrcp.pop %v3508
    %v3636 = vmul.f32 1.0, %v3635
    %v3637 = vmul.f32 %v3062, %v3510
    %v3638 = vmul.f32 %v3064, %v3512
    %v3639 = vmul.f32 %v3175, %v3514
    %v3640 = vmul.f32 %v3177, %v3516
    %v3641 = vmul.f32 %v3066, %v3518
    %v3642 = vmul.f32 %v3068, %v3520
    %v3643 = vmul.f32 %v3179, %v3522
    %v3644 = vmul.f32 %v3181, %v3524
    %v3645 = vmul.f32 %v3072, %v3526
    %v3646 = vmul.f32 %v3074, %v3528
    %v3647 = vmul.f32 %v3185, %v3530
    %v3648 = vmul.f32 %v3187, %v3532
    %v3649 = vmul.f32 %v3076, %v3534
    %v3650 = vmul.f32 %v3078, %v3536
    %v3651 = vmul.f32 %v3189, %v3538
    %v3652 = vmul.f32 %v3191, %v3540
    %v3653 = vmul.f32 %v3082, %v3542
    %v3654 = vmul.f32 %v3084, %v3544
    %v3655 = vmul.f32 %v3195, %v3546
    %v3656 = vmul.f32 %v3197, %v3548
    %v3657 = vmul.f32 %v3086, %v3550
    %v3658 = vmul.f32 %v3088, %v3552
    %v3659 = vmul.f32 %v3199, %v3554
    %v3660 = vmul.f32 %v3201, %v3556
    %v3661 = vmul.f32 %v3092, %v3558
    %v3662 = vmul.f32 %v3094, %v3560
    %v3663 = vmul.f32 %v3205, %v3562
    %v3664 = vmul.f32 %v3207, %v3564
    %v3665 = vmul.f32 %v3096, %v3566
    %v3666 = vmul.f32 %v3098, %v3568
    %v3667 = vmul.f32 %v3209, %v3570
    %v3668 = vmul.f32 %v3211, %v3572
    %v3669 = vmul.f32 %v3102, %v3574
    %v3670 = vmul.f32 %v3104, %v3576
    %v3671 = vmul.f32 %v3215, %v3578
    %v3672 = vmul.f32 %v3217, %v3580
    %v3673 = vmul.f32 %v3106, %v3582
    %v3674 = vmul.f32 %v3108, %v3584
    %v3675 = vmul.f32 %v3219, %v3586
    %v3676 = vmul.f32 %v3221, %v3588
    %v3677 = vmul.f32 %v3112, %v3590
    %v3678 = vmul.f32 %v3114, %v3592
    %v3679 = vmul.f32 %v3225, %v3594
    %v3680 = vmul.f32 %v3227, %v3596
    %v3681 = vmul.f32 %v3116, %v3598
    %v3682 = vmul.f32 %v3118, %v3600
    %v3683 = vmul.f32 %v3229, %v3602
    %v3684 = vmul.f32 %v3231, %v3604
    %v3685 = vmul.f32 %v3122, %v3606
    %v3686 = vmul.f32 %v3124, %v3608
    %v3687 = vmul.f32 %v3235, %v3610
    %v3688 = vmul.f32 %v3237, %v3612
    %v3689 = vmul.f32 %v3126, %v3614
    %v3690 = vmul.f32 %v3128, %v3616
    %v3691 = vmul.f32 %v3239, %v3618
    %v3692 = vmul.f32 %v3241, %v3620
    %v3693 = vmul.f32 %v3132, %v3622
    %v3694 = vmul.f32 %v3134, %v3624
    %v3695 = vmul.f32 %v3245, %v3626
    %v3696 = vmul.f32 %v3247, %v3628
    %v3697 = vmul.f32 %v3136, %v3630
    %v3698 = vmul.f32 %v3138, %v3632
    %v3699 = vmul.f32 %v3249, %v3634
    %v3700 = vmul.f32 %v3251, %v3636
    %v3701 = vpack.c.bf16 %v3641, %v3637
    %v3702 = vpack.c.bf16 %v3642, %v3638
    %v3703 = vpack.c.bf16 %v3643, %v3639
    %v3704 = vpack.c.bf16 %v3644, %v3640
    %v3705 = vpack.c.bf16 %v3649, %v3645
    %v3706 = vpack.c.bf16 %v3650, %v3646
    %v3707 = vpack.c.bf16 %v3651, %v3647
    %v3708 = vpack.c.bf16 %v3652, %v3648
    %v3709 = vpack.c.bf16 %v3657, %v3653
    %v3710 = vpack.c.bf16 %v3658, %v3654
    %v3711 = vpack.c.bf16 %v3659, %v3655
    %v3712 = vpack.c.bf16 %v3660, %v3656
    %v3713 = vpack.c.bf16 %v3665, %v3661
    %v3714 = vpack.c.bf16 %v3666, %v3662
    %v3715 = vpack.c.bf16 %v3667, %v3663
    %v3716 = vpack.c.bf16 %v3668, %v3664
    %v3717 = vpack.c.bf16 %v3673, %v3669
    %v3718 = vpack.c.bf16 %v3674, %v3670
    %v3719 = vpack.c.bf16 %v3675, %v3671
    %v3720 = vpack.c.bf16 %v3676, %v3672
    %v3721 = vpack.c.bf16 %v3681, %v3677
    %v3722 = vpack.c.bf16 %v3682, %v3678
    %v3723 = vpack.c.bf16 %v3683, %v3679
    %v3724 = vpack.c.bf16 %v3684, %v3680
    %v3725 = vpack.c.bf16 %v3689, %v3685
    %v3726 = vpack.c.bf16 %v3690, %v3686
    %v3727 = vpack.c.bf16 %v3691, %v3687
    %v3728 = vpack.c.bf16 %v3692, %v3688
    %v3729 = vpack.c.bf16 %v3697, %v3693
    %v3730 = vpack.c.bf16 %v3698, %v3694
    %v3731 = vpack.c.bf16 %v3699, %v3695
    %v3732 = vpack.c.bf16 %v3700, %v3696
    %v3733 = vld [vmem:[#allocation6] sm:$0xf]
    %v3734 = vld [vmem:[#allocation6 + $0x4] sm:$0xf]
    %v3735 = vld [vmem:[#allocation6 + $0x8] sm:$0xf]
    %v3736 = vld [vmem:[#allocation6 + $0xc] sm:$0xf]
    %v3737 = vld [vmem:[#allocation6 + $0x10] sm:$0xf]
    %v3738 = vld [vmem:[#allocation6 + $0x14] sm:$0xf]
    %v3739 = vld [vmem:[#allocation6 + $0x18] sm:$0xf]
    %v3740 = vld [vmem:[#allocation6 + $0x1c] sm:$0xf]
    %v3741 = vld [vmem:[#allocation6 + $0x20] sm:$0xf]
    %v3742 = vld [vmem:[#allocation6 + $0x24] sm:$0xf]
    %v3743 = vld [vmem:[#allocation6 + $0x28] sm:$0xf]
    %v3744 = vld [vmem:[#allocation6 + $0x2c] sm:$0xf]
    %v3745 = vld [vmem:[#allocation6 + $0x30] sm:$0xf]
    %v3746 = vld [vmem:[#allocation6 + $0x34] sm:$0xf]
    %v3747 = vld [vmem:[#allocation6 + $0x38] sm:$0xf]
    %v3748 = vld [vmem:[#allocation6 + $0x3c] sm:$0xf]
    %v3749 = vld [vmem:[#allocation6 + $0x40] sm:$0xf]
    %v3750 = vld [vmem:[#allocation6 + $0x44] sm:$0xf]
    %v3751 = vld [vmem:[#allocation6 + $0x48] sm:$0xf]
    %v3752 = vld [vmem:[#allocation6 + $0x4c] sm:$0xf]
    %v3753 = vld [vmem:[#allocation6 + $0x50] sm:$0xf]
    %v3754 = vld [vmem:[#allocation6 + $0x54] sm:$0xf]
    %v3755 = vld [vmem:[#allocation6 + $0x58] sm:$0xf]
    %v3756 = vld [vmem:[#allocation6 + $0x5c] sm:$0xf]
    %v3757 = vld [vmem:[#allocation6 + $0x60] sm:$0xf]
    %v3758 = vld [vmem:[#allocation6 + $0x64] sm:$0xf]
    %v3759 = vld [vmem:[#allocation6 + $0x68] sm:$0xf]
    %v3760 = vld [vmem:[#allocation6 + $0x6c] sm:$0xf]
    %v3761 = vld [vmem:[#allocation6 + $0x70] sm:$0xf]
    %v3762 = vld [vmem:[#allocation6 + $0x74] sm:$0xf]
    %v3763 = vld [vmem:[#allocation6 + $0x78] sm:$0xf]
    %v3764 = vld [vmem:[#allocation6 + $0x7c] sm:$0xf]
    %v3765 = vld [vmem:[#allocation6 + $0x80] sm:$0xf]
    %v3766 = vld [vmem:[#allocation6 + $0x84] sm:$0xf]
    %v3767 = vld [vmem:[#allocation6 + $0x88] sm:$0xf]
    %v3768 = vld [vmem:[#allocation6 + $0x8c] sm:$0xf]
    %v3769 = vld [vmem:[#allocation6 + $0x90] sm:$0xf]
    %v3770 = vld [vmem:[#allocation6 + $0x94] sm:$0xf]
    %v3771 = vld [vmem:[#allocation6 + $0x98] sm:$0xf]
    %v3772 = vld [vmem:[#allocation6 + $0x9c] sm:$0xf]
    %v3773 = vld [vmem:[#allocation6 + $0xa0] sm:$0xf]
    %v3774 = vld [vmem:[#allocation6 + $0xa4] sm:$0xf]
    %v3775 = vld [vmem:[#allocation6 + $0xa8] sm:$0xf]
    %v3776 = vld [vmem:[#allocation6 + $0xac] sm:$0xf]
    %v3777 = vld [vmem:[#allocation6 + $0xb0] sm:$0xf]
    %v3778 = vld [vmem:[#allocation6 + $0xb4] sm:$0xf]
    %v3779 = vld [vmem:[#allocation6 + $0xb8] sm:$0xf]
    %v3780 = vld [vmem:[#allocation6 + $0xbc] sm:$0xf]
    %v3781 = vld [vmem:[#allocation6 + $0xc0] sm:$0xf]
    %v3782 = vld [vmem:[#allocation6 + $0xc4] sm:$0xf]
    %v3783 = vld [vmem:[#allocation6 + $0xc8] sm:$0xf]
    %v3784 = vld [vmem:[#allocation6 + $0xcc] sm:$0xf]
    %v3785 = vld [vmem:[#allocation6 + $0xd0] sm:$0xf]
    %v3786 = vld [vmem:[#allocation6 + $0xd4] sm:$0xf]
    %v3787 = vld [vmem:[#allocation6 + $0xd8] sm:$0xf]
    %v3788 = vld [vmem:[#allocation6 + $0xdc] sm:$0xf]
    %v3789 = vld [vmem:[#allocation6 + $0xe0] sm:$0xf]
    %v3790 = vld [vmem:[#allocation6 + $0xe4] sm:$0xf]
    %v3791 = vld [vmem:[#allocation6 + $0xe8] sm:$0xf]
    %v3792 = vld [vmem:[#allocation6 + $0xec] sm:$0xf]
    %v3793 = vld [vmem:[#allocation6 + $0xf0] sm:$0xf]
    %v3794 = vld [vmem:[#allocation6 + $0xf4] sm:$0xf]
    %v3795 = vld [vmem:[#allocation6 + $0xf8] sm:$0xf]
    %v3796 = vld [vmem:[#allocation6 + $0xfc] sm:$0xf]
    %v3861 = vunpack.c.l.b16 %v3733
    %v3862 = vunpack.c.l.b16 %v3734
    %v3863 = vunpack.c.l.b16 %v3735
    %v3864 = vunpack.c.l.b16 %v3736
    %v3865 = vunpack.c.l.b16 %v3737
    %v3866 = vunpack.c.l.b16 %v3738
    %v3867 = vunpack.c.l.b16 %v3739
    %v3868 = vunpack.c.l.b16 %v3740
    %v3869 = vunpack.c.l.b16 %v3741
    %v3870 = vunpack.c.l.b16 %v3742
    %v3871 = vunpack.c.l.b16 %v3743
    %v3872 = vunpack.c.l.b16 %v3744
    %v3873 = vunpack.c.l.b16 %v3745
    %v3874 = vunpack.c.l.b16 %v3746
    %v3875 = vunpack.c.l.b16 %v3747
    %v3876 = vunpack.c.l.b16 %v3748
    %v3877 = vunpack.c.l.b16 %v3749
    %v3878 = vunpack.c.l.b16 %v3750
    %v3879 = vunpack.c.l.b16 %v3751
    %v3880 = vunpack.c.l.b16 %v3752
    %v3881 = vunpack.c.l.b16 %v3753
    %v3882 = vunpack.c.l.b16 %v3754
    %v3883 = vunpack.c.l.b16 %v3755
    %v3884 = vunpack.c.l.b16 %v3756
    %v3885 = vunpack.c.l.b16 %v3757
    %v3886 = vunpack.c.l.b16 %v3758
    %v3887 = vunpack.c.l.b16 %v3759
    %v3888 = vunpack.c.l.b16 %v3760
    %v3889 = vunpack.c.l.b16 %v3761
    %v3890 = vunpack.c.l.b16 %v3762
    %v3891 = vunpack.c.l.b16 %v3763
    %v3892 = vunpack.c.l.b16 %v3764
    %v3893 = vunpack.c.l.b16 %v3765
    %v3894 = vunpack.c.l.b16 %v3766
    %v3895 = vunpack.c.l.b16 %v3767
    %v3896 = vunpack.c.l.b16 %v3768
    %v3897 = vunpack.c.l.b16 %v3769
    %v3898 = vunpack.c.l.b16 %v3770
    %v3899 = vunpack.c.l.b16 %v3771
    %v3900 = vunpack.c.l.b16 %v3772
    %v3901 = vunpack.c.l.b16 %v3773
    %v3902 = vunpack.c.l.b16 %v3774
    %v3903 = vunpack.c.l.b16 %v3775
    %v3904 = vunpack.c.l.b16 %v3776
    %v3905 = vunpack.c.l.b16 %v3777
    %v3906 = vunpack.c.l.b16 %v3778
    %v3907 = vunpack.c.l.b16 %v3779
    %v3908 = vunpack.c.l.b16 %v3780
    %v3909 = vunpack.c.l.b16 %v3781
    %v3910 = vunpack.c.l.b16 %v3782
    %v3911 = vunpack.c.l.b16 %v3783
    %v3912 = vunpack.c.l.b16 %v3784
    %v3913 = vunpack.c.l.b16 %v3785
    %v3914 = vunpack.c.l.b16 %v3786
    %v3915 = vunpack.c.l.b16 %v3787
    %v3916 = vunpack.c.l.b16 %v3788
    %v3917 = vunpack.c.l.b16 %v3789
    %v3918 = vunpack.c.l.b16 %v3790
    %v3919 = vunpack.c.l.b16 %v3791
    %v3920 = vunpack.c.l.b16 %v3792
    %v3921 = vunpack.c.l.b16 %v3793
    %v3922 = vunpack.c.l.b16 %v3794
    %v3923 = vunpack.c.l.b16 %v3795
    %v3924 = vunpack.c.l.b16 %v3796
    %v3925 = vpack.c.b16 %v3862, %v3861
    %v3926 = vpack.c.b16 %v3864, %v3863
    %v3927 = vpack.c.b16 %v3866, %v3865
    %v3928 = vpack.c.b16 %v3868, %v3867
    %v3929 = vpack.c.b16 %v3870, %v3869
    %v3930 = vpack.c.b16 %v3872, %v3871
    %v3931 = vpack.c.b16 %v3874, %v3873
    %v3932 = vpack.c.b16 %v3876, %v3875
    %v3933 = vpack.c.b16 %v3878, %v3877
    %v3934 = vpack.c.b16 %v3880, %v3879
    %v3935 = vpack.c.b16 %v3882, %v3881
    %v3936 = vpack.c.b16 %v3884, %v3883
    %v3937 = vpack.c.b16 %v3886, %v3885
    %v3938 = vpack.c.b16 %v3888, %v3887
    %v3939 = vpack.c.b16 %v3890, %v3889
    %v3940 = vpack.c.b16 %v3892, %v3891
    %v3941 = vpack.c.b16 %v3894, %v3893
    %v3942 = vpack.c.b16 %v3896, %v3895
    %v3943 = vpack.c.b16 %v3898, %v3897
    %v3944 = vpack.c.b16 %v3900, %v3899
    %v3945 = vpack.c.b16 %v3902, %v3901
    %v3946 = vpack.c.b16 %v3904, %v3903
    %v3947 = vpack.c.b16 %v3906, %v3905
    %v3948 = vpack.c.b16 %v3908, %v3907
    %v3949 = vpack.c.b16 %v3910, %v3909
    %v3950 = vpack.c.b16 %v3912, %v3911
    %v3951 = vpack.c.b16 %v3914, %v3913
    %v3952 = vpack.c.b16 %v3916, %v3915
    %v3953 = vpack.c.b16 %v3918, %v3917
    %v3954 = vpack.c.b16 %v3920, %v3919
    %v3955 = vpack.c.b16 %v3922, %v3921
    %v3956 = vpack.c.b16 %v3924, %v3923
    %3989 = vmatprep.subr.bf16.mxu0 0
    %3990 = vmatpush1.bf16.msra.mxu0 %v3932
    %3991 = vmatprep.subr.bf16.mxu0 0
    %3992 = vmatpush1.bf16.msra.mxu0 %v3931
    %3993 = vmatprep.subr.bf16.mxu0 0
    %3994 = vmatpush1.bf16.msra.mxu0 %v3930
    %3995 = vmatprep.subr.bf16.mxu0 0
    %3996 = vmatpush1.bf16.msra.mxu0 %v3929
    %3997 = vmatprep.subr.bf16.mxu0 0
    %3998 = vmatpush1.bf16.msra.mxu0 %v3928
    %3999 = vmatprep.subr.bf16.mxu0 0
    %4000 = vmatpush1.bf16.msra.mxu0 %v3927
    %4001 = vmatprep.subr.bf16.mxu0 0
    %4002 = vmatpush1.bf16.msra.mxu0 %v3926
    %4003 = vmatprep.subr.bf16.mxu0 0
    %4004 = vmatpush1.bf16.msra.mxu0 %v3925
    %4005 = vmatprep.subr.bf16.mxu0 0
    %4006 = vmatpush2.bf16.msra.mxu0 %v3940
    %4007 = vmatprep.subr.bf16.mxu0 0
    %4008 = vmatpush2.bf16.msra.mxu0 %v3939
    %4009 = vmatprep.subr.bf16.mxu0 0
    %4010 = vmatpush2.bf16.msra.mxu0 %v3938
    %4011 = vmatprep.subr.bf16.mxu0 0
    %4012 = vmatpush2.bf16.msra.mxu0 %v3937
    %4013 = vmatprep.subr.bf16.mxu0 0
    %4014 = vmatpush2.bf16.msra.mxu0 %v3936
    %4015 = vmatprep.subr.bf16.mxu0 0
    %4016 = vmatpush2.bf16.msra.mxu0 %v3935
    %4017 = vmatprep.subr.bf16.mxu0 0
    %4018 = vmatpush2.bf16.msra.mxu0 %v3934
    %4019 = vmatprep.subr.bf16.mxu0 0
    %4020 = vmatpush2.bf16.msra.mxu0 %v3933
    %4021 = vmatprep.mubr.bf16.mxu0 %v3702
    %4022 = vmatmul.mubr.bf16.gmra.mxu0 %v3701
    %v4023 = vpop.f32.mrf.mxu0
    %v4024 = vadd.f32 0.0, %v4023
    %v4025 = vpop.f32.mrf.mxu0
    %v4026 = vpop.f32.mrf.mxu0
    %v4027 = vadd.f32 0.0, %v4026
    %v4028 = vpop.f32.mrf.mxu0
    %4029 = vmatprep.mubr.bf16.mxu0 %v3706
    %4030 = vmatmul.mubr.bf16.gmra.mxu0 %v3705
    %v4031 = vpop.f32.mrf.mxu0
    %v4032 = vadd.f32 0.0, %v4031
    %v4033 = vpop.f32.mrf.mxu0
    %v4034 = vpop.f32.mrf.mxu0
    %v4035 = vadd.f32 0.0, %v4034
    %v4036 = vpop.f32.mrf.mxu0
    %4037 = vmatprep.mubr.bf16.mxu0 %v3710
    %4038 = vmatmul.mubr.bf16.gmra.mxu0 %v3709
    %v4039 = vpop.f32.mrf.mxu0
    %v4040 = vadd.f32 0.0, %v4039
    %v4041 = vpop.f32.mrf.mxu0
    %v4042 = vpop.f32.mrf.mxu0
    %v4043 = vadd.f32 0.0, %v4042
    %v4044 = vpop.f32.mrf.mxu0
    %4045 = vmatprep.mubr.bf16.mxu0 %v3714
    %4046 = vmatmul.mubr.bf16.gmra.mxu0 %v3713
    %v4047 = vpop.f32.mrf.mxu0
    %v4048 = vadd.f32 0.0, %v4047
    %v4049 = vpop.f32.mrf.mxu0
    %v4050 = vpop.f32.mrf.mxu0
    %v4051 = vadd.f32 0.0, %v4050
    %v4052 = vpop.f32.mrf.mxu0
    %4053 = vmatprep.mubr.bf16.mxu0 %v3718
    %4054 = vmatmul.mubr.bf16.gmra.mxu0 %v3717
    %v4055 = vpop.f32.mrf.mxu0
    %v4056 = vadd.f32 0.0, %v4055
    %v4057 = vpop.f32.mrf.mxu0
    %v4058 = vpop.f32.mrf.mxu0
    %v4059 = vadd.f32 0.0, %v4058
    %v4060 = vpop.f32.mrf.mxu0
    %4061 = vmatprep.mubr.bf16.mxu0 %v3722
    %4062 = vmatmul.mubr.bf16.gmra.mxu0 %v3721
    %v4063 = vpop.f32.mrf.mxu0
    %v4064 = vadd.f32 0.0, %v4063
    %v4065 = vpop.f32.mrf.mxu0
    %v4066 = vpop.f32.mrf.mxu0
    %v4067 = vadd.f32 0.0, %v4066
    %v4068 = vpop.f32.mrf.mxu0
    %4069 = vmatprep.mubr.bf16.mxu0 %v3726
    %4070 = vmatmul.mubr.bf16.gmra.mxu0 %v3725
    %v4071 = vpop.f32.mrf.mxu0
    %v4072 = vadd.f32 0.0, %v4071
    %v4073 = vpop.f32.mrf.mxu0
    %v4074 = vpop.f32.mrf.mxu0
    %v4075 = vadd.f32 0.0, %v4074
    %v4076 = vpop.f32.mrf.mxu0
    %4077 = vmatprep.mubr.bf16.mxu0 %v3730
    %4078 = vmatmul.mubr.bf16.gmra.mxu0 %v3729
    %v4079 = vpop.f32.mrf.mxu0
    %v4080 = vadd.f32 0.0, %v4079
    %v4081 = vpop.f32.mrf.mxu0
    %v4082 = vpop.f32.mrf.mxu0
    %v4083 = vadd.f32 0.0, %v4082
    %v4084 = vpop.f32.mrf.mxu0
    %4085 = vdwg.mxu0
    %4086 = vmatprep.subr.bf16.mxu0 0
    %4087 = vmatpush1.bf16.msra.mxu0 %v3948
    %4088 = vmatprep.subr.bf16.mxu0 0
    %4089 = vmatpush1.bf16.msra.mxu0 %v3947
    %4090 = vmatprep.subr.bf16.mxu0 0
    %4091 = vmatpush1.bf16.msra.mxu0 %v3946
    %4092 = vmatprep.subr.bf16.mxu0 0
    %4093 = vmatpush1.bf16.msra.mxu0 %v3945
    %4094 = vmatprep.subr.bf16.mxu0 0
    %4095 = vmatpush1.bf16.msra.mxu0 %v3944
    %4096 = vmatprep.subr.bf16.mxu0 0
    %4097 = vmatpush1.bf16.msra.mxu0 %v3943
    %4098 = vmatprep.subr.bf16.mxu0 0
    %4099 = vmatpush1.bf16.msra.mxu0 %v3942
    %4100 = vmatprep.subr.bf16.mxu0 0
    %4101 = vmatpush1.bf16.msra.mxu0 %v3941
    %4102 = vmatprep.subr.bf16.mxu0 0
    %4103 = vmatpush2.bf16.msra.mxu0 %v3956
    %4104 = vmatprep.subr.bf16.mxu0 0
    %4105 = vmatpush2.bf16.msra.mxu0 %v3955
    %4106 = vmatprep.subr.bf16.mxu0 0
    %4107 = vmatpush2.bf16.msra.mxu0 %v3954
    %4108 = vmatprep.subr.bf16.mxu0 0
    %4109 = vmatpush2.bf16.msra.mxu0 %v3953
    %4110 = vmatprep.subr.bf16.mxu0 0
    %4111 = vmatpush2.bf16.msra.mxu0 %v3952
    %4112 = vmatprep.subr.bf16.mxu0 0
    %4113 = vmatpush2.bf16.msra.mxu0 %v3951
    %4114 = vmatprep.subr.bf16.mxu0 0
    %4115 = vmatpush2.bf16.msra.mxu0 %v3950
    %4116 = vmatprep.subr.bf16.mxu0 0
    %4117 = vmatpush2.bf16.msra.mxu0 %v3949
    %4118 = vmatprep.mubr.bf16.mxu0 %v3704
    %4119 = vmatmul.mubr.bf16.gmra.mxu0 %v3703
    %v4120 = vpop.f32.mrf.mxu0
    %v4121 = vadd.f32 %v4024, %v4120
    %v4122 = vpop.f32.mrf.mxu0
    %v4123 = vpop.f32.mrf.mxu0
    %v4124 = vadd.f32 %v4027, %v4123
    %v4125 = vpop.f32.mrf.mxu0
    %4126 = vmatprep.mubr.bf16.mxu0 %v3708
    %4127 = vmatmul.mubr.bf16.gmra.mxu0 %v3707
    %v4128 = vpop.f32.mrf.mxu0
    %v4129 = vadd.f32 %v4032, %v4128
    %v4130 = vpop.f32.mrf.mxu0
    %v4131 = vpop.f32.mrf.mxu0
    %v4132 = vadd.f32 %v4035, %v4131
    %v4133 = vpop.f32.mrf.mxu0
    %4134 = vmatprep.mubr.bf16.mxu0 %v3712
    %4135 = vmatmul.mubr.bf16.gmra.mxu0 %v3711
    %v4136 = vpop.f32.mrf.mxu0
    %v4137 = vadd.f32 %v4040, %v4136
    %v4138 = vpop.f32.mrf.mxu0
    %v4139 = vpop.f32.mrf.mxu0
    %v4140 = vadd.f32 %v4043, %v4139
    %v4141 = vpop.f32.mrf.mxu0
    %4142 = vmatprep.mubr.bf16.mxu0 %v3716
    %4143 = vmatmul.mubr.bf16.gmra.mxu0 %v3715
    %v4144 = vpop.f32.mrf.mxu0
    %v4145 = vadd.f32 %v4048, %v4144
    %v4146 = vpop.f32.mrf.mxu0
    %v4147 = vpop.f32.mrf.mxu0
    %v4148 = vadd.f32 %v4051, %v4147
    %v4149 = vpop.f32.mrf.mxu0
    %4150 = vmatprep.mubr.bf16.mxu0 %v3720
    %4151 = vmatmul.mubr.bf16.gmra.mxu0 %v3719
    %v4152 = vpop.f32.mrf.mxu0
    %v4153 = vadd.f32 %v4056, %v4152
    %v4154 = vpop.f32.mrf.mxu0
    %v4155 = vpop.f32.mrf.mxu0
    %v4156 = vadd.f32 %v4059, %v4155
    %v4157 = vpop.f32.mrf.mxu0
    %4158 = vmatprep.mubr.bf16.mxu0 %v3724
    %4159 = vmatmul.mubr.bf16.gmra.mxu0 %v3723
    %v4160 = vpop.f32.mrf.mxu0
    %v4161 = vadd.f32 %v4064, %v4160
    %v4162 = vpop.f32.mrf.mxu0
    %v4163 = vpop.f32.mrf.mxu0
    %v4164 = vadd.f32 %v4067, %v4163
    %v4165 = vpop.f32.mrf.mxu0
    %4166 = vmatprep.mubr.bf16.mxu0 %v3728
    %4167 = vmatmul.mubr.bf16.gmra.mxu0 %v3727
    %v4168 = vpop.f32.mrf.mxu0
    %v4169 = vadd.f32 %v4072, %v4168
    %v4170 = vpop.f32.mrf.mxu0
    %v4171 = vpop.f32.mrf.mxu0
    %v4172 = vadd.f32 %v4075, %v4171
    %v4173 = vpop.f32.mrf.mxu0
    %4174 = vmatprep.mubr.bf16.mxu0 %v3732
    %4175 = vmatmul.mubr.bf16.gmra.mxu0 %v3731
    %v4176 = vpop.f32.mrf.mxu0
    %v4177 = vadd.f32 %v4080, %v4176
    %v4178 = vpop.f32.mrf.mxu0
    %v4179 = vpop.f32.mrf.mxu0
    %v4180 = vadd.f32 %v4083, %v4179
    %v4181 = vpop.f32.mrf.mxu0
    %4182 = vdwg.mxu0
    %v4183 = vadd.f32 %v2448, %v4121
    %v4184 = vadd.f32 %v2449, %v4124
    %v4185 = vadd.f32 %v2450, %v4129
    %v4186 = vadd.f32 %v2451, %v4132
    %v4187 = vadd.f32 %v2452, %v4137
    %v4188 = vadd.f32 %v2453, %v4140
    %v4189 = vadd.f32 %v2454, %v4145
    %v4190 = vadd.f32 %v2455, %v4148
    %v4191 = vadd.f32 %v2456, %v4153
    %v4192 = vadd.f32 %v2457, %v4156
    %v4193 = vadd.f32 %v2458, %v4161
    %v4194 = vadd.f32 %v2459, %v4164
    %v4195 = vadd.f32 %v2460, %v4169
    %v4196 = vadd.f32 %v2461, %v4172
    %v4197 = vadd.f32 %v2462, %v4177
    %v4198 = vadd.f32 %v2463, %v4180
    %4199 = vxpose.xlu0.b32.start [1/16] %v4183, 128
    %4200 = vxpose.xlu0.b32.cont [2/16] %v4184, 128
    %4201 = vxpose.xlu0.b32.cont [3/16] %v4185, 128
    %4202 = vxpose.xlu0.b32.cont [4/16] %v4186, 128
    %4203 = vxpose.xlu0.b32.cont [5/16] %v4187, 128
    %4204 = vxpose.xlu0.b32.cont [6/16] %v4188, 128
    %4205 = vxpose.xlu0.b32.cont [7/16] %v4189, 128
    %4206 = vxpose.xlu0.b32.cont [8/16] %v4190, 128
    %4207 = vxpose.xlu0.b32.cont [9/16] 0.0, 128
    %4208 = vxpose.xlu0.b32.cont [10/16] 0.0, 128
    %4209 = vxpose.xlu0.b32.cont [11/16] 0.0, 128
    %4210 = vxpose.xlu0.b32.cont [12/16] 0.0, 128
    %4211 = vxpose.xlu0.b32.cont [13/16] 0.0, 128
    %4212 = vxpose.xlu0.b32.cont [14/16] 0.0, 128
    %4213 = vxpose.xlu0.b32.cont [15/16] 0.0, 128
    %4214 = vxpose.xlu0.b32.end [16/16] 0.0, 128
    %v4215 = vpop.trf.xlu0
    %v4216 = vpop.trf.xlu0
    %v4217 = vpop.trf.xlu0
    %v4218 = vpop.trf.xlu0
    %v4219 = vpop.trf.xlu0
    %v4220 = vpop.trf.xlu0
    %v4221 = vpop.trf.xlu0
    %v4222 = vpop.trf.xlu0
    %v4223 = vpop.trf.xlu0
    %v4224 = vpop.trf.xlu0
    %v4225 = vpop.trf.xlu0
    %v4226 = vpop.trf.xlu0
    %v4227 = vpop.trf.xlu0
    %v4228 = vpop.trf.xlu0
    %v4229 = vpop.trf.xlu0
    %v4230 = vpop.trf.xlu0
    %4231 = vxpose.xlu0.b32.start [1/16] %v4191, 128
    %4232 = vxpose.xlu0.b32.cont [2/16] %v4192, 128
    %4233 = vxpose.xlu0.b32.cont [3/16] %v4193, 128
    %4234 = vxpose.xlu0.b32.cont [4/16] %v4194, 128
    %4235 = vxpose.xlu0.b32.cont [5/16] %v4195, 128
    %4236 = vxpose.xlu0.b32.cont [6/16] %v4196, 128
    %4237 = vxpose.xlu0.b32.cont [7/16] %v4197, 128
    %4238 = vxpose.xlu0.b32.cont [8/16] %v4198, 128
    %4239 = vxpose.xlu0.b32.cont [9/16] 0.0, 128
    %4240 = vxpose.xlu0.b32.cont [10/16] 0.0, 128
    %4241 = vxpose.xlu0.b32.cont [11/16] 0.0, 128
    %4242 = vxpose.xlu0.b32.cont [12/16] 0.0, 128
    %4243 = vxpose.xlu0.b32.cont [13/16] 0.0, 128
    %4244 = vxpose.xlu0.b32.cont [14/16] 0.0, 128
    %4245 = vxpose.xlu0.b32.cont [15/16] 0.0, 128
    %4246 = vxpose.xlu0.b32.end [16/16] 0.0, 128
    %v4247 = vpop.trf.xlu0
    %v4248 = vpop.trf.xlu0
    %v4249 = vpop.trf.xlu0
    %v4250 = vpop.trf.xlu0
    %v4251 = vpop.trf.xlu0
    %v4252 = vpop.trf.xlu0
    %v4253 = vpop.trf.xlu0
    %v4254 = vpop.trf.xlu0
    %v4255 = vpop.trf.xlu0
    %v4256 = vpop.trf.xlu0
    %v4257 = vpop.trf.xlu0
    %v4258 = vpop.trf.xlu0
    %v4259 = vpop.trf.xlu0
    %v4260 = vpop.trf.xlu0
    %v4261 = vpop.trf.xlu0
    %v4262 = vpop.trf.xlu0
    %4263 = vst.msk [vmem:[%s7] sm:$0xff] %vm1166, %v4215
    %4264 = vst.msk [vmem:[%s7 + $0x8] sm:$0xff] %vm1166, %v4216
    %4265 = vst.msk [vmem:[%s7 + $0x10] sm:$0xff] %vm1166, %v4217
    %4266 = vst.msk [vmem:[%s7 + $0x18] sm:$0xff] %vm1166, %v4218
    %4267 = vst.msk [vmem:[%s7 + $0x20] sm:$0xff] %vm1166, %v4219
    %4268 = vst.msk [vmem:[%s7 + $0x28] sm:$0xff] %vm1166, %v4220
    %4269 = vst.msk [vmem:[%s7 + $0x30] sm:$0xff] %vm1166, %v4221
    %4270 = vst.msk [vmem:[%s7 + $0x38] sm:$0xff] %vm1166, %v4222
    %4271 = vst.msk [vmem:[%s7 + $0x40] sm:$0xff] %vm1166, %v4223
    %4272 = vst.msk [vmem:[%s7 + $0x48] sm:$0xff] %vm1166, %v4224
    %4273 = vst.msk [vmem:[%s7 + $0x50] sm:$0xff] %vm1166, %v4225
    %4274 = vst.msk [vmem:[%s7 + $0x58] sm:$0xff] %vm1166, %v4226
    %4275 = vst.msk [vmem:[%s7 + $0x60] sm:$0xff] %vm1166, %v4227
    %4276 = vst.msk [vmem:[%s7 + $0x68] sm:$0xff] %vm1166, %v4228
    %4277 = vst.msk [vmem:[%s7 + $0x70] sm:$0xff] %vm1166, %v4229
    %4278 = vst.msk [vmem:[%s7 + $0x78] sm:$0xff] %vm1166, %v4230
    %4279 = vst.msk [vmem:[%s7 + $0x80] sm:$0xff] %vm1166, %v4247
    %4280 = vst.msk [vmem:[%s7 + $0x88] sm:$0xff] %vm1166, %v4248
    %4281 = vst.msk [vmem:[%s7 + $0x90] sm:$0xff] %vm1166, %v4249
    %4282 = vst.msk [vmem:[%s7 + $0x98] sm:$0xff] %vm1166, %v4250
    %4283 = vst.msk [vmem:[%s7 + $0xa0] sm:$0xff] %vm1166, %v4251
    %4284 = vst.msk [vmem:[%s7 + $0xa8] sm:$0xff] %vm1166, %v4252
    %4285 = vst.msk [vmem:[%s7 + $0xb0] sm:$0xff] %vm1166, %v4253
    %4286 = vst.msk [vmem:[%s7 + $0xb8] sm:$0xff] %vm1166, %v4254
    %4287 = vst.msk [vmem:[%s7 + $0xc0] sm:$0xff] %vm1166, %v4255
    %4288 = vst.msk [vmem:[%s7 + $0xc8] sm:$0xff] %vm1166, %v4256
    %4289 = vst.msk [vmem:[%s7 + $0xd0] sm:$0xff] %vm1166, %v4257
    %4290 = vst.msk [vmem:[%s7 + $0xd8] sm:$0xff] %vm1166, %v4258
    %4291 = vst.msk [vmem:[%s7 + $0xe0] sm:$0xff] %vm1166, %v4259
    %4292 = vst.msk [vmem:[%s7 + $0xe8] sm:$0xff] %vm1166, %v4260
    %4293 = vst.msk [vmem:[%s7 + $0xf0] sm:$0xff] %vm1166, %v4261
    %4294 = vst.msk [vmem:[%s7 + $0xf8] sm:$0xff] %vm1166, %v4262
    // Predicated region
    $region42: #{tpu_custom_call.1} parent=1 // pred_check
      _
    $region43: #{tpu_custom_call.1} parent=1 // pred_check_branch
      %4296 = sbr.rel (0) target = $region45
    $region44: #{tpu_custom_call.1} parent=1 // pred_region
      _
    $region45: #{tpu_custom_call.1} parent=1 // pred_fallthru
      _
    // Predicated region
    $region46: #{tpu_custom_call.1} parent=1 // pred_check
      _
    $region47: #{tpu_custom_call.1} parent=1 // pred_check_branch
      %4298 = sbr.rel (0) target = $region49
    $region48: #{tpu_custom_call.1} parent=1 // pred_region
      _
    $region49: #{tpu_custom_call.1} parent=1 // pred_fallthru
      _
    %4299 = vsyncpa [#allocation3], 1
    %4300 = vsyncpa [#allocation5], 1

</llo_original>
